<compile_context>
chip_gen: v6e
topology: v6e:2x2x1
jax: 0.10.0
libtpu: 0.0.40
codegen_flags: <defaults>
</compile_context>

<pallas_src>
import jax
import jax.numpy as jnp
import numpy as np
from jax import lax
from jax.experimental import pallas as pl
from jax.experimental.pallas import tpu as pltpu


# ---------------------------------------------------------------------------
# Fused Pallas kernel
# ---------------------------------------------------------------------------
def _fused_cnn_kernel(x_ref, w1_ref, b1_ref, w2_ref, b2_ref, w3_ref, b3_ref,
                      p1s_ref, p2s_ref, avg_ref,
                      wf1_ref, bf1_ref, wf2_ref, bf2_ref,
                      o_ref,
                      a1p_ref, a2p_ref):
    f32 = jnp.float32
    N, Hp1, Wp1, _ = x_ref.shape
    H1, W1 = Hp1 - 2, Wp1 - 2                      # 16, 16
    C1 = w1_ref.shape[1]                           # 16
    C2 = w2_ref.shape[1]                           # 32
    H2, W2 = H1 // 2, W1 // 2                      # 8, 8
    H3, W3 = H2 // 2, W2 // 2                      # 4, 4
    W3o = a2p_ref.shape[2] - 2                     # 8 = W3 overscanned to a sublane multiple

    def taps(ref, h, w):
        # 3x3 patch taps of a zero-padded activation ref, concatenated on the lane axis
        # -> (N, h, w, 9*C).  Tap order (dy, dx, c) matches the folded weight layout.
        pieces = [ref[:, dy:dy + h, dx:dx + w, :] for dy in range(3) for dx in range(3)]
        return jnp.concatenate(pieces, axis=-1)

    def conv_bn_relu(p2d, w_ref, b_ref):
        # Single MXU matmul per layer (BN scale already folded into w); bias + ReLU on VPU.
        z = jnp.dot(p2d, w_ref[...], preferred_element_type=f32)
        return jnp.maximum(z + b_ref[...], 0.0)

    def maxpool2x2(a2d, sel_ref, n, h, w, c):
        # a2d: (n*h*w, c) conv output, rows ordered (n, h, w).
        h2, w2 = h // 2, w // 2
        a = a2d.reshape(n * h2, 2, w, c)               # tile-aligned split of rows: (n*h2, h-parity, w, c)
        hp = jnp.maximum(a[:, 0], a[:, 1])             # pool along H -> (n*h2, w, c)
        hp = hp.reshape(n * h2 * w, c)                 # flat rows ordered (n, h2, w)
        pe = jnp.dot(sel_ref[0], hp, preferred_element_type=f32)   # even W columns
        po = jnp.dot(sel_ref[1], hp, preferred_element_type=f32)   # odd  W columns
        return jnp.maximum(pe, po).reshape(n, h2, w2, c)           # pool along W

    # Zero the padded-activation scratch once (the borders provide the conv zero padding).
    a1p_ref[...] = jnp.zeros(a1p_ref.shape, f32)
    a2p_ref[...] = jnp.zeros(a2p_ref.shape, f32)

    # ---- layer 1: conv3x3 (+folded BN) + ReLU + maxpool2x2;  M = N*16*16 = 512 ----
    p1 = taps(x_ref, H1, W1).reshape(N * H1 * W1, 9 * x_ref.shape[3])
    a1 = conv_bn_relu(p1, w1_ref, b1_ref)                          # (512, 16)
    a1p_ref[:, 1:H2 + 1, 1:W2 + 1, :] = maxpool2x2(a1, p1s_ref, N, H1, W1, C1)

    # ---- layer 2: conv3x3 (+folded BN) + ReLU + maxpool2x2;  M = N*8*8 = 128 ----
    p2 = taps(a1p_ref, H2, W2).reshape(N * H2 * W2, 9 * C1)
    a2 = conv_bn_relu(p2, w2_ref, b2_ref)                          # (128, 32)
    a2p_ref[:, 1:H3 + 1, 1:W3 + 1, :] = maxpool2x2(a2, p2s_ref, N, H2, W2, C2)

    # ---- layer 3: conv3x3 (+folded BN) + ReLU, overscanned to W3o columns;  M = 64 ----
    p3 = taps(a2p_ref, H3, W3o).reshape(N * H3 * W3o, 9 * C2)
    a3 = conv_bn_relu(p3, w3_ref, b3_ref)                          # (64, 64)

    # ---- global average pool (constant matrix also drops the overscan junk rows) + MLP ----
    feat = jnp.dot(avg_ref[...], a3, preferred_element_type=f32)   # (N, 64)
    h = jnp.maximum(
        jnp.dot(feat, wf1_ref[...], preferred_element_type=f32) + bf1_ref[...], 0.0)
    # TODO(synk): Dropout(p=0.3) is identity in eval mode; train-mode random masking not implemented.
    o_ref[...] = jnp.dot(h, wf2_ref[...], preferred_element_type=f32) + bf2_ref[...]


# ---------------------------------------------------------------------------
# Constant folding / kernel-side helpers built in the wrapper
# ---------------------------------------------------------------------------
def _fold_conv_bn(w, b, gamma, beta, mean, var, eps=1e-5):
    # PyTorch conv weight (Cout, Cin, 3, 3) + BatchNorm (eval) -> (9*Cin_pad, Cout) matmul
    # weight with the BN scale folded in, plus a (1, Cout) bias.  Cin is zero-padded to a
    # multiple of 8 so the patch lane layout is 8-aligned.
    cout, cin = w.shape[0], w.shape[1]
    cin_pad = ((cin + 7) // 8) * 8
    wt = jnp.transpose(w, (2, 3, 1, 0))                      # (3, 3, Cin, Cout) = (dy, dx, c, o)
    wt = jnp.pad(wt, ((0, 0), (0, 0), (0, cin_pad - cin), (0, 0)))
    scale = gamma / jnp.sqrt(var + eps)
    wmat = wt.reshape(9 * cin_pad, cout) * scale[None, :]    # fold BN scale into the weights
    bias = (b - mean) * scale + beta
    return wmat, bias.reshape(1, cout)


def _wpool_selectors(n, h2, w):
    # Flat even/odd W-column selectors for the W half of the 2x2 maxpool.
    # Shape (2, n*h2*(w//2), n*h2*w): one plain MXU matmul per parity inside the kernel.
    w2 = w // 2
    nb = n * h2
    se = np.zeros((nb * w2, nb * w), np.float32)
    so = np.zeros_like(se)
    for b in range(nb):
        for o in range(w2):
            se[b * w2 + o, b * w + 2 * o] = 1.0
            so[b * w2 + o, b * w + 2 * o + 1] = 1.0
    return jnp.asarray(np.stack([se, so]))


def _avg_matrix(n, h3, w3, w3o):
    # (N, N*h3*w3o) matrix: averages the h3*w3 valid conv3 outputs per image and zeroes
    # the overscanned junk columns (w >= w3).
    m = np.zeros((n, n * h3 * w3o), np.float32)
    for i in range(n):
        for hh in range(h3):
            for ww in range(w3):
                m[i, i * h3 * w3o + hh * w3o + ww] = 1.0 / (h3 * w3)
    return jnp.asarray(m)


# ---------------------------------------------------------------------------
# Forward pass (single fused pallas_call)
# ---------------------------------------------------------------------------
def cnn_forward(x_nchw, params, num_classes=30):
    x = jnp.transpose(x_nchw, (0, 2, 3, 1)).astype(jnp.float32)       # NCHW -> NHWC
    N, H, W, Cin = x.shape
    cin_pad = ((Cin + 7) // 8) * 8
    x_pad = jnp.pad(x, ((0, 0), (1, 1), (1, 1), (0, cin_pad - Cin)))  # spatial pad + 8-lane channels

    w1, b1 = _fold_conv_bn(*params["conv1"], *params["bn1"])
    w2, b2 = _fold_conv_bn(*params["conv2"], *params["bn2"])
    w3, b3 = _fold_conv_bn(*params["conv3"], *params["bn3"])
    c1, c2 = w1.shape[1], w2.shape[1]

    H2, W2 = H // 2, W // 2
    H3, W3 = H2 // 2, W2 // 2
    W3o = ((W3 + 7) // 8) * 8          # overscan layer-3 output columns to a sublane multiple

    p1s = _wpool_selectors(N, H // 2, W)     # (2, 128, 256)
    p2s = _wpool_selectors(N, H2 // 2, W2)   # (2, 32, 64)
    avg = _avg_matrix(N, H3, W3, W3o)        # (N, N*H3*W3o)

    wf1, bf1 = params["fc1"]
    wf2, bf2 = params["fc2"]
    ncp = ((num_classes + 127) // 128) * 128                 # lane-dense (padded) logits
    wf2p = jnp.pad(wf2, ((0, 0), (0, ncp - num_classes)))
    bf2p = jnp.pad(bf2, ((0, ncp - num_classes),)).reshape(1, ncp)
    bf1r = bf1.reshape(1, -1)

    def full_spec(arr):
        zeros = (0,) * arr.ndim

        def imap(i):
            return zeros

        return pl.BlockSpec(arr.shape, imap)

    args = (x_pad, w1, b1, w2, b2, w3, b3, p1s, p2s, avg, wf1, bf1r, wf2p, bf2p)

    out_pad = pl.pallas_call(
        _fused_cnn_kernel,
        out_shape=jax.ShapeDtypeStruct((N, ncp), jnp.float32),
        grid=(1,),                      # whole (tiny) batch in one step; everything VMEM-resident
        in_specs=[full_spec(a) for a in args],
        out_specs=pl.BlockSpec((N, ncp), lambda i: (0, 0)),
        scratch_shapes=[
            pltpu.VMEM((N, H2 + 2, W2 + 2, c1), jnp.float32),   # padded pooled layer-1 activation
            pltpu.VMEM((N, H3 + 2, W3o + 2, c2), jnp.float32),  # padded pooled layer-2 activation
        ],
        compiler_params=pltpu.CompilerParams(dimension_semantics=("arbitrary",)),
    )(*args)
    return out_pad[:, :num_classes]


# ---------------------------------------------------------------------------
# Pure-JAX reference (for correctness check)
# ---------------------------------------------------------------------------
def ref_forward(x_nchw, params, eps=1e-5):
    x = jnp.transpose(x_nchw, (0, 2, 3, 1)).astype(jnp.float32)

    def conv_bn_relu(x, conv, bn):
        w, b = conv
        gamma, beta, mean, var = bn
        w_hwio = jnp.transpose(w, (2, 3, 1, 0))
        y = lax.conv_general_dilated(x, w_hwio, (1, 1), "SAME",
                                     dimension_numbers=("NHWC", "HWIO", "NHWC"),
                                     precision=lax.Precision.HIGHEST) + b
        y = (y - mean) / jnp.sqrt(var + eps) * gamma + beta
        return jnp.maximum(y, 0.0)

    def maxpool2(x):
        N, H, W, C = x.shape
        return x.reshape(N, H // 2, 2, W // 2, 2, C).max(axis=(2, 4))

    x = maxpool2(conv_bn_relu(x, params["conv1"], params["bn1"]))
    x = maxpool2(conv_bn_relu(x, params["conv2"], params["bn2"]))
    x = conv_bn_relu(x, params["conv3"], params["bn3"])
    x = x.mean(axis=(1, 2))                                          # adaptive avg pool + flatten
    x = jnp.maximum(x @ params["fc1"][0] + params["fc1"][1], 0.0)
    return x @ params["fc2"][0] + params["fc2"][1]


# ---------------------------------------------------------------------------
# Deterministic parameter initialization
# ---------------------------------------------------------------------------
def init_params(key, num_classes=30):
    k = jax.random.split(key, 8)

    def conv_p(k, cout, cin):
        kw, kb = jax.random.split(k)
        w = jax.random.normal(kw, (cout, cin, 3, 3), jnp.float32) / np.sqrt(cin * 9)
        b = jax.random.normal(kb, (cout,), jnp.float32) * 0.1
        return w, b

    def bn_p(k, c):
        k1, k2, k3, k4 = jax.random.split(k, 4)
        gamma = jax.random.uniform(k1, (c,), jnp.float32, 0.5, 1.5)
        beta = jax.random.normal(k2, (c,), jnp.float32) * 0.1
        mean = jax.random.normal(k3, (c,), jnp.float32) * 0.1
        var = jax.random.uniform(k4, (c,), jnp.float32, 0.5, 1.5)
        return gamma, beta, mean, var

    def fc_p(k, cin, cout):
        kw, kb = jax.random.split(k)
        w = jax.random.normal(kw, (cin, cout), jnp.float32) / np.sqrt(cin)
        b = jax.random.normal(kb, (cout,), jnp.float32) * 0.1
        return w, b

    return {
        "conv1": conv_p(k[0], 16, 3),  "bn1": bn_p(k[1], 16),
        "conv2": conv_p(k[2], 32, 16), "bn2": bn_p(k[3], 32),
        "conv3": conv_p(k[4], 64, 32), "bn3": bn_p(k[5], 64),
        "fc1": fc_p(k[6], 64, 128),
        "fc2": fc_p(k[7], 128, num_classes),
    }


if __name__ == "__main__":
    key = jax.random.PRNGKey(0)
    pkey, xkey = jax.random.split(key)
    params = init_params(pkey, num_classes=30)
    x = jax.random.normal(xkey, (2, 3, 16, 16), jnp.float32)         # NCHW, like PyTorch

    out = jax.jit(cnn_forward)(x, params)
    out = jax.block_until_ready(out)
    assert out.shape == (2, 30)

    ref = ref_forward(x, params)
    np.testing.assert_allclose(np.asarray(out), np.asarray(ref), rtol=2e-2, atol=2e-2)

    print("KERNEL_OK")
</pallas_src>

<mosaic_0001>
module attributes {stable_mosaic.version = 11 : i64} {
  func.func @_fused_cnn_kernel(%arg0: i32, %arg1: memref<2x18x18x8xf32, #tpu.memory_space<vmem>>, %arg2: memref<72x16xf32, #tpu.memory_space<vmem>>, %arg3: memref<1x16xf32, #tpu.memory_space<vmem>>, %arg4: memref<144x32xf32, #tpu.memory_space<vmem>>, %arg5: memref<1x32xf32, #tpu.memory_space<vmem>>, %arg6: memref<288x64xf32, #tpu.memory_space<vmem>>, %arg7: memref<1x64xf32, #tpu.memory_space<vmem>>, %arg8: memref<2x128x256xf32, #tpu.memory_space<vmem>>, %arg9: memref<2x32x64xf32, #tpu.memory_space<vmem>>, %arg10: memref<2x64xf32, #tpu.memory_space<vmem>>, %arg11: memref<64x128xf32, #tpu.memory_space<vmem>>, %arg12: memref<1x128xf32, #tpu.memory_space<vmem>>, %arg13: memref<128x128xf32, #tpu.memory_space<vmem>>, %arg14: memref<1x128xf32, #tpu.memory_space<vmem>>, %arg15: memref<2x128xf32, #tpu.memory_space<vmem>>, %arg16: memref<2x10x10x16xf32, #tpu.memory_space<vmem>>, %arg17: memref<2x6x10x32xf32, #tpu.memory_space<vmem>>) attributes {dimension_semantics = [#tpu.dimension_semantics<arbitrary>], iteration_bounds = array<i64: 1>, scalar_prefetch = 0 : i64, scratch_operands = 2 : i64, tpu.core_type = #tpu.core_type<tc>, window_params = [{pipeline_mode = #tpu.pipeline_mode<synchronous>, transform_indices = @transform_0, window_bounds = array<i64: 2, 18, 18, 8>}, {pipeline_mode = #tpu.pipeline_mode<synchronous>, transform_indices = @transform_1, window_bounds = array<i64: 72, 16>}, {pipeline_mode = #tpu.pipeline_mode<synchronous>, transform_indices = @transform_2, window_bounds = array<i64: 1, 16>}, {pipeline_mode = #tpu.pipeline_mode<synchronous>, transform_indices = @transform_3, window_bounds = array<i64: 144, 32>}, {pipeline_mode = #tpu.pipeline_mode<synchronous>, transform_indices = @transform_4, window_bounds = array<i64: 1, 32>}, {pipeline_mode = #tpu.pipeline_mode<synchronous>, transform_indices = @transform_5, window_bounds = array<i64: 288, 64>}, {pipeline_mode = #tpu.pipeline_mode<synchronous>, transform_indices = @transform_6, window_bounds = array<i64: 1, 64>}, {pipeline_mode = #tpu.pipeline_mode<synchronous>, transform_indices = @transform_7, window_bounds = array<i64: 2, 128, 256>}, {pipeline_mode = #tpu.pipeline_mode<synchronous>, transform_indices = @transform_8, window_bounds = array<i64: 2, 32, 64>}, {pipeline_mode = #tpu.pipeline_mode<synchronous>, transform_indices = @transform_9, window_bounds = array<i64: 2, 64>}, {pipeline_mode = #tpu.pipeline_mode<synchronous>, transform_indices = @transform_10, window_bounds = array<i64: 64, 128>}, {pipeline_mode = #tpu.pipeline_mode<synchronous>, transform_indices = @transform_11, window_bounds = array<i64: 1, 128>}, {pipeline_mode = #tpu.pipeline_mode<synchronous>, transform_indices = @transform_12, window_bounds = array<i64: 128, 128>}, {pipeline_mode = #tpu.pipeline_mode<synchronous>, transform_indices = @transform_13, window_bounds = array<i64: 1, 128>}, {pipeline_mode = #tpu.pipeline_mode<synchronous>, transform_indices = @transform_14, window_bounds = array<i64: 2, 128>}]} {
    %cst = arith.constant 0.000000e+00 : f32
    %0 = vector.broadcast %cst : f32 to vector<2x10x10x16xf32>
    %c0 = arith.constant 0 : index
    %c0_0 = arith.constant 0 : index
    %c0_1 = arith.constant 0 : index
    %c0_2 = arith.constant 0 : index
    %1 = vector.load %arg16[%c0, %c0_0, %c0_1, %c0_2] : memref<2x10x10x16xf32, #tpu.memory_space<vmem>>, vector<2x10x10x16xf32>
    tpu.vector_store %arg16[%c0, %c0_0, %c0_1, %c0_2], %0 {strides = array<i32>} : memref<2x10x10x16xf32, #tpu.memory_space<vmem>>, vector<2x10x10x16xf32>,
    %cst_3 = arith.constant 0.000000e+00 : f32
    %2 = vector.broadcast %cst_3 : f32 to vector<2x6x10x32xf32>
    %c0_4 = arith.constant 0 : index
    %c0_5 = arith.constant 0 : index
    %c0_6 = arith.constant 0 : index
    %c0_7 = arith.constant 0 : index
    %3 = vector.load %arg17[%c0_4, %c0_5, %c0_6, %c0_7] : memref<2x6x10x32xf32, #tpu.memory_space<vmem>>, vector<2x6x10x32xf32>
    tpu.vector_store %arg17[%c0_4, %c0_5, %c0_6, %c0_7], %2 {strides = array<i32>} : memref<2x6x10x32xf32, #tpu.memory_space<vmem>>, vector<2x6x10x32xf32>,
    %c0_8 = arith.constant 0 : index
    %c0_9 = arith.constant 0 : index
    %c0_10 = arith.constant 0 : index
    %c0_11 = arith.constant 0 : index
    %4 = vector.load %arg1[%c0_8, %c0_9, %c0_10, %c0_11] : memref<2x18x18x8xf32, #tpu.memory_space<vmem>>, vector<2x16x16x8xf32>
    %c0_12 = arith.constant 0 : index
    %c0_13 = arith.constant 0 : index
    %c1 = arith.constant 1 : index
    %c0_14 = arith.constant 0 : index
    %5 = vector.load %arg1[%c0_12, %c0_13, %c1, %c0_14] : memref<2x18x18x8xf32, #tpu.memory_space<vmem>>, vector<2x16x16x8xf32>
    %c0_15 = arith.constant 0 : index
    %c0_16 = arith.constant 0 : index
    %c2 = arith.constant 2 : index
    %c0_17 = arith.constant 0 : index
    %6 = vector.load %arg1[%c0_15, %c0_16, %c2, %c0_17] : memref<2x18x18x8xf32, #tpu.memory_space<vmem>>, vector<2x16x16x8xf32>
    %c0_18 = arith.constant 0 : index
    %c1_19 = arith.constant 1 : index
    %c0_20 = arith.constant 0 : index
    %c0_21 = arith.constant 0 : index
    %7 = vector.load %arg1[%c0_18, %c1_19, %c0_20, %c0_21] : memref<2x18x18x8xf32, #tpu.memory_space<vmem>>, vector<2x16x16x8xf32>
    %c0_22 = arith.constant 0 : index
    %c1_23 = arith.constant 1 : index
    %c1_24 = arith.constant 1 : index
    %c0_25 = arith.constant 0 : index
    %8 = vector.load %arg1[%c0_22, %c1_23, %c1_24, %c0_25] : memref<2x18x18x8xf32, #tpu.memory_space<vmem>>, vector<2x16x16x8xf32>
    %c0_26 = arith.constant 0 : index
    %c1_27 = arith.constant 1 : index
    %c2_28 = arith.constant 2 : index
    %c0_29 = arith.constant 0 : index
    %9 = vector.load %arg1[%c0_26, %c1_27, %c2_28, %c0_29] : memref<2x18x18x8xf32, #tpu.memory_space<vmem>>, vector<2x16x16x8xf32>
    %c0_30 = arith.constant 0 : index
    %c2_31 = arith.constant 2 : index
    %c0_32 = arith.constant 0 : index
    %c0_33 = arith.constant 0 : index
    %10 = vector.load %arg1[%c0_30, %c2_31, %c0_32, %c0_33] : memref<2x18x18x8xf32, #tpu.memory_space<vmem>>, vector<2x16x16x8xf32>
    %c0_34 = arith.constant 0 : index
    %c2_35 = arith.constant 2 : index
    %c1_36 = arith.constant 1 : index
    %c0_37 = arith.constant 0 : index
    %11 = vector.load %arg1[%c0_34, %c2_35, %c1_36, %c0_37] : memref<2x18x18x8xf32, #tpu.memory_space<vmem>>, vector<2x16x16x8xf32>
    %c0_38 = arith.constant 0 : index
    %c2_39 = arith.constant 2 : index
    %c2_40 = arith.constant 2 : index
    %c0_41 = arith.constant 0 : index
    %12 = vector.load %arg1[%c0_38, %c2_39, %c2_40, %c0_41] : memref<2x18x18x8xf32, #tpu.memory_space<vmem>>, vector<2x16x16x8xf32>
    %13 = tpu.concatenate %4, %5, %6, %7, %8, %9, %10, %11, %12 in 3 : vector<2x16x16x8xf32>, vector<2x16x16x8xf32>, vector<2x16x16x8xf32>, vector<2x16x16x8xf32>, vector<2x16x16x8xf32>, vector<2x16x16x8xf32>, vector<2x16x16x8xf32>, vector<2x16x16x8xf32>, vector<2x16x16x8xf32> -> vector<2x16x16x72xf32>
    %14 = vector.shape_cast %13 : vector<2x16x16x72xf32> to vector<512x72xf32>
    %c0_42 = arith.constant 0 : index
    %c0_43 = arith.constant 0 : index
    %15 = vector.load %arg2[%c0_42, %c0_43] : memref<72x16xf32, #tpu.memory_space<vmem>>, vector<72x16xf32>
    %cst_44 = arith.constant dense<0.000000e+00> : vector<512x16xf32>
    %16 = tpu.matmul %14, %15, %cst_44 {dimension_numbers = #tpu.dot_dimension_numbers<[1], [0], [0], [1], [0, 0, 1, 1], [], []>} : vector<512x72xf32>, vector<72x16xf32>, vector<512x16xf32> -> vector<512x16xf32>
    %c0_45 = arith.constant 0 : index
    %c0_46 = arith.constant 0 : index
    %17 = vector.load %arg3[%c0_45, %c0_46] : memref<1x16xf32, #tpu.memory_space<vmem>>, vector<1x16xf32>
    %18 = vector.broadcast %17 : vector<1x16xf32> to vector<512x16xf32>
    %19 = arith.addf %16, %18 : vector<512x16xf32>
    %cst_47 = arith.constant 0.000000e+00 : f32
    %20 = vector.broadcast %cst_47 : f32 to vector<512x16xf32>
    %21 = arith.maximumf %19, %20 : vector<512x16xf32>
    %22 = vector.shape_cast %21 : vector<512x16xf32> to vector<16x2x16x16xf32>
    %23 = vector.extract_strided_slice %22 {offsets = [0, 0, 0, 0], sizes = [16, 1, 16, 16], strides = [1, 1, 1, 1]} : vector<16x2x16x16xf32> to vector<16x1x16x16xf32>
    %24 = vector.shape_cast %23 : vector<16x1x16x16xf32> to vector<16x16x16xf32>
    %25 = vector.extract_strided_slice %22 {offsets = [0, 1, 0, 0], sizes = [16, 1, 16, 16], strides = [1, 1, 1, 1]} : vector<16x2x16x16xf32> to vector<16x1x16x16xf32>
    %26 = vector.shape_cast %25 : vector<16x1x16x16xf32> to vector<16x16x16xf32>
    %27 = arith.maximumf %24, %26 : vector<16x16x16xf32>
    %28 = vector.shape_cast %27 : vector<16x16x16xf32> to vector<256x16xf32>
    %c0_48 = arith.constant 0 : index
    %c0_49 = arith.constant 0 : index
    %c0_50 = arith.constant 0 : index
    %29 = vector.load %arg8[%c0_48, %c0_49, %c0_50] : memref<2x128x256xf32, #tpu.memory_space<vmem>>, vector<1x128x256xf32>
    %30 = vector.shape_cast %29 : vector<1x128x256xf32> to vector<128x256xf32>
    %cst_51 = arith.constant dense<0.000000e+00> : vector<128x16xf32>
    %31 = tpu.matmul %30, %28, %cst_51 {dimension_numbers = #tpu.dot_dimension_numbers<[1], [0], [0], [1], [0, 0, 1, 1], [], []>} : vector<128x256xf32>, vector<256x16xf32>, vector<128x16xf32> -> vector<128x16xf32>
    %c1_52 = arith.constant 1 : index
    %c0_53 = arith.constant 0 : index
    %c0_54 = arith.constant 0 : index
    %32 = vector.load %arg8[%c1_52, %c0_53, %c0_54] : memref<2x128x256xf32, #tpu.memory_space<vmem>>, vector<1x128x256xf32>
    %33 = vector.shape_cast %32 : vector<1x128x256xf32> to vector<128x256xf32>
    %cst_55 = arith.constant dense<0.000000e+00> : vector<128x16xf32>
    %34 = tpu.matmul %33, %28, %cst_55 {dimension_numbers = #tpu.dot_dimension_numbers<[1], [0], [0], [1], [0, 0, 1, 1], [], []>} : vector<128x256xf32>, vector<256x16xf32>, vector<128x16xf32> -> vector<128x16xf32>
    %35 = arith.maximumf %31, %34 : vector<128x16xf32>
    %36 = vector.shape_cast %35 : vector<128x16xf32> to vector<2x8x8x16xf32>
    %c0_56 = arith.constant 0 : index
    %c1_57 = arith.constant 1 : index
    %c1_58 = arith.constant 1 : index
    %c0_59 = arith.constant 0 : index
    %37 = vector.load %arg16[%c0_56, %c1_57, %c1_58, %c0_59] : memref<2x10x10x16xf32, #tpu.memory_space<vmem>>, vector<2x8x8x16xf32>
    tpu.vector_store %arg16[%c0_56, %c1_57, %c1_58, %c0_59], %36 {strides = array<i32>} : memref<2x10x10x16xf32, #tpu.memory_space<vmem>>, vector<2x8x8x16xf32>,
    %c0_60 = arith.constant 0 : index
    %c0_61 = arith.constant 0 : index
    %c0_62 = arith.constant 0 : index
    %c0_63 = arith.constant 0 : index
    %38 = vector.load %arg16[%c0_60, %c0_61, %c0_62, %c0_63] : memref<2x10x10x16xf32, #tpu.memory_space<vmem>>, vector<2x8x8x16xf32>
    %c0_64 = arith.constant 0 : index
    %c0_65 = arith.constant 0 : index
    %c1_66 = arith.constant 1 : index
    %c0_67 = arith.constant 0 : index
    %39 = vector.load %arg16[%c0_64, %c0_65, %c1_66, %c0_67] : memref<2x10x10x16xf32, #tpu.memory_space<vmem>>, vector<2x8x8x16xf32>
    %c0_68 = arith.constant 0 : index
    %c0_69 = arith.constant 0 : index
    %c2_70 = arith.constant 2 : index
    %c0_71 = arith.constant 0 : index
    %40 = vector.load %arg16[%c0_68, %c0_69, %c2_70, %c0_71] : memref<2x10x10x16xf32, #tpu.memory_space<vmem>>, vector<2x8x8x16xf32>
    %c0_72 = arith.constant 0 : index
    %c1_73 = arith.constant 1 : index
    %c0_74 = arith.constant 0 : index
    %c0_75 = arith.constant 0 : index
    %41 = vector.load %arg16[%c0_72, %c1_73, %c0_74, %c0_75] : memref<2x10x10x16xf32, #tpu.memory_space<vmem>>, vector<2x8x8x16xf32>
    %c0_76 = arith.constant 0 : index
    %c1_77 = arith.constant 1 : index
    %c1_78 = arith.constant 1 : index
    %c0_79 = arith.constant 0 : index
    %42 = vector.load %arg16[%c0_76, %c1_77, %c1_78, %c0_79] : memref<2x10x10x16xf32, #tpu.memory_space<vmem>>, vector<2x8x8x16xf32>
    %c0_80 = arith.constant 0 : index
    %c1_81 = arith.constant 1 : index
    %c2_82 = arith.constant 2 : index
    %c0_83 = arith.constant 0 : index
    %43 = vector.load %arg16[%c0_80, %c1_81, %c2_82, %c0_83] : memref<2x10x10x16xf32, #tpu.memory_space<vmem>>, vector<2x8x8x16xf32>
    %c0_84 = arith.constant 0 : index
    %c2_85 = arith.constant 2 : index
    %c0_86 = arith.constant 0 : index
    %c0_87 = arith.constant 0 : index
    %44 = vector.load %arg16[%c0_84, %c2_85, %c0_86, %c0_87] : memref<2x10x10x16xf32, #tpu.memory_space<vmem>>, vector<2x8x8x16xf32>
    %c0_88 = arith.constant 0 : index
    %c2_89 = arith.constant 2 : index
    %c1_90 = arith.constant 1 : index
    %c0_91 = arith.constant 0 : index
    %45 = vector.load %arg16[%c0_88, %c2_89, %c1_90, %c0_91] : memref<2x10x10x16xf32, #tpu.memory_space<vmem>>, vector<2x8x8x16xf32>
    %c0_92 = arith.constant 0 : index
    %c2_93 = arith.constant 2 : index
    %c2_94 = arith.constant 2 : index
    %c0_95 = arith.constant 0 : index
    %46 = vector.load %arg16[%c0_92, %c2_93, %c2_94, %c0_95] : memref<2x10x10x16xf32, #tpu.memory_space<vmem>>, vector<2x8x8x16xf32>
    %47 = tpu.concatenate %38, %39, %40, %41, %42, %43, %44, %45, %46 in 3 : vector<2x8x8x16xf32>, vector<2x8x8x16xf32>, vector<2x8x8x16xf32>, vector<2x8x8x16xf32>, vector<2x8x8x16xf32>, vector<2x8x8x16xf32>, vector<2x8x8x16xf32>, vector<2x8x8x16xf32>, vector<2x8x8x16xf32> -> vector<2x8x8x144xf32>
    %48 = vector.shape_cast %47 : vector<2x8x8x144xf32> to vector<128x144xf32>
    %c0_96 = arith.constant 0 : index
    %c0_97 = arith.constant 0 : index
    %49 = vector.load %arg4[%c0_96, %c0_97] : memref<144x32xf32, #tpu.memory_space<vmem>>, vector<144x32xf32>
    %cst_98 = arith.constant dense<0.000000e+00> : vector<128x32xf32>
    %50 = tpu.matmul %48, %49, %cst_98 {dimension_numbers = #tpu.dot_dimension_numbers<[1], [0], [0], [1], [0, 0, 1, 1], [], []>} : vector<128x144xf32>, vector<144x32xf32>, vector<128x32xf32> -> vector<128x32xf32>
    %c0_99 = arith.constant 0 : index
    %c0_100 = arith.constant 0 : index
    %51 = vector.load %arg5[%c0_99, %c0_100] : memref<1x32xf32, #tpu.memory_space<vmem>>, vector<1x32xf32>
    %52 = vector.broadcast %51 : vector<1x32xf32> to vector<128x32xf32>
    %53 = arith.addf %50, %52 : vector<128x32xf32>
    %cst_101 = arith.constant 0.000000e+00 : f32
    %54 = vector.broadcast %cst_101 : f32 to vector<128x32xf32>
    %55 = arith.maximumf %53, %54 : vector<128x32xf32>
    %56 = vector.shape_cast %55 : vector<128x32xf32> to vector<8x2x8x32xf32>
    %57 = vector.extract_strided_slice %56 {offsets = [0, 0, 0, 0], sizes = [8, 1, 8, 32], strides = [1, 1, 1, 1]} : vector<8x2x8x32xf32> to vector<8x1x8x32xf32>
    %58 = vector.shape_cast %57 : vector<8x1x8x32xf32> to vector<8x8x32xf32>
    %59 = vector.extract_strided_slice %56 {offsets = [0, 1, 0, 0], sizes = [8, 1, 8, 32], strides = [1, 1, 1, 1]} : vector<8x2x8x32xf32> to vector<8x1x8x32xf32>
    %60 = vector.shape_cast %59 : vector<8x1x8x32xf32> to vector<8x8x32xf32>
    %61 = arith.maximumf %58, %60 : vector<8x8x32xf32>
    %62 = vector.shape_cast %61 : vector<8x8x32xf32> to vector<64x32xf32>
    %c0_102 = arith.constant 0 : index
    %c0_103 = arith.constant 0 : index
    %c0_104 = arith.constant 0 : index
    %63 = vector.load %arg9[%c0_102, %c0_103, %c0_104] : memref<2x32x64xf32, #tpu.memory_space<vmem>>, vector<1x32x64xf32>
    %64 = vector.shape_cast %63 : vector<1x32x64xf32> to vector<32x64xf32>
    %cst_105 = arith.constant dense<0.000000e+00> : vector<32x32xf32>
    %65 = tpu.matmul %64, %62, %cst_105 {dimension_numbers = #tpu.dot_dimension_numbers<[1], [0], [0], [1], [0, 0, 1, 1], [], []>} : vector<32x64xf32>, vector<64x32xf32>, vector<32x32xf32> -> vector<32x32xf32>
    %c1_106 = arith.constant 1 : index
    %c0_107 = arith.constant 0 : index
    %c0_108 = arith.constant 0 : index
    %66 = vector.load %arg9[%c1_106, %c0_107, %c0_108] : memref<2x32x64xf32, #tpu.memory_space<vmem>>, vector<1x32x64xf32>
    %67 = vector.shape_cast %66 : vector<1x32x64xf32> to vector<32x64xf32>
    %cst_109 = arith.constant dense<0.000000e+00> : vector<32x32xf32>
    %68 = tpu.matmul %67, %62, %cst_109 {dimension_numbers = #tpu.dot_dimension_numbers<[1], [0], [0], [1], [0, 0, 1, 1], [], []>} : vector<32x64xf32>, vector<64x32xf32>, vector<32x32xf32> -> vector<32x32xf32>
    %69 = arith.maximumf %65, %68 : vector<32x32xf32>
    %70 = vector.shape_cast %69 : vector<32x32xf32> to vector<2x4x4x32xf32>
    %c0_110 = arith.constant 0 : index
    %c1_111 = arith.constant 1 : index
    %c1_112 = arith.constant 1 : index
    %c0_113 = arith.constant 0 : index
    %71 = vector.load %arg17[%c0_110, %c1_111, %c1_112, %c0_113] : memref<2x6x10x32xf32, #tpu.memory_space<vmem>>, vector<2x4x4x32xf32>
    tpu.vector_store %arg17[%c0_110, %c1_111, %c1_112, %c0_113], %70 {strides = array<i32>} : memref<2x6x10x32xf32, #tpu.memory_space<vmem>>, vector<2x4x4x32xf32>,
    %c0_114 = arith.constant 0 : index
    %c0_115 = arith.constant 0 : index
    %c0_116 = arith.constant 0 : index
    %c0_117 = arith.constant 0 : index
    %72 = vector.load %arg17[%c0_114, %c0_115, %c0_116, %c0_117] : memref<2x6x10x32xf32, #tpu.memory_space<vmem>>, vector<2x4x8x32xf32>
    %c0_118 = arith.constant 0 : index
    %c0_119 = arith.constant 0 : index
    %c1_120 = arith.constant 1 : index
    %c0_121 = arith.constant 0 : index
    %73 = vector.load %arg17[%c0_118, %c0_119, %c1_120, %c0_121] : memref<2x6x10x32xf32, #tpu.memory_space<vmem>>, vector<2x4x8x32xf32>
    %c0_122 = arith.constant 0 : index
    %c0_123 = arith.constant 0 : index
    %c2_124 = arith.constant 2 : index
    %c0_125 = arith.constant 0 : index
    %74 = vector.load %arg17[%c0_122, %c0_123, %c2_124, %c0_125] : memref<2x6x10x32xf32, #tpu.memory_space<vmem>>, vector<2x4x8x32xf32>
    %c0_126 = arith.constant 0 : index
    %c1_127 = arith.constant 1 : index
    %c0_128 = arith.constant 0 : index
    %c0_129 = arith.constant 0 : index
    %75 = vector.load %arg17[%c0_126, %c1_127, %c0_128, %c0_129] : memref<2x6x10x32xf32, #tpu.memory_space<vmem>>, vector<2x4x8x32xf32>
    %c0_130 = arith.constant 0 : index
    %c1_131 = arith.constant 1 : index
    %c1_132 = arith.constant 1 : index
    %c0_133 = arith.constant 0 : index
    %76 = vector.load %arg17[%c0_130, %c1_131, %c1_132, %c0_133] : memref<2x6x10x32xf32, #tpu.memory_space<vmem>>, vector<2x4x8x32xf32>
    %c0_134 = arith.constant 0 : index
    %c1_135 = arith.constant 1 : index
    %c2_136 = arith.constant 2 : index
    %c0_137 = arith.constant 0 : index
    %77 = vector.load %arg17[%c0_134, %c1_135, %c2_136, %c0_137] : memref<2x6x10x32xf32, #tpu.memory_space<vmem>>, vector<2x4x8x32xf32>
    %c0_138 = arith.constant 0 : index
    %c2_139 = arith.constant 2 : index
    %c0_140 = arith.constant 0 : index
    %c0_141 = arith.constant 0 : index
    %78 = vector.load %arg17[%c0_138, %c2_139, %c0_140, %c0_141] : memref<2x6x10x32xf32, #tpu.memory_space<vmem>>, vector<2x4x8x32xf32>
    %c0_142 = arith.constant 0 : index
    %c2_143 = arith.constant 2 : index
    %c1_144 = arith.constant 1 : index
    %c0_145 = arith.constant 0 : index
    %79 = vector.load %arg17[%c0_142, %c2_143, %c1_144, %c0_145] : memref<2x6x10x32xf32, #tpu.memory_space<vmem>>, vector<2x4x8x32xf32>
    %c0_146 = arith.constant 0 : index
    %c2_147 = arith.constant 2 : index
    %c2_148 = arith.constant 2 : index
    %c0_149 = arith.constant 0 : index
    %80 = vector.load %arg17[%c0_146, %c2_147, %c2_148, %c0_149] : memref<2x6x10x32xf32, #tpu.memory_space<vmem>>, vector<2x4x8x32xf32>
    %81 = tpu.concatenate %72, %73, %74, %75, %76, %77, %78, %79, %80 in 3 : vector<2x4x8x32xf32>, vector<2x4x8x32xf32>, vector<2x4x8x32xf32>, vector<2x4x8x32xf32>, vector<2x4x8x32xf32>, vector<2x4x8x32xf32>, vector<2x4x8x32xf32>, vector<2x4x8x32xf32>, vector<2x4x8x32xf32> -> vector<2x4x8x288xf32>
    %82 = vector.shape_cast %81 : vector<2x4x8x288xf32> to vector<64x288xf32>
    %c0_150 = arith.constant 0 : index
    %c0_151 = arith.constant 0 : index
    %83 = vector.load %arg6[%c0_150, %c0_151] : memref<288x64xf32, #tpu.memory_space<vmem>>, vector<288x64xf32>
    %cst_152 = arith.constant dense<0.000000e+00> : vector<64x64xf32>
    %84 = tpu.matmul %82, %83, %cst_152 {dimension_numbers = #tpu.dot_dimension_numbers<[1], [0], [0], [1], [0, 0, 1, 1], [], []>} : vector<64x288xf32>, vector<288x64xf32>, vector<64x64xf32> -> vector<64x64xf32>
    %c0_153 = arith.constant 0 : index
    %c0_154 = arith.constant 0 : index
    %85 = vector.load %arg7[%c0_153, %c0_154] : memref<1x64xf32, #tpu.memory_space<vmem>>, vector<1x64xf32>
    %86 = vector.broadcast %85 : vector<1x64xf32> to vector<64x64xf32>
    %87 = arith.addf %84, %86 : vector<64x64xf32>
    %cst_155 = arith.constant 0.000000e+00 : f32
    %88 = vector.broadcast %cst_155 : f32 to vector<64x64xf32>
    %89 = arith.maximumf %87, %88 : vector<64x64xf32>
    %c0_156 = arith.constant 0 : index
    %c0_157 = arith.constant 0 : index
    %90 = vector.load %arg10[%c0_156, %c0_157] : memref<2x64xf32, #tpu.memory_space<vmem>>, vector<2x64xf32>
    %cst_158 = arith.constant dense<0.000000e+00> : vector<2x64xf32>
    %91 = tpu.matmul %90, %89, %cst_158 {dimension_numbers = #tpu.dot_dimension_numbers<[1], [0], [0], [1], [0, 0, 1, 1], [], []>} : vector<2x64xf32>, vector<64x64xf32>, vector<2x64xf32> -> vector<2x64xf32>
    %c0_159 = arith.constant 0 : index
    %c0_160 = arith.constant 0 : index
    %92 = vector.load %arg11[%c0_159, %c0_160] : memref<64x128xf32, #tpu.memory_space<vmem>>, vector<64x128xf32>
    %cst_161 = arith.constant dense<0.000000e+00> : vector<2x128xf32>
    %93 = tpu.matmul %91, %92, %cst_161 {dimension_numbers = #tpu.dot_dimension_numbers<[1], [0], [0], [1], [0, 0, 1, 1], [], []>} : vector<2x64xf32>, vector<64x128xf32>, vector<2x128xf32> -> vector<2x128xf32>
    %c0_162 = arith.constant 0 : index
    %c0_163 = arith.constant 0 : index
    %94 = vector.load %arg12[%c0_162, %c0_163] : memref<1x128xf32, #tpu.memory_space<vmem>>, vector<1x128xf32>
    %95 = vector.broadcast %94 : vector<1x128xf32> to vector<2x128xf32>
    %96 = arith.addf %93, %95 : vector<2x128xf32>
    %cst_164 = arith.constant 0.000000e+00 : f32
    %97 = vector.broadcast %cst_164 : f32 to vector<2x128xf32>
    %98 = arith.maximumf %96, %97 : vector<2x128xf32>
    %c0_165 = arith.constant 0 : index
    %c0_166 = arith.constant 0 : index
    %99 = vector.load %arg13[%c0_165, %c0_166] : memref<128x128xf32, #tpu.memory_space<vmem>>, vector<128x128xf32>
    %cst_167 = arith.constant dense<0.000000e+00> : vector<2x128xf32>
    %100 = tpu.matmul %98, %99, %cst_167 {dimension_numbers = #tpu.dot_dimension_numbers<[1], [0], [0], [1], [0, 0, 1, 1], [], []>} : vector<2x128xf32>, vector<128x128xf32>, vector<2x128xf32> -> vector<2x128xf32>
    %c0_168 = arith.constant 0 : index
    %c0_169 = arith.constant 0 : index
    %101 = vector.load %arg14[%c0_168, %c0_169] : memref<1x128xf32, #tpu.memory_space<vmem>>, vector<1x128xf32>
    %102 = vector.broadcast %101 : vector<1x128xf32> to vector<2x128xf32>
    %103 = arith.addf %100, %102 : vector<2x128xf32>
    %c0_170 = arith.constant 0 : index
    %c0_171 = arith.constant 0 : index
    %104 = vector.load %arg15[%c0_170, %c0_171] : memref<2x128xf32, #tpu.memory_space<vmem>>, vector<2x128xf32>
    tpu.vector_store %arg15[%c0_170, %c0_171], %103 {strides = array<i32>} : memref<2x128xf32, #tpu.memory_space<vmem>>, vector<2x128xf32>,
    return
  }
  func.func @transform_0(%arg0: i32) -> (i32, i32, i32, i32) {
    %c0_i32 = arith.constant 0 : i32
    %c0_i32_0 = arith.constant 0 : i32
    %c0_i32_1 = arith.constant 0 : i32
    %c0_i32_2 = arith.constant 0 : i32
    %c0_i32_3 = arith.constant 0 : i32
    return %c0_i32, %c0_i32_0, %c0_i32_1, %c0_i32_2 : i32, i32, i32, i32
  }
  func.func @transform_1(%arg0: i32) -> (i32, i32) {
    %c0_i32 = arith.constant 0 : i32
    %c0_i32_0 = arith.constant 0 : i32
    %c0_i32_1 = arith.constant 0 : i32
    return %c0_i32, %c0_i32_0 : i32, i32
  }
  func.func @transform_2(%arg0: i32) -> (i32, i32) {
    %c0_i32 = arith.constant 0 : i32
    %c0_i32_0 = arith.constant 0 : i32
    %c0_i32_1 = arith.constant 0 : i32
    return %c0_i32, %c0_i32_0 : i32, i32
  }
  func.func @transform_3(%arg0: i32) -> (i32, i32) {
    %c0_i32 = arith.constant 0 : i32
    %c0_i32_0 = arith.constant 0 : i32
    %c0_i32_1 = arith.constant 0 : i32
    return %c0_i32, %c0_i32_0 : i32, i32
  }
  func.func @transform_4(%arg0: i32) -> (i32, i32) {
    %c0_i32 = arith.constant 0 : i32
    %c0_i32_0 = arith.constant 0 : i32
    %c0_i32_1 = arith.constant 0 : i32
    return %c0_i32, %c0_i32_0 : i32, i32
  }
  func.func @transform_5(%arg0: i32) -> (i32, i32) {
    %c0_i32 = arith.constant 0 : i32
    %c0_i32_0 = arith.constant 0 : i32
    %c0_i32_1 = arith.constant 0 : i32
    return %c0_i32, %c0_i32_0 : i32, i32
  }
  func.func @transform_6(%arg0: i32) -> (i32, i32) {
    %c0_i32 = arith.constant 0 : i32
    %c0_i32_0 = arith.constant 0 : i32
    %c0_i32_1 = arith.constant 0 : i32
    return %c0_i32, %c0_i32_0 : i32, i32
  }
  func.func @transform_7(%arg0: i32) -> (i32, i32, i32) {
    %c0_i32 = arith.constant 0 : i32
    %c0_i32_0 = arith.constant 0 : i32
    %c0_i32_1 = arith.constant 0 : i32
    %c0_i32_2 = arith.constant 0 : i32
    return %c0_i32, %c0_i32_0, %c0_i32_1 : i32, i32, i32
  }
  func.func @transform_8(%arg0: i32) -> (i32, i32, i32) {
    %c0_i32 = arith.constant 0 : i32
    %c0_i32_0 = arith.constant 0 : i32
    %c0_i32_1 = arith.constant 0 : i32
    %c0_i32_2 = arith.constant 0 : i32
    return %c0_i32, %c0_i32_0, %c0_i32_1 : i32, i32, i32
  }
  func.func @transform_9(%arg0: i32) -> (i32, i32) {
    %c0_i32 = arith.constant 0 : i32
    %c0_i32_0 = arith.constant 0 : i32
    %c0_i32_1 = arith.constant 0 : i32
    return %c0_i32, %c0_i32_0 : i32, i32
  }
  func.func @transform_10(%arg0: i32) -> (i32, i32) {
    %c0_i32 = arith.constant 0 : i32
    %c0_i32_0 = arith.constant 0 : i32
    %c0_i32_1 = arith.constant 0 : i32
    return %c0_i32, %c0_i32_0 : i32, i32
  }
  func.func @transform_11(%arg0: i32) -> (i32, i32) {
    %c0_i32 = arith.constant 0 : i32
    %c0_i32_0 = arith.constant 0 : i32
    %c0_i32_1 = arith.constant 0 : i32
    return %c0_i32, %c0_i32_0 : i32, i32
  }
  func.func @transform_12(%arg0: i32) -> (i32, i32) {
    %c0_i32 = arith.constant 0 : i32
    %c0_i32_0 = arith.constant 0 : i32
    %c0_i32_1 = arith.constant 0 : i32
    return %c0_i32, %c0_i32_0 : i32, i32
  }
  func.func @transform_13(%arg0: i32) -> (i32, i32) {
    %c0_i32 = arith.constant 0 : i32
    %c0_i32_0 = arith.constant 0 : i32
    %c0_i32_1 = arith.constant 0 : i32
    return %c0_i32, %c0_i32_0 : i32, i32
  }
  func.func @transform_14(%arg0: i32) -> (i32, i32) {
    %c0_i32 = arith.constant 0 : i32
    %c0_i32_0 = arith.constant 0 : i32
    %c0_i32_1 = arith.constant 0 : i32
    return %c0_i32, %c0_i32_0 : i32, i32
  }
}

</mosaic_0001>

<llo_original>
// kernel: cnn_forward.1
$region0: #{cnn_forward.1}
  #allocation0 [shape = 'u32[]', space=smem, size = 0x4, offset = 0x4, fixed_abs, tag = 'smem constant byte address 0x4 - core index']
  #allocation1 [shape = 'u32[144,128]{1,0:T(1,128)}', space=vmem, size = 0x12000, scoped, tag = 'internal scratch']
  #allocation2 [shape = 'f32[2,10,10,16]{3,2,1,0:T(8,128)}', space=vmem, size = 0x28000, scoped, tag = 'scratch operand']
  #allocation3 [shape = 'f32[2,6,10,32]{3,2,1,0:T(8,128)}', space=vmem, size = 0x18000, scoped, tag = 'scratch operand']
  %s0 = inlined_call_operand.vmem [shape: f32[2,18,18,8], index: 0, kind: input, shape index: {}]
  %s1 = inlined_call_operand.vmem [shape: f32[72,16], index: 1, kind: input, shape index: {}]
  %s2 = inlined_call_operand.vmem [shape: f32[1,16], index: 2, kind: input, shape index: {}]
  %s3 = inlined_call_operand.vmem [shape: f32[144,32], index: 3, kind: input, shape index: {}]
  %s4 = inlined_call_operand.vmem [shape: f32[1,32], index: 4, kind: input, shape index: {}]
  %s5 = inlined_call_operand.vmem [shape: f32[288,64], index: 5, kind: input, shape index: {}]
  %s6 = inlined_call_operand.vmem [shape: f32[1,64], index: 6, kind: input, shape index: {}]
  %s7 = inlined_call_operand.vmem [shape: f32[2,128,256], index: 7, kind: input, shape index: {}]
  %s8 = inlined_call_operand.vmem [shape: f32[2,32,64], index: 8, kind: input, shape index: {}]
  %s9 = inlined_call_operand.vmem [shape: f32[2,64], index: 9, kind: input, shape index: {}]
  %s10 = inlined_call_operand.vmem [shape: f32[64,128], index: 10, kind: input, shape index: {}]
  %s11 = inlined_call_operand.vmem [shape: f32[1,128], index: 11, kind: input, shape index: {}]
  %s12 = inlined_call_operand.vmem [shape: f32[128,128], index: 12, kind: input, shape index: {}]
  %s13 = inlined_call_operand.vmem [shape: f32[1,128], index: 13, kind: input, shape index: {}]
  %s14 = inlined_call_operand.hbm [shape: f32[2,128], index: 14, kind: output, shape index: {}]
  %s15 = sld [smem:[#allocation0]]
  $region66: #{cnn_forward.1} parent=0
    _
  %s17 = ssub.s32 1, %s15
  %s18 = scalar_select 0, %s17, %s15
  $region1: #{cnn_forward.1} parent=0
    #allocation4 [shape = 'u8[1024]{0}', space=vmem, size = 0x400, scoped, tag = 'output window, operand 0, single buffered']
    #allocation5 [shape = 's32[1]{0}', space=sflag, size = 0x4, scoped, tag = 'scoped memory for cnn_forward.1']
    %19 = vsyncpa [#allocation5], 0
    // Predicated region
    $region2: #{cnn_forward.1} parent=1 // pred_check
      _
    $region3: #{cnn_forward.1} parent=1 // pred_check_branch
      %21 = sbr.rel (0) target = $region5
    $region4: #{cnn_forward.1} parent=1 // pred_region
      _
    $region5: #{cnn_forward.1} parent=1 // pred_fallthru
      _
    // Predicated region
    $region6: #{cnn_forward.1} parent=1 // pred_check
      _
    $region7: #{cnn_forward.1} parent=1 // pred_check_branch
      %23 = sbr.rel (0) target = $region9
    $region8: #{cnn_forward.1} parent=1 // pred_region
      _
    $region9: #{cnn_forward.1} parent=1 // pred_fallthru
      _
    // Predicated region
    $region10: #{cnn_forward.1} parent=1 // pred_check
      _
    $region11: #{cnn_forward.1} parent=1 // pred_check_branch
      %25 = sbr.rel (0) target = $region13
    $region12: #{cnn_forward.1} parent=1 // pred_region
      _
    $region13: #{cnn_forward.1} parent=1 // pred_fallthru
      _
    // Predicated region
    $region14: #{cnn_forward.1} parent=1 // pred_check
      _
    $region15: #{cnn_forward.1} parent=1 // pred_check_branch
      %27 = sbr.rel (0) target = $region17
    $region16: #{cnn_forward.1} parent=1 // pred_region
      _
    $region17: #{cnn_forward.1} parent=1 // pred_fallthru
      _
    // Predicated region
    $region18: #{cnn_forward.1} parent=1 // pred_check
      _
    $region19: #{cnn_forward.1} parent=1 // pred_check_branch
      %29 = sbr.rel (0) target = $region21
    $region20: #{cnn_forward.1} parent=1 // pred_region
      _
    $region21: #{cnn_forward.1} parent=1 // pred_fallthru
      _
    // Predicated region
    $region22: #{cnn_forward.1} parent=1 // pred_check
      _
    $region23: #{cnn_forward.1} parent=1 // pred_check_branch
      %31 = sbr.rel (0) target = $region25
    $region24: #{cnn_forward.1} parent=1 // pred_region
      _
    $region25: #{cnn_forward.1} parent=1 // pred_fallthru
      _
    // Predicated region
    $region26: #{cnn_forward.1} parent=1 // pred_check
      _
    $region27: #{cnn_forward.1} parent=1 // pred_check_branch
      %33 = sbr.rel (0) target = $region29
    $region28: #{cnn_forward.1} parent=1 // pred_region
      _
    $region29: #{cnn_forward.1} parent=1 // pred_fallthru
      _
    // Predicated region
    $region30: #{cnn_forward.1} parent=1 // pred_check
      _
    $region31: #{cnn_forward.1} parent=1 // pred_check_branch
      %35 = sbr.rel (0) target = $region33
    $region32: #{cnn_forward.1} parent=1 // pred_region
      _
    $region33: #{cnn_forward.1} parent=1 // pred_fallthru
      _
    // Predicated region
    $region34: #{cnn_forward.1} parent=1 // pred_check
      _
    $region35: #{cnn_forward.1} parent=1 // pred_check_branch
      %37 = sbr.rel (0) target = $region37
    $region36: #{cnn_forward.1} parent=1 // pred_region
      _
    $region37: #{cnn_forward.1} parent=1 // pred_fallthru
      _
    // Predicated region
    $region38: #{cnn_forward.1} parent=1 // pred_check
      _
    $region39: #{cnn_forward.1} parent=1 // pred_check_branch
      %39 = sbr.rel (0) target = $region41
    $region40: #{cnn_forward.1} parent=1 // pred_region
      _
    $region41: #{cnn_forward.1} parent=1 // pred_fallthru
      _
    // Predicated region
    $region42: #{cnn_forward.1} parent=1 // pred_check
      _
    $region43: #{cnn_forward.1} parent=1 // pred_check_branch
      %41 = sbr.rel (0) target = $region45
    $region44: #{cnn_forward.1} parent=1 // pred_region
      _
    $region45: #{cnn_forward.1} parent=1 // pred_fallthru
      _
    // Predicated region
    $region46: #{cnn_forward.1} parent=1 // pred_check
      _
    $region47: #{cnn_forward.1} parent=1 // pred_check_branch
      %43 = sbr.rel (0) target = $region49
    $region48: #{cnn_forward.1} parent=1 // pred_region
      _
    $region49: #{cnn_forward.1} parent=1 // pred_fallthru
      _
    // Predicated region
    $region50: #{cnn_forward.1} parent=1 // pred_check
      _
    $region51: #{cnn_forward.1} parent=1 // pred_check_branch
      %45 = sbr.rel (0) target = $region53
    $region52: #{cnn_forward.1} parent=1 // pred_region
      _
    $region53: #{cnn_forward.1} parent=1 // pred_fallthru
      _
    // Predicated region
    $region54: #{cnn_forward.1} parent=1 // pred_check
      _
    $region55: #{cnn_forward.1} parent=1 // pred_check_branch
      %47 = sbr.rel (0) target = $region57
    $region56: #{cnn_forward.1} parent=1 // pred_region
      _
    $region57: #{cnn_forward.1} parent=1 // pred_fallthru
      _
    %vm48 = vcmask 130048
    %49 = vst.msk [vmem:[#allocation2] sm:$0xff] %vm48, 0.0
    %vm50 = vcmask 123904
    %51 = vst.msk [vmem:[#allocation2 + $0x8] sm:$0x3] %vm50, 0.0
    %52 = vst.msk [vmem:[#allocation2 + $0x10] sm:$0xff] %vm48, 0.0
    %53 = vst.msk [vmem:[#allocation2 + $0x18] sm:$0x3] %vm50, 0.0
    %54 = vst.msk [vmem:[#allocation2 + $0x20] sm:$0xff] %vm48, 0.0
    %55 = vst.msk [vmem:[#allocation2 + $0x28] sm:$0x3] %vm50, 0.0
    %56 = vst.msk [vmem:[#allocation2 + $0x30] sm:$0xff] %vm48, 0.0
    %57 = vst.msk [vmem:[#allocation2 + $0x38] sm:$0x3] %vm50, 0.0
    %58 = vst.msk [vmem:[#allocation2 + $0x40] sm:$0xff] %vm48, 0.0
    %59 = vst.msk [vmem:[#allocation2 + $0x48] sm:$0x3] %vm50, 0.0
    %60 = vst.msk [vmem:[#allocation2 + $0x50] sm:$0xff] %vm48, 0.0
    %61 = vst.msk [vmem:[#allocation2 + $0x58] sm:$0x3] %vm50, 0.0
    %62 = vst.msk [vmem:[#allocation2 + $0x60] sm:$0xff] %vm48, 0.0
    %63 = vst.msk [vmem:[#allocation2 + $0x68] sm:$0x3] %vm50, 0.0
    %64 = vst.msk [vmem:[#allocation2 + $0x70] sm:$0xff] %vm48, 0.0
    %65 = vst.msk [vmem:[#allocation2 + $0x78] sm:$0x3] %vm50, 0.0
    %66 = vst.msk [vmem:[#allocation2 + $0x80] sm:$0xff] %vm48, 0.0
    %67 = vst.msk [vmem:[#allocation2 + $0x88] sm:$0x3] %vm50, 0.0
    %68 = vst.msk [vmem:[#allocation2 + $0x90] sm:$0xff] %vm48, 0.0
    %69 = vst.msk [vmem:[#allocation2 + $0x98] sm:$0x3] %vm50, 0.0
    %70 = vst.msk [vmem:[#allocation2 + $0xa0] sm:$0xff] %vm48, 0.0
    %71 = vst.msk [vmem:[#allocation2 + $0xa8] sm:$0x3] %vm50, 0.0
    %72 = vst.msk [vmem:[#allocation2 + $0xb0] sm:$0xff] %vm48, 0.0
    %73 = vst.msk [vmem:[#allocation2 + $0xb8] sm:$0x3] %vm50, 0.0
    %74 = vst.msk [vmem:[#allocation2 + $0xc0] sm:$0xff] %vm48, 0.0
    %75 = vst.msk [vmem:[#allocation2 + $0xc8] sm:$0x3] %vm50, 0.0
    %76 = vst.msk [vmem:[#allocation2 + $0xd0] sm:$0xff] %vm48, 0.0
    %77 = vst.msk [vmem:[#allocation2 + $0xd8] sm:$0x3] %vm50, 0.0
    %78 = vst.msk [vmem:[#allocation2 + $0xe0] sm:$0xff] %vm48, 0.0
    %79 = vst.msk [vmem:[#allocation2 + $0xe8] sm:$0x3] %vm50, 0.0
    %80 = vst.msk [vmem:[#allocation2 + $0xf0] sm:$0xff] %vm48, 0.0
    %81 = vst.msk [vmem:[#allocation2 + $0xf8] sm:$0x3] %vm50, 0.0
    %82 = vst.msk [vmem:[#allocation2 + $0x100] sm:$0xff] %vm48, 0.0
    %83 = vst.msk [vmem:[#allocation2 + $0x108] sm:$0x3] %vm50, 0.0
    %84 = vst.msk [vmem:[#allocation2 + $0x110] sm:$0xff] %vm48, 0.0
    %85 = vst.msk [vmem:[#allocation2 + $0x118] sm:$0x3] %vm50, 0.0
    %86 = vst.msk [vmem:[#allocation2 + $0x120] sm:$0xff] %vm48, 0.0
    %87 = vst.msk [vmem:[#allocation2 + $0x128] sm:$0x3] %vm50, 0.0
    %88 = vst.msk [vmem:[#allocation2 + $0x130] sm:$0xff] %vm48, 0.0
    %89 = vst.msk [vmem:[#allocation2 + $0x138] sm:$0x3] %vm50, 0.0
    %vm90 = vcmask 261120
    %91 = vst.msk [vmem:[#allocation3] sm:$0xff] %vm90, 0.0
    %vm92 = vcmask 254976
    %93 = vst.msk [vmem:[#allocation3 + $0x8] sm:$0x3] %vm92, 0.0
    %94 = vst.msk [vmem:[#allocation3 + $0x10] sm:$0xff] %vm90, 0.0
    %95 = vst.msk [vmem:[#allocation3 + $0x18] sm:$0x3] %vm92, 0.0
    %96 = vst.msk [vmem:[#allocation3 + $0x20] sm:$0xff] %vm90, 0.0
    %97 = vst.msk [vmem:[#allocation3 + $0x28] sm:$0x3] %vm92, 0.0
    %98 = vst.msk [vmem:[#allocation3 + $0x30] sm:$0xff] %vm90, 0.0
    %99 = vst.msk [vmem:[#allocation3 + $0x38] sm:$0x3] %vm92, 0.0
    %100 = vst.msk [vmem:[#allocation3 + $0x40] sm:$0xff] %vm90, 0.0
    %101 = vst.msk [vmem:[#allocation3 + $0x48] sm:$0x3] %vm92, 0.0
    %102 = vst.msk [vmem:[#allocation3 + $0x50] sm:$0xff] %vm90, 0.0
    %103 = vst.msk [vmem:[#allocation3 + $0x58] sm:$0x3] %vm92, 0.0
    %104 = vst.msk [vmem:[#allocation3 + $0x60] sm:$0xff] %vm90, 0.0
    %105 = vst.msk [vmem:[#allocation3 + $0x68] sm:$0x3] %vm92, 0.0
    %106 = vst.msk [vmem:[#allocation3 + $0x70] sm:$0xff] %vm90, 0.0
    %107 = vst.msk [vmem:[#allocation3 + $0x78] sm:$0x3] %vm92, 0.0
    %108 = vst.msk [vmem:[#allocation3 + $0x80] sm:$0xff] %vm90, 0.0
    %109 = vst.msk [vmem:[#allocation3 + $0x88] sm:$0x3] %vm92, 0.0
    %110 = vst.msk [vmem:[#allocation3 + $0x90] sm:$0xff] %vm90, 0.0
    %111 = vst.msk [vmem:[#allocation3 + $0x98] sm:$0x3] %vm92, 0.0
    %112 = vst.msk [vmem:[#allocation3 + $0xa0] sm:$0xff] %vm90, 0.0
    %113 = vst.msk [vmem:[#allocation3 + $0xa8] sm:$0x3] %vm92, 0.0
    %114 = vst.msk [vmem:[#allocation3 + $0xb0] sm:$0xff] %vm90, 0.0
    %115 = vst.msk [vmem:[#allocation3 + $0xb8] sm:$0x3] %vm92, 0.0
    %v116 = vld [vmem:[%s0] sm:$0xff]
    %v117 = vld [vmem:[%s0 + $0x8] sm:$0xff]
    %v118 = vld [vmem:[%s0 + $0x18] sm:$0xff]
    %v119 = vld [vmem:[%s0 + $0x20] sm:$0xff]
    %v120 = vld [vmem:[%s0 + $0x30] sm:$0xff]
    %v121 = vld [vmem:[%s0 + $0x38] sm:$0xff]
    %v122 = vld [vmem:[%s0 + $0x48] sm:$0xff]
    %v123 = vld [vmem:[%s0 + $0x50] sm:$0xff]
    %v124 = vld [vmem:[%s0 + $0x60] sm:$0xff]
    %v125 = vld [vmem:[%s0 + $0x68] sm:$0xff]
    %v126 = vld [vmem:[%s0 + $0x78] sm:$0xff]
    %v127 = vld [vmem:[%s0 + $0x80] sm:$0xff]
    %v128 = vld [vmem:[%s0 + $0x90] sm:$0xff]
    %v129 = vld [vmem:[%s0 + $0x98] sm:$0xff]
    %v130 = vld [vmem:[%s0 + $0xa8] sm:$0xff]
    %v131 = vld [vmem:[%s0 + $0xb0] sm:$0xff]
    %v132 = vld [vmem:[%s0 + $0xc0] sm:$0xff]
    %v133 = vld [vmem:[%s0 + $0xc8] sm:$0xff]
    %v134 = vld [vmem:[%s0 + $0xd8] sm:$0xff]
    %v135 = vld [vmem:[%s0 + $0xe0] sm:$0xff]
    %v136 = vld [vmem:[%s0 + $0xf0] sm:$0xff]
    %v137 = vld [vmem:[%s0 + $0xf8] sm:$0xff]
    %v138 = vld [vmem:[%s0 + $0x108] sm:$0xff]
    %v139 = vld [vmem:[%s0 + $0x110] sm:$0xff]
    %v140 = vld [vmem:[%s0 + $0x120] sm:$0xff]
    %v141 = vld [vmem:[%s0 + $0x128] sm:$0xff]
    %v142 = vld [vmem:[%s0 + $0x138] sm:$0xff]
    %v143 = vld [vmem:[%s0 + $0x140] sm:$0xff]
    %v144 = vld [vmem:[%s0 + $0x150] sm:$0xff]
    %v145 = vld [vmem:[%s0 + $0x158] sm:$0xff]
    %v146 = vld [vmem:[%s0 + $0x168] sm:$0xff]
    %v147 = vld [vmem:[%s0 + $0x170] sm:$0xff]
    %v148 = vld [vmem:[%s0 + $0x1b0] sm:$0xff]
    %v149 = vld [vmem:[%s0 + $0x1b8] sm:$0xff]
    %v150 = vld [vmem:[%s0 + $0x1c8] sm:$0xff]
    %v151 = vld [vmem:[%s0 + $0x1d0] sm:$0xff]
    %v152 = vld [vmem:[%s0 + $0x1e0] sm:$0xff]
    %v153 = vld [vmem:[%s0 + $0x1e8] sm:$0xff]
    %v154 = vld [vmem:[%s0 + $0x1f8] sm:$0xff]
    %v155 = vld [vmem:[%s0 + $0x200] sm:$0xff]
    %v156 = vld [vmem:[%s0 + $0x210] sm:$0xff]
    %v157 = vld [vmem:[%s0 + $0x218] sm:$0xff]
    %v158 = vld [vmem:[%s0 + $0x228] sm:$0xff]
    %v159 = vld [vmem:[%s0 + $0x230] sm:$0xff]
    %v160 = vld [vmem:[%s0 + $0x240] sm:$0xff]
    %v161 = vld [vmem:[%s0 + $0x248] sm:$0xff]
    %v162 = vld [vmem:[%s0 + $0x258] sm:$0xff]
    %v163 = vld [vmem:[%s0 + $0x260] sm:$0xff]
    %v164 = vld [vmem:[%s0 + $0x270] sm:$0xff]
    %v165 = vld [vmem:[%s0 + $0x278] sm:$0xff]
    %v166 = vld [vmem:[%s0 + $0x288] sm:$0xff]
    %v167 = vld [vmem:[%s0 + $0x290] sm:$0xff]
    %v168 = vld [vmem:[%s0 + $0x2a0] sm:$0xff]
    %v169 = vld [vmem:[%s0 + $0x2a8] sm:$0xff]
    %v170 = vld [vmem:[%s0 + $0x2b8] sm:$0xff]
    %v171 = vld [vmem:[%s0 + $0x2c0] sm:$0xff]
    %v172 = vld [vmem:[%s0 + $0x2d0] sm:$0xff]
    %v173 = vld [vmem:[%s0 + $0x2d8] sm:$0xff]
    %v174 = vld [vmem:[%s0 + $0x2e8] sm:$0xff]
    %v175 = vld [vmem:[%s0 + $0x2f0] sm:$0xff]
    %v176 = vld [vmem:[%s0 + $0x300] sm:$0xff]
    %v177 = vld [vmem:[%s0 + $0x308] sm:$0xff]
    %v178 = vld [vmem:[%s0 + $0x318] sm:$0xff]
    %v179 = vld [vmem:[%s0 + $0x320] sm:$0xff]
    %v180 = vld [vmem:[%s0 + $0x1] sm:$0xff]
    %v181 = vld [vmem:[%s0 + $0x9] sm:$0xff]
    %v182 = vld [vmem:[%s0 + $0x19] sm:$0xff]
    %v183 = vld [vmem:[%s0 + $0x21] sm:$0xff]
    %v184 = vld [vmem:[%s0 + $0x31] sm:$0xff]
    %v185 = vld [vmem:[%s0 + $0x39] sm:$0xff]
    %v186 = vld [vmem:[%s0 + $0x49] sm:$0xff]
    %v187 = vld [vmem:[%s0 + $0x51] sm:$0xff]
    %v188 = vld [vmem:[%s0 + $0x61] sm:$0xff]
    %v189 = vld [vmem:[%s0 + $0x69] sm:$0xff]
    %v190 = vld [vmem:[%s0 + $0x79] sm:$0xff]
    %v191 = vld [vmem:[%s0 + $0x81] sm:$0xff]
    %v192 = vld [vmem:[%s0 + $0x91] sm:$0xff]
    %v193 = vld [vmem:[%s0 + $0x99] sm:$0xff]
    %v194 = vld [vmem:[%s0 + $0xa9] sm:$0xff]
    %v195 = vld [vmem:[%s0 + $0xb1] sm:$0xff]
    %v196 = vld [vmem:[%s0 + $0xc1] sm:$0xff]
    %v197 = vld [vmem:[%s0 + $0xc9] sm:$0xff]
    %v198 = vld [vmem:[%s0 + $0xd9] sm:$0xff]
    %v199 = vld [vmem:[%s0 + $0xe1] sm:$0xff]
    %v200 = vld [vmem:[%s0 + $0xf1] sm:$0xff]
    %v201 = vld [vmem:[%s0 + $0xf9] sm:$0xff]
    %v202 = vld [vmem:[%s0 + $0x109] sm:$0xff]
    %v203 = vld [vmem:[%s0 + $0x111] sm:$0xff]
    %v204 = vld [vmem:[%s0 + $0x121] sm:$0xff]
    %v205 = vld [vmem:[%s0 + $0x129] sm:$0xff]
    %v206 = vld [vmem:[%s0 + $0x139] sm:$0xff]
    %v207 = vld [vmem:[%s0 + $0x141] sm:$0xff]
    %v208 = vld [vmem:[%s0 + $0x151] sm:$0xff]
    %v209 = vld [vmem:[%s0 + $0x159] sm:$0xff]
    %v210 = vld [vmem:[%s0 + $0x169] sm:$0xff]
    %v211 = vld [vmem:[%s0 + $0x171] sm:$0xff]
    %v212 = vld [vmem:[%s0 + $0x1b1] sm:$0xff]
    %v213 = vld [vmem:[%s0 + $0x1b9] sm:$0xff]
    %v214 = vld [vmem:[%s0 + $0x1c9] sm:$0xff]
    %v215 = vld [vmem:[%s0 + $0x1d1] sm:$0xff]
    %v216 = vld [vmem:[%s0 + $0x1e1] sm:$0xff]
    %v217 = vld [vmem:[%s0 + $0x1e9] sm:$0xff]
    %v218 = vld [vmem:[%s0 + $0x1f9] sm:$0xff]
    %v219 = vld [vmem:[%s0 + $0x201] sm:$0xff]
    %v220 = vld [vmem:[%s0 + $0x211] sm:$0xff]
    %v221 = vld [vmem:[%s0 + $0x219] sm:$0xff]
    %v222 = vld [vmem:[%s0 + $0x229] sm:$0xff]
    %v223 = vld [vmem:[%s0 + $0x231] sm:$0xff]
    %v224 = vld [vmem:[%s0 + $0x241] sm:$0xff]
    %v225 = vld [vmem:[%s0 + $0x249] sm:$0xff]
    %v226 = vld [vmem:[%s0 + $0x259] sm:$0xff]
    %v227 = vld [vmem:[%s0 + $0x261] sm:$0xff]
    %v228 = vld [vmem:[%s0 + $0x271] sm:$0xff]
    %v229 = vld [vmem:[%s0 + $0x279] sm:$0xff]
    %v230 = vld [vmem:[%s0 + $0x289] sm:$0xff]
    %v231 = vld [vmem:[%s0 + $0x291] sm:$0xff]
    %v232 = vld [vmem:[%s0 + $0x2a1] sm:$0xff]
    %v233 = vld [vmem:[%s0 + $0x2a9] sm:$0xff]
    %v234 = vld [vmem:[%s0 + $0x2b9] sm:$0xff]
    %v235 = vld [vmem:[%s0 + $0x2c1] sm:$0xff]
    %v236 = vld [vmem:[%s0 + $0x2d1] sm:$0xff]
    %v237 = vld [vmem:[%s0 + $0x2d9] sm:$0xff]
    %v238 = vld [vmem:[%s0 + $0x2e9] sm:$0xff]
    %v239 = vld [vmem:[%s0 + $0x2f1] sm:$0xff]
    %v240 = vld [vmem:[%s0 + $0x301] sm:$0xff]
    %v241 = vld [vmem:[%s0 + $0x309] sm:$0xff]
    %v242 = vld [vmem:[%s0 + $0x319] sm:$0xff]
    %v243 = vld [vmem:[%s0 + $0x321] sm:$0xff]
    %v244 = vld [vmem:[%s0 + $0x2] sm:$0xff]
    %v245 = vld [vmem:[%s0 + $0xa] sm:$0xff]
    %v246 = vld [vmem:[%s0 + $0x1a] sm:$0xff]
    %v247 = vld [vmem:[%s0 + $0x22] sm:$0xff]
    %v248 = vld [vmem:[%s0 + $0x32] sm:$0xff]
    %v249 = vld [vmem:[%s0 + $0x3a] sm:$0xff]
    %v250 = vld [vmem:[%s0 + $0x4a] sm:$0xff]
    %v251 = vld [vmem:[%s0 + $0x52] sm:$0xff]
    %v252 = vld [vmem:[%s0 + $0x62] sm:$0xff]
    %v253 = vld [vmem:[%s0 + $0x6a] sm:$0xff]
    %v254 = vld [vmem:[%s0 + $0x7a] sm:$0xff]
    %v255 = vld [vmem:[%s0 + $0x82] sm:$0xff]
    %v256 = vld [vmem:[%s0 + $0x92] sm:$0xff]
    %v257 = vld [vmem:[%s0 + $0x9a] sm:$0xff]
    %v258 = vld [vmem:[%s0 + $0xaa] sm:$0xff]
    %v259 = vld [vmem:[%s0 + $0xb2] sm:$0xff]
    %v260 = vld [vmem:[%s0 + $0xc2] sm:$0xff]
    %v261 = vld [vmem:[%s0 + $0xca] sm:$0xff]
    %v262 = vld [vmem:[%s0 + $0xda] sm:$0xff]
    %v263 = vld [vmem:[%s0 + $0xe2] sm:$0xff]
    %v264 = vld [vmem:[%s0 + $0xf2] sm:$0xff]
    %v265 = vld [vmem:[%s0 + $0xfa] sm:$0xff]
    %v266 = vld [vmem:[%s0 + $0x10a] sm:$0xff]
    %v267 = vld [vmem:[%s0 + $0x112] sm:$0xff]
    %v268 = vld [vmem:[%s0 + $0x122] sm:$0xff]
    %v269 = vld [vmem:[%s0 + $0x12a] sm:$0xff]
    %v270 = vld [vmem:[%s0 + $0x13a] sm:$0xff]
    %v271 = vld [vmem:[%s0 + $0x142] sm:$0xff]
    %v272 = vld [vmem:[%s0 + $0x152] sm:$0xff]
    %v273 = vld [vmem:[%s0 + $0x15a] sm:$0xff]
    %v274 = vld [vmem:[%s0 + $0x16a] sm:$0xff]
    %v275 = vld [vmem:[%s0 + $0x172] sm:$0xff]
    %v276 = vld [vmem:[%s0 + $0x1b2] sm:$0xff]
    %v277 = vld [vmem:[%s0 + $0x1ba] sm:$0xff]
    %v278 = vld [vmem:[%s0 + $0x1ca] sm:$0xff]
    %v279 = vld [vmem:[%s0 + $0x1d2] sm:$0xff]
    %v280 = vld [vmem:[%s0 + $0x1e2] sm:$0xff]
    %v281 = vld [vmem:[%s0 + $0x1ea] sm:$0xff]
    %v282 = vld [vmem:[%s0 + $0x1fa] sm:$0xff]
    %v283 = vld [vmem:[%s0 + $0x202] sm:$0xff]
    %v284 = vld [vmem:[%s0 + $0x212] sm:$0xff]
    %v285 = vld [vmem:[%s0 + $0x21a] sm:$0xff]
    %v286 = vld [vmem:[%s0 + $0x22a] sm:$0xff]
    %v287 = vld [vmem:[%s0 + $0x232] sm:$0xff]
    %v288 = vld [vmem:[%s0 + $0x242] sm:$0xff]
    %v289 = vld [vmem:[%s0 + $0x24a] sm:$0xff]
    %v290 = vld [vmem:[%s0 + $0x25a] sm:$0xff]
    %v291 = vld [vmem:[%s0 + $0x262] sm:$0xff]
    %v292 = vld [vmem:[%s0 + $0x272] sm:$0xff]
    %v293 = vld [vmem:[%s0 + $0x27a] sm:$0xff]
    %v294 = vld [vmem:[%s0 + $0x28a] sm:$0xff]
    %v295 = vld [vmem:[%s0 + $0x292] sm:$0xff]
    %v296 = vld [vmem:[%s0 + $0x2a2] sm:$0xff]
    %v297 = vld [vmem:[%s0 + $0x2aa] sm:$0xff]
    %v298 = vld [vmem:[%s0 + $0x2ba] sm:$0xff]
    %v299 = vld [vmem:[%s0 + $0x2c2] sm:$0xff]
    %v300 = vld [vmem:[%s0 + $0x2d2] sm:$0xff]
    %v301 = vld [vmem:[%s0 + $0x2da] sm:$0xff]
    %v302 = vld [vmem:[%s0 + $0x2ea] sm:$0xff]
    %v303 = vld [vmem:[%s0 + $0x2f2] sm:$0xff]
    %v304 = vld [vmem:[%s0 + $0x302] sm:$0xff]
    %v305 = vld [vmem:[%s0 + $0x30a] sm:$0xff]
    %v306 = vld [vmem:[%s0 + $0x31a] sm:$0xff]
    %v307 = vld [vmem:[%s0 + $0x322] sm:$0xff]
    %s308 = scalar_lea.vmem %s0, 24
    %v309 = vld [vmem:[%s308] sm:$0xff]
    %v310 = vld [vmem:[%s308 + $0x8] sm:$0xff]
    %v311 = vld [vmem:[%s308 + $0x18] sm:$0xff]
    %v312 = vld [vmem:[%s308 + $0x20] sm:$0xff]
    %v313 = vld [vmem:[%s308 + $0x30] sm:$0xff]
    %v314 = vld [vmem:[%s308 + $0x38] sm:$0xff]
    %v315 = vld [vmem:[%s308 + $0x48] sm:$0xff]
    %v316 = vld [vmem:[%s308 + $0x50] sm:$0xff]
    %v317 = vld [vmem:[%s308 + $0x60] sm:$0xff]
    %v318 = vld [vmem:[%s308 + $0x68] sm:$0xff]
    %v319 = vld [vmem:[%s308 + $0x78] sm:$0xff]
    %v320 = vld [vmem:[%s308 + $0x80] sm:$0xff]
    %v321 = vld [vmem:[%s308 + $0x90] sm:$0xff]
    %v322 = vld [vmem:[%s308 + $0x98] sm:$0xff]
    %v323 = vld [vmem:[%s308 + $0xa8] sm:$0xff]
    %v324 = vld [vmem:[%s308 + $0xb0] sm:$0xff]
    %v325 = vld [vmem:[%s308 + $0xc0] sm:$0xff]
    %v326 = vld [vmem:[%s308 + $0xc8] sm:$0xff]
    %v327 = vld [vmem:[%s308 + $0xd8] sm:$0xff]
    %v328 = vld [vmem:[%s308 + $0xe0] sm:$0xff]
    %v329 = vld [vmem:[%s308 + $0xf0] sm:$0xff]
    %v330 = vld [vmem:[%s308 + $0xf8] sm:$0xff]
    %v331 = vld [vmem:[%s308 + $0x108] sm:$0xff]
    %v332 = vld [vmem:[%s308 + $0x110] sm:$0xff]
    %v333 = vld [vmem:[%s308 + $0x120] sm:$0xff]
    %v334 = vld [vmem:[%s308 + $0x128] sm:$0xff]
    %v335 = vld [vmem:[%s308 + $0x138] sm:$0xff]
    %v336 = vld [vmem:[%s308 + $0x140] sm:$0xff]
    %v337 = vld [vmem:[%s308 + $0x150] sm:$0xff]
    %v338 = vld [vmem:[%s308 + $0x158] sm:$0xff]
    %v339 = vld [vmem:[%s308 + $0x168] sm:$0xff]
    %v340 = vld [vmem:[%s308 + $0x170] sm:$0xff]
    %v341 = vld [vmem:[%s308 + $0x1b0] sm:$0xff]
    %v342 = vld [vmem:[%s308 + $0x1b8] sm:$0xff]
    %v343 = vld [vmem:[%s308 + $0x1c8] sm:$0xff]
    %v344 = vld [vmem:[%s308 + $0x1d0] sm:$0xff]
    %v345 = vld [vmem:[%s308 + $0x1e0] sm:$0xff]
    %v346 = vld [vmem:[%s308 + $0x1e8] sm:$0xff]
    %v347 = vld [vmem:[%s308 + $0x1f8] sm:$0xff]
    %v348 = vld [vmem:[%s308 + $0x200] sm:$0xff]
    %v349 = vld [vmem:[%s308 + $0x210] sm:$0xff]
    %v350 = vld [vmem:[%s308 + $0x218] sm:$0xff]
    %v351 = vld [vmem:[%s308 + $0x228] sm:$0xff]
    %v352 = vld [vmem:[%s308 + $0x230] sm:$0xff]
    %v353 = vld [vmem:[%s308 + $0x240] sm:$0xff]
    %v354 = vld [vmem:[%s308 + $0x248] sm:$0xff]
    %v355 = vld [vmem:[%s308 + $0x258] sm:$0xff]
    %v356 = vld [vmem:[%s308 + $0x260] sm:$0xff]
    %v357 = vld [vmem:[%s308 + $0x270] sm:$0xff]
    %v358 = vld [vmem:[%s308 + $0x278] sm:$0xff]
    %v359 = vld [vmem:[%s308 + $0x288] sm:$0xff]
    %v360 = vld [vmem:[%s308 + $0x290] sm:$0xff]
    %v361 = vld [vmem:[%s308 + $0x2a0] sm:$0xff]
    %v362 = vld [vmem:[%s308 + $0x2a8] sm:$0xff]
    %v363 = vld [vmem:[%s308 + $0x2b8] sm:$0xff]
    %v364 = vld [vmem:[%s308 + $0x2c0] sm:$0xff]
    %v365 = vld [vmem:[%s308 + $0x2d0] sm:$0xff]
    %v366 = vld [vmem:[%s308 + $0x2d8] sm:$0xff]
    %v367 = vld [vmem:[%s308 + $0x2e8] sm:$0xff]
    %v368 = vld [vmem:[%s308 + $0x2f0] sm:$0xff]
    %v369 = vld [vmem:[%s308 + $0x300] sm:$0xff]
    %v370 = vld [vmem:[%s308 + $0x308] sm:$0xff]
    %v371 = vld [vmem:[%s308 + $0x318] sm:$0xff]
    %v372 = vld [vmem:[%s308 + $0x320] sm:$0xff]
    %v373 = vld [vmem:[%s308 + $0x1] sm:$0xff]
    %v374 = vld [vmem:[%s308 + $0x9] sm:$0xff]
    %v375 = vld [vmem:[%s308 + $0x19] sm:$0xff]
    %v376 = vld [vmem:[%s308 + $0x21] sm:$0xff]
    %v377 = vld [vmem:[%s308 + $0x31] sm:$0xff]
    %v378 = vld [vmem:[%s308 + $0x39] sm:$0xff]
    %v379 = vld [vmem:[%s308 + $0x49] sm:$0xff]
    %v380 = vld [vmem:[%s308 + $0x51] sm:$0xff]
    %v381 = vld [vmem:[%s308 + $0x61] sm:$0xff]
    %v382 = vld [vmem:[%s308 + $0x69] sm:$0xff]
    %v383 = vld [vmem:[%s308 + $0x79] sm:$0xff]
    %v384 = vld [vmem:[%s308 + $0x81] sm:$0xff]
    %v385 = vld [vmem:[%s308 + $0x91] sm:$0xff]
    %v386 = vld [vmem:[%s308 + $0x99] sm:$0xff]
    %v387 = vld [vmem:[%s308 + $0xa9] sm:$0xff]
    %v388 = vld [vmem:[%s308 + $0xb1] sm:$0xff]
    %v389 = vld [vmem:[%s308 + $0xc1] sm:$0xff]
    %v390 = vld [vmem:[%s308 + $0xc9] sm:$0xff]
    %v391 = vld [vmem:[%s308 + $0xd9] sm:$0xff]
    %v392 = vld [vmem:[%s308 + $0xe1] sm:$0xff]
    %v393 = vld [vmem:[%s308 + $0xf1] sm:$0xff]
    %v394 = vld [vmem:[%s308 + $0xf9] sm:$0xff]
    %v395 = vld [vmem:[%s308 + $0x109] sm:$0xff]
    %v396 = vld [vmem:[%s308 + $0x111] sm:$0xff]
    %v397 = vld [vmem:[%s308 + $0x121] sm:$0xff]
    %v398 = vld [vmem:[%s308 + $0x129] sm:$0xff]
    %v399 = vld [vmem:[%s308 + $0x139] sm:$0xff]
    %v400 = vld [vmem:[%s308 + $0x141] sm:$0xff]
    %v401 = vld [vmem:[%s308 + $0x151] sm:$0xff]
    %v402 = vld [vmem:[%s308 + $0x159] sm:$0xff]
    %v403 = vld [vmem:[%s308 + $0x169] sm:$0xff]
    %v404 = vld [vmem:[%s308 + $0x171] sm:$0xff]
    %v405 = vld [vmem:[%s308 + $0x1b1] sm:$0xff]
    %v406 = vld [vmem:[%s308 + $0x1b9] sm:$0xff]
    %v407 = vld [vmem:[%s308 + $0x1c9] sm:$0xff]
    %v408 = vld [vmem:[%s308 + $0x1d1] sm:$0xff]
    %v409 = vld [vmem:[%s308 + $0x1e1] sm:$0xff]
    %v410 = vld [vmem:[%s308 + $0x1e9] sm:$0xff]
    %v411 = vld [vmem:[%s308 + $0x1f9] sm:$0xff]
    %v412 = vld [vmem:[%s308 + $0x201] sm:$0xff]
    %v413 = vld [vmem:[%s308 + $0x211] sm:$0xff]
    %v414 = vld [vmem:[%s308 + $0x219] sm:$0xff]
    %v415 = vld [vmem:[%s308 + $0x229] sm:$0xff]
    %v416 = vld [vmem:[%s308 + $0x231] sm:$0xff]
    %v417 = vld [vmem:[%s308 + $0x241] sm:$0xff]
    %v418 = vld [vmem:[%s308 + $0x249] sm:$0xff]
    %v419 = vld [vmem:[%s308 + $0x259] sm:$0xff]
    %v420 = vld [vmem:[%s308 + $0x261] sm:$0xff]
    %v421 = vld [vmem:[%s308 + $0x271] sm:$0xff]
    %v422 = vld [vmem:[%s308 + $0x279] sm:$0xff]
    %v423 = vld [vmem:[%s308 + $0x289] sm:$0xff]
    %v424 = vld [vmem:[%s308 + $0x291] sm:$0xff]
    %v425 = vld [vmem:[%s308 + $0x2a1] sm:$0xff]
    %v426 = vld [vmem:[%s308 + $0x2a9] sm:$0xff]
    %v427 = vld [vmem:[%s308 + $0x2b9] sm:$0xff]
    %v428 = vld [vmem:[%s308 + $0x2c1] sm:$0xff]
    %v429 = vld [vmem:[%s308 + $0x2d1] sm:$0xff]
    %v430 = vld [vmem:[%s308 + $0x2d9] sm:$0xff]
    %v431 = vld [vmem:[%s308 + $0x2e9] sm:$0xff]
    %v432 = vld [vmem:[%s308 + $0x2f1] sm:$0xff]
    %v433 = vld [vmem:[%s308 + $0x301] sm:$0xff]
    %v434 = vld [vmem:[%s308 + $0x309] sm:$0xff]
    %v435 = vld [vmem:[%s308 + $0x319] sm:$0xff]
    %v436 = vld [vmem:[%s308 + $0x321] sm:$0xff]
    %v437 = vld [vmem:[%s308 + $0x2] sm:$0xff]
    %v438 = vld [vmem:[%s308 + $0xa] sm:$0xff]
    %v439 = vld [vmem:[%s308 + $0x1a] sm:$0xff]
    %v440 = vld [vmem:[%s308 + $0x22] sm:$0xff]
    %v441 = vld [vmem:[%s308 + $0x32] sm:$0xff]
    %v442 = vld [vmem:[%s308 + $0x3a] sm:$0xff]
    %v443 = vld [vmem:[%s308 + $0x4a] sm:$0xff]
    %v444 = vld [vmem:[%s308 + $0x52] sm:$0xff]
    %v445 = vld [vmem:[%s308 + $0x62] sm:$0xff]
    %v446 = vld [vmem:[%s308 + $0x6a] sm:$0xff]
    %v447 = vld [vmem:[%s308 + $0x7a] sm:$0xff]
    %v448 = vld [vmem:[%s308 + $0x82] sm:$0xff]
    %v449 = vld [vmem:[%s308 + $0x92] sm:$0xff]
    %v450 = vld [vmem:[%s308 + $0x9a] sm:$0xff]
    %v451 = vld [vmem:[%s308 + $0xaa] sm:$0xff]
    %v452 = vld [vmem:[%s308 + $0xb2] sm:$0xff]
    %v453 = vld [vmem:[%s308 + $0xc2] sm:$0xff]
    %v454 = vld [vmem:[%s308 + $0xca] sm:$0xff]
    %v455 = vld [vmem:[%s308 + $0xda] sm:$0xff]
    %v456 = vld [vmem:[%s308 + $0xe2] sm:$0xff]
    %v457 = vld [vmem:[%s308 + $0xf2] sm:$0xff]
    %v458 = vld [vmem:[%s308 + $0xfa] sm:$0xff]
    %v459 = vld [vmem:[%s308 + $0x10a] sm:$0xff]
    %v460 = vld [vmem:[%s308 + $0x112] sm:$0xff]
    %v461 = vld [vmem:[%s308 + $0x122] sm:$0xff]
    %v462 = vld [vmem:[%s308 + $0x12a] sm:$0xff]
    %v463 = vld [vmem:[%s308 + $0x13a] sm:$0xff]
    %v464 = vld [vmem:[%s308 + $0x142] sm:$0xff]
    %v465 = vld [vmem:[%s308 + $0x152] sm:$0xff]
    %v466 = vld [vmem:[%s308 + $0x15a] sm:$0xff]
    %v467 = vld [vmem:[%s308 + $0x16a] sm:$0xff]
    %v468 = vld [vmem:[%s308 + $0x172] sm:$0xff]
    %v469 = vld [vmem:[%s308 + $0x1b2] sm:$0xff]
    %v470 = vld [vmem:[%s308 + $0x1ba] sm:$0xff]
    %v471 = vld [vmem:[%s308 + $0x1ca] sm:$0xff]
    %v472 = vld [vmem:[%s308 + $0x1d2] sm:$0xff]
    %v473 = vld [vmem:[%s308 + $0x1e2] sm:$0xff]
    %v474 = vld [vmem:[%s308 + $0x1ea] sm:$0xff]
    %v475 = vld [vmem:[%s308 + $0x1fa] sm:$0xff]
    %v476 = vld [vmem:[%s308 + $0x202] sm:$0xff]
    %v477 = vld [vmem:[%s308 + $0x212] sm:$0xff]
    %v478 = vld [vmem:[%s308 + $0x21a] sm:$0xff]
    %v479 = vld [vmem:[%s308 + $0x22a] sm:$0xff]
    %v480 = vld [vmem:[%s308 + $0x232] sm:$0xff]
    %v481 = vld [vmem:[%s308 + $0x242] sm:$0xff]
    %v482 = vld [vmem:[%s308 + $0x24a] sm:$0xff]
    %v483 = vld [vmem:[%s308 + $0x25a] sm:$0xff]
    %v484 = vld [vmem:[%s308 + $0x262] sm:$0xff]
    %v485 = vld [vmem:[%s308 + $0x272] sm:$0xff]
    %v486 = vld [vmem:[%s308 + $0x27a] sm:$0xff]
    %v487 = vld [vmem:[%s308 + $0x28a] sm:$0xff]
    %v488 = vld [vmem:[%s308 + $0x292] sm:$0xff]
    %v489 = vld [vmem:[%s308 + $0x2a2] sm:$0xff]
    %v490 = vld [vmem:[%s308 + $0x2aa] sm:$0xff]
    %v491 = vld [vmem:[%s308 + $0x2ba] sm:$0xff]
    %v492 = vld [vmem:[%s308 + $0x2c2] sm:$0xff]
    %v493 = vld [vmem:[%s308 + $0x2d2] sm:$0xff]
    %v494 = vld [vmem:[%s308 + $0x2da] sm:$0xff]
    %v495 = vld [vmem:[%s308 + $0x2ea] sm:$0xff]
    %v496 = vld [vmem:[%s308 + $0x2f2] sm:$0xff]
    %v497 = vld [vmem:[%s308 + $0x302] sm:$0xff]
    %v498 = vld [vmem:[%s308 + $0x30a] sm:$0xff]
    %v499 = vld [vmem:[%s308 + $0x31a] sm:$0xff]
    %v500 = vld [vmem:[%s308 + $0x322] sm:$0xff]
    %s501 = scalar_lea.vmem %s0, 48
    %v502 = vld [vmem:[%s501] sm:$0xff]
    %v503 = vld [vmem:[%s501 + $0x8] sm:$0xff]
    %v504 = vld [vmem:[%s501 + $0x18] sm:$0xff]
    %v505 = vld [vmem:[%s501 + $0x20] sm:$0xff]
    %v506 = vld [vmem:[%s501 + $0x30] sm:$0xff]
    %v507 = vld [vmem:[%s501 + $0x38] sm:$0xff]
    %v508 = vld [vmem:[%s501 + $0x48] sm:$0xff]
    %v509 = vld [vmem:[%s501 + $0x50] sm:$0xff]
    %v510 = vld [vmem:[%s501 + $0x60] sm:$0xff]
    %v511 = vld [vmem:[%s501 + $0x68] sm:$0xff]
    %v512 = vld [vmem:[%s501 + $0x78] sm:$0xff]
    %v513 = vld [vmem:[%s501 + $0x80] sm:$0xff]
    %v514 = vld [vmem:[%s501 + $0x90] sm:$0xff]
    %v515 = vld [vmem:[%s501 + $0x98] sm:$0xff]
    %v516 = vld [vmem:[%s501 + $0xa8] sm:$0xff]
    %v517 = vld [vmem:[%s501 + $0xb0] sm:$0xff]
    %v518 = vld [vmem:[%s501 + $0xc0] sm:$0xff]
    %v519 = vld [vmem:[%s501 + $0xc8] sm:$0xff]
    %v520 = vld [vmem:[%s501 + $0xd8] sm:$0xff]
    %v521 = vld [vmem:[%s501 + $0xe0] sm:$0xff]
    %v522 = vld [vmem:[%s501 + $0xf0] sm:$0xff]
    %v523 = vld [vmem:[%s501 + $0xf8] sm:$0xff]
    %v524 = vld [vmem:[%s501 + $0x108] sm:$0xff]
    %v525 = vld [vmem:[%s501 + $0x110] sm:$0xff]
    %v526 = vld [vmem:[%s501 + $0x120] sm:$0xff]
    %v527 = vld [vmem:[%s501 + $0x128] sm:$0xff]
    %v528 = vld [vmem:[%s501 + $0x138] sm:$0xff]
    %v529 = vld [vmem:[%s501 + $0x140] sm:$0xff]
    %v530 = vld [vmem:[%s501 + $0x150] sm:$0xff]
    %v531 = vld [vmem:[%s501 + $0x158] sm:$0xff]
    %v532 = vld [vmem:[%s501 + $0x168] sm:$0xff]
    %v533 = vld [vmem:[%s501 + $0x170] sm:$0xff]
    %v534 = vld [vmem:[%s501 + $0x1b0] sm:$0xff]
    %v535 = vld [vmem:[%s501 + $0x1b8] sm:$0xff]
    %v536 = vld [vmem:[%s501 + $0x1c8] sm:$0xff]
    %v537 = vld [vmem:[%s501 + $0x1d0] sm:$0xff]
    %v538 = vld [vmem:[%s501 + $0x1e0] sm:$0xff]
    %v539 = vld [vmem:[%s501 + $0x1e8] sm:$0xff]
    %v540 = vld [vmem:[%s501 + $0x1f8] sm:$0xff]
    %v541 = vld [vmem:[%s501 + $0x200] sm:$0xff]
    %v542 = vld [vmem:[%s501 + $0x210] sm:$0xff]
    %v543 = vld [vmem:[%s501 + $0x218] sm:$0xff]
    %v544 = vld [vmem:[%s501 + $0x228] sm:$0xff]
    %v545 = vld [vmem:[%s501 + $0x230] sm:$0xff]
    %v546 = vld [vmem:[%s501 + $0x240] sm:$0xff]
    %v547 = vld [vmem:[%s501 + $0x248] sm:$0xff]
    %v548 = vld [vmem:[%s501 + $0x258] sm:$0xff]
    %v549 = vld [vmem:[%s501 + $0x260] sm:$0xff]
    %v550 = vld [vmem:[%s501 + $0x270] sm:$0xff]
    %v551 = vld [vmem:[%s501 + $0x278] sm:$0xff]
    %v552 = vld [vmem:[%s501 + $0x288] sm:$0xff]
    %v553 = vld [vmem:[%s501 + $0x290] sm:$0xff]
    %v554 = vld [vmem:[%s501 + $0x2a0] sm:$0xff]
    %v555 = vld [vmem:[%s501 + $0x2a8] sm:$0xff]
    %v556 = vld [vmem:[%s501 + $0x2b8] sm:$0xff]
    %v557 = vld [vmem:[%s501 + $0x2c0] sm:$0xff]
    %v558 = vld [vmem:[%s501 + $0x2d0] sm:$0xff]
    %v559 = vld [vmem:[%s501 + $0x2d8] sm:$0xff]
    %v560 = vld [vmem:[%s501 + $0x2e8] sm:$0xff]
    %v561 = vld [vmem:[%s501 + $0x2f0] sm:$0xff]
    %v562 = vld [vmem:[%s501 + $0x300] sm:$0xff]
    %v563 = vld [vmem:[%s501 + $0x308] sm:$0xff]
    %v564 = vld [vmem:[%s501 + $0x318] sm:$0xff]
    %v565 = vld [vmem:[%s501 + $0x320] sm:$0xff]
    %v566 = vld [vmem:[%s501 + $0x1] sm:$0xff]
    %v567 = vld [vmem:[%s501 + $0x9] sm:$0xff]
    %v568 = vld [vmem:[%s501 + $0x19] sm:$0xff]
    %v569 = vld [vmem:[%s501 + $0x21] sm:$0xff]
    %v570 = vld [vmem:[%s501 + $0x31] sm:$0xff]
    %v571 = vld [vmem:[%s501 + $0x39] sm:$0xff]
    %v572 = vld [vmem:[%s501 + $0x49] sm:$0xff]
    %v573 = vld [vmem:[%s501 + $0x51] sm:$0xff]
    %v574 = vld [vmem:[%s501 + $0x61] sm:$0xff]
    %v575 = vld [vmem:[%s501 + $0x69] sm:$0xff]
    %v576 = vld [vmem:[%s501 + $0x79] sm:$0xff]
    %v577 = vld [vmem:[%s501 + $0x81] sm:$0xff]
    %v578 = vld [vmem:[%s501 + $0x91] sm:$0xff]
    %v579 = vld [vmem:[%s501 + $0x99] sm:$0xff]
    %v580 = vld [vmem:[%s501 + $0xa9] sm:$0xff]
    %v581 = vld [vmem:[%s501 + $0xb1] sm:$0xff]
    %v582 = vld [vmem:[%s501 + $0xc1] sm:$0xff]
    %v583 = vld [vmem:[%s501 + $0xc9] sm:$0xff]
    %v584 = vld [vmem:[%s501 + $0xd9] sm:$0xff]
    %v585 = vld [vmem:[%s501 + $0xe1] sm:$0xff]
    %v586 = vld [vmem:[%s501 + $0xf1] sm:$0xff]
    %v587 = vld [vmem:[%s501 + $0xf9] sm:$0xff]
    %v588 = vld [vmem:[%s501 + $0x109] sm:$0xff]
    %v589 = vld [vmem:[%s501 + $0x111] sm:$0xff]
    %v590 = vld [vmem:[%s501 + $0x121] sm:$0xff]
    %v591 = vld [vmem:[%s501 + $0x129] sm:$0xff]
    %v592 = vld [vmem:[%s501 + $0x139] sm:$0xff]
    %v593 = vld [vmem:[%s501 + $0x141] sm:$0xff]
    %v594 = vld [vmem:[%s501 + $0x151] sm:$0xff]
    %v595 = vld [vmem:[%s501 + $0x159] sm:$0xff]
    %v596 = vld [vmem:[%s501 + $0x169] sm:$0xff]
    %v597 = vld [vmem:[%s501 + $0x171] sm:$0xff]
    %v598 = vld [vmem:[%s501 + $0x1b1] sm:$0xff]
    %v599 = vld [vmem:[%s501 + $0x1b9] sm:$0xff]
    %v600 = vld [vmem:[%s501 + $0x1c9] sm:$0xff]
    %v601 = vld [vmem:[%s501 + $0x1d1] sm:$0xff]
    %v602 = vld [vmem:[%s501 + $0x1e1] sm:$0xff]
    %v603 = vld [vmem:[%s501 + $0x1e9] sm:$0xff]
    %v604 = vld [vmem:[%s501 + $0x1f9] sm:$0xff]
    %v605 = vld [vmem:[%s501 + $0x201] sm:$0xff]
    %v606 = vld [vmem:[%s501 + $0x211] sm:$0xff]
    %v607 = vld [vmem:[%s501 + $0x219] sm:$0xff]
    %v608 = vld [vmem:[%s501 + $0x229] sm:$0xff]
    %v609 = vld [vmem:[%s501 + $0x231] sm:$0xff]
    %v610 = vld [vmem:[%s501 + $0x241] sm:$0xff]
    %v611 = vld [vmem:[%s501 + $0x249] sm:$0xff]
    %v612 = vld [vmem:[%s501 + $0x259] sm:$0xff]
    %v613 = vld [vmem:[%s501 + $0x261] sm:$0xff]
    %v614 = vld [vmem:[%s501 + $0x271] sm:$0xff]
    %v615 = vld [vmem:[%s501 + $0x279] sm:$0xff]
    %v616 = vld [vmem:[%s501 + $0x289] sm:$0xff]
    %v617 = vld [vmem:[%s501 + $0x291] sm:$0xff]
    %v618 = vld [vmem:[%s501 + $0x2a1] sm:$0xff]
    %v619 = vld [vmem:[%s501 + $0x2a9] sm:$0xff]
    %v620 = vld [vmem:[%s501 + $0x2b9] sm:$0xff]
    %v621 = vld [vmem:[%s501 + $0x2c1] sm:$0xff]
    %v622 = vld [vmem:[%s501 + $0x2d1] sm:$0xff]
    %v623 = vld [vmem:[%s501 + $0x2d9] sm:$0xff]
    %v624 = vld [vmem:[%s501 + $0x2e9] sm:$0xff]
    %v625 = vld [vmem:[%s501 + $0x2f1] sm:$0xff]
    %v626 = vld [vmem:[%s501 + $0x301] sm:$0xff]
    %v627 = vld [vmem:[%s501 + $0x309] sm:$0xff]
    %v628 = vld [vmem:[%s501 + $0x319] sm:$0xff]
    %v629 = vld [vmem:[%s501 + $0x321] sm:$0xff]
    %v630 = vld [vmem:[%s501 + $0x2] sm:$0xff]
    %v631 = vld [vmem:[%s501 + $0xa] sm:$0xff]
    %v632 = vld [vmem:[%s501 + $0x1a] sm:$0xff]
    %v633 = vld [vmem:[%s501 + $0x22] sm:$0xff]
    %v634 = vld [vmem:[%s501 + $0x32] sm:$0xff]
    %v635 = vld [vmem:[%s501 + $0x3a] sm:$0xff]
    %v636 = vld [vmem:[%s501 + $0x4a] sm:$0xff]
    %v637 = vld [vmem:[%s501 + $0x52] sm:$0xff]
    %v638 = vld [vmem:[%s501 + $0x62] sm:$0xff]
    %v639 = vld [vmem:[%s501 + $0x6a] sm:$0xff]
    %v640 = vld [vmem:[%s501 + $0x7a] sm:$0xff]
    %v641 = vld [vmem:[%s501 + $0x82] sm:$0xff]
    %v642 = vld [vmem:[%s501 + $0x92] sm:$0xff]
    %v643 = vld [vmem:[%s501 + $0x9a] sm:$0xff]
    %v644 = vld [vmem:[%s501 + $0xaa] sm:$0xff]
    %v645 = vld [vmem:[%s501 + $0xb2] sm:$0xff]
    %v646 = vld [vmem:[%s501 + $0xc2] sm:$0xff]
    %v647 = vld [vmem:[%s501 + $0xca] sm:$0xff]
    %v648 = vld [vmem:[%s501 + $0xda] sm:$0xff]
    %v649 = vld [vmem:[%s501 + $0xe2] sm:$0xff]
    %v650 = vld [vmem:[%s501 + $0xf2] sm:$0xff]
    %v651 = vld [vmem:[%s501 + $0xfa] sm:$0xff]
    %v652 = vld [vmem:[%s501 + $0x10a] sm:$0xff]
    %v653 = vld [vmem:[%s501 + $0x112] sm:$0xff]
    %v654 = vld [vmem:[%s501 + $0x122] sm:$0xff]
    %v655 = vld [vmem:[%s501 + $0x12a] sm:$0xff]
    %v656 = vld [vmem:[%s501 + $0x13a] sm:$0xff]
    %v657 = vld [vmem:[%s501 + $0x142] sm:$0xff]
    %v658 = vld [vmem:[%s501 + $0x152] sm:$0xff]
    %v659 = vld [vmem:[%s501 + $0x15a] sm:$0xff]
    %v660 = vld [vmem:[%s501 + $0x16a] sm:$0xff]
    %v661 = vld [vmem:[%s501 + $0x172] sm:$0xff]
    %v662 = vld [vmem:[%s501 + $0x1b2] sm:$0xff]
    %v663 = vld [vmem:[%s501 + $0x1ba] sm:$0xff]
    %v664 = vld [vmem:[%s501 + $0x1ca] sm:$0xff]
    %v665 = vld [vmem:[%s501 + $0x1d2] sm:$0xff]
    %v666 = vld [vmem:[%s501 + $0x1e2] sm:$0xff]
    %v667 = vld [vmem:[%s501 + $0x1ea] sm:$0xff]
    %v668 = vld [vmem:[%s501 + $0x1fa] sm:$0xff]
    %v669 = vld [vmem:[%s501 + $0x202] sm:$0xff]
    %v670 = vld [vmem:[%s501 + $0x212] sm:$0xff]
    %v671 = vld [vmem:[%s501 + $0x21a] sm:$0xff]
    %v672 = vld [vmem:[%s501 + $0x22a] sm:$0xff]
    %v673 = vld [vmem:[%s501 + $0x232] sm:$0xff]
    %v674 = vld [vmem:[%s501 + $0x242] sm:$0xff]
    %v675 = vld [vmem:[%s501 + $0x24a] sm:$0xff]
    %v676 = vld [vmem:[%s501 + $0x25a] sm:$0xff]
    %v677 = vld [vmem:[%s501 + $0x262] sm:$0xff]
    %v678 = vld [vmem:[%s501 + $0x272] sm:$0xff]
    %v679 = vld [vmem:[%s501 + $0x27a] sm:$0xff]
    %v680 = vld [vmem:[%s501 + $0x28a] sm:$0xff]
    %v681 = vld [vmem:[%s501 + $0x292] sm:$0xff]
    %v682 = vld [vmem:[%s501 + $0x2a2] sm:$0xff]
    %v683 = vld [vmem:[%s501 + $0x2aa] sm:$0xff]
    %v684 = vld [vmem:[%s501 + $0x2ba] sm:$0xff]
    %v685 = vld [vmem:[%s501 + $0x2c2] sm:$0xff]
    %v686 = vld [vmem:[%s501 + $0x2d2] sm:$0xff]
    %v687 = vld [vmem:[%s501 + $0x2da] sm:$0xff]
    %v688 = vld [vmem:[%s501 + $0x2ea] sm:$0xff]
    %v689 = vld [vmem:[%s501 + $0x2f2] sm:$0xff]
    %v690 = vld [vmem:[%s501 + $0x302] sm:$0xff]
    %v691 = vld [vmem:[%s501 + $0x30a] sm:$0xff]
    %v692 = vld [vmem:[%s501 + $0x31a] sm:$0xff]
    %v693 = vld [vmem:[%s501 + $0x322] sm:$0xff]
    %758 = vrot.lane.b32.xlu0 %v180, 8
    %v759 = vpop.permute.xlu0 %758
    %760 = vrot.lane.b32.xlu0 %v181, 8
    %v761 = vpop.permute.xlu0 %760
    %762 = vrot.lane.b32.xlu0 %v182, 8
    %v763 = vpop.permute.xlu0 %762
    %764 = vrot.lane.b32.xlu0 %v183, 8
    %v765 = vpop.permute.xlu0 %764
    %766 = vrot.lane.b32.xlu0 %v184, 8
    %v767 = vpop.permute.xlu0 %766
    %768 = vrot.lane.b32.xlu0 %v185, 8
    %v769 = vpop.permute.xlu0 %768
    %770 = vrot.lane.b32.xlu0 %v186, 8
    %v771 = vpop.permute.xlu0 %770
    %772 = vrot.lane.b32.xlu0 %v187, 8
    %v773 = vpop.permute.xlu0 %772
    %774 = vrot.lane.b32.xlu0 %v188, 8
    %v775 = vpop.permute.xlu0 %774
    %776 = vrot.lane.b32.xlu0 %v189, 8
    %v777 = vpop.permute.xlu0 %776
    %778 = vrot.lane.b32.xlu0 %v190, 8
    %v779 = vpop.permute.xlu0 %778
    %780 = vrot.lane.b32.xlu0 %v191, 8
    %v781 = vpop.permute.xlu0 %780
    %782 = vrot.lane.b32.xlu0 %v192, 8
    %v783 = vpop.permute.xlu0 %782
    %784 = vrot.lane.b32.xlu0 %v193, 8
    %v785 = vpop.permute.xlu0 %784
    %786 = vrot.lane.b32.xlu0 %v194, 8
    %v787 = vpop.permute.xlu0 %786
    %788 = vrot.lane.b32.xlu0 %v195, 8
    %v789 = vpop.permute.xlu0 %788
    %790 = vrot.lane.b32.xlu0 %v196, 8
    %v791 = vpop.permute.xlu0 %790
    %792 = vrot.lane.b32.xlu0 %v197, 8
    %v793 = vpop.permute.xlu0 %792
    %794 = vrot.lane.b32.xlu0 %v198, 8
    %v795 = vpop.permute.xlu0 %794
    %796 = vrot.lane.b32.xlu0 %v199, 8
    %v797 = vpop.permute.xlu0 %796
    %798 = vrot.lane.b32.xlu0 %v200, 8
    %v799 = vpop.permute.xlu0 %798
    %800 = vrot.lane.b32.xlu0 %v201, 8
    %v801 = vpop.permute.xlu0 %800
    %802 = vrot.lane.b32.xlu0 %v202, 8
    %v803 = vpop.permute.xlu0 %802
    %804 = vrot.lane.b32.xlu0 %v203, 8
    %v805 = vpop.permute.xlu0 %804
    %806 = vrot.lane.b32.xlu0 %v204, 8
    %v807 = vpop.permute.xlu0 %806
    %808 = vrot.lane.b32.xlu0 %v205, 8
    %v809 = vpop.permute.xlu0 %808
    %810 = vrot.lane.b32.xlu0 %v206, 8
    %v811 = vpop.permute.xlu0 %810
    %812 = vrot.lane.b32.xlu0 %v207, 8
    %v813 = vpop.permute.xlu0 %812
    %814 = vrot.lane.b32.xlu0 %v208, 8
    %v815 = vpop.permute.xlu0 %814
    %816 = vrot.lane.b32.xlu0 %v209, 8
    %v817 = vpop.permute.xlu0 %816
    %818 = vrot.lane.b32.xlu0 %v210, 8
    %v819 = vpop.permute.xlu0 %818
    %820 = vrot.lane.b32.xlu0 %v211, 8
    %v821 = vpop.permute.xlu0 %820
    %822 = vrot.lane.b32.xlu0 %v212, 8
    %v823 = vpop.permute.xlu0 %822
    %824 = vrot.lane.b32.xlu0 %v213, 8
    %v825 = vpop.permute.xlu0 %824
    %826 = vrot.lane.b32.xlu0 %v214, 8
    %v827 = vpop.permute.xlu0 %826
    %828 = vrot.lane.b32.xlu0 %v215, 8
    %v829 = vpop.permute.xlu0 %828
    %830 = vrot.lane.b32.xlu0 %v216, 8
    %v831 = vpop.permute.xlu0 %830
    %832 = vrot.lane.b32.xlu0 %v217, 8
    %v833 = vpop.permute.xlu0 %832
    %834 = vrot.lane.b32.xlu0 %v218, 8
    %v835 = vpop.permute.xlu0 %834
    %836 = vrot.lane.b32.xlu0 %v219, 8
    %v837 = vpop.permute.xlu0 %836
    %838 = vrot.lane.b32.xlu0 %v220, 8
    %v839 = vpop.permute.xlu0 %838
    %840 = vrot.lane.b32.xlu0 %v221, 8
    %v841 = vpop.permute.xlu0 %840
    %842 = vrot.lane.b32.xlu0 %v222, 8
    %v843 = vpop.permute.xlu0 %842
    %844 = vrot.lane.b32.xlu0 %v223, 8
    %v845 = vpop.permute.xlu0 %844
    %846 = vrot.lane.b32.xlu0 %v224, 8
    %v847 = vpop.permute.xlu0 %846
    %848 = vrot.lane.b32.xlu0 %v225, 8
    %v849 = vpop.permute.xlu0 %848
    %850 = vrot.lane.b32.xlu0 %v226, 8
    %v851 = vpop.permute.xlu0 %850
    %852 = vrot.lane.b32.xlu0 %v227, 8
    %v853 = vpop.permute.xlu0 %852
    %854 = vrot.lane.b32.xlu0 %v228, 8
    %v855 = vpop.permute.xlu0 %854
    %856 = vrot.lane.b32.xlu0 %v229, 8
    %v857 = vpop.permute.xlu0 %856
    %858 = vrot.lane.b32.xlu0 %v230, 8
    %v859 = vpop.permute.xlu0 %858
    %860 = vrot.lane.b32.xlu0 %v231, 8
    %v861 = vpop.permute.xlu0 %860
    %862 = vrot.lane.b32.xlu0 %v232, 8
    %v863 = vpop.permute.xlu0 %862
    %864 = vrot.lane.b32.xlu0 %v233, 8
    %v865 = vpop.permute.xlu0 %864
    %866 = vrot.lane.b32.xlu0 %v234, 8
    %v867 = vpop.permute.xlu0 %866
    %868 = vrot.lane.b32.xlu0 %v235, 8
    %v869 = vpop.permute.xlu0 %868
    %870 = vrot.lane.b32.xlu0 %v236, 8
    %v871 = vpop.permute.xlu0 %870
    %872 = vrot.lane.b32.xlu0 %v237, 8
    %v873 = vpop.permute.xlu0 %872
    %874 = vrot.lane.b32.xlu0 %v238, 8
    %v875 = vpop.permute.xlu0 %874
    %876 = vrot.lane.b32.xlu0 %v239, 8
    %v877 = vpop.permute.xlu0 %876
    %878 = vrot.lane.b32.xlu0 %v240, 8
    %v879 = vpop.permute.xlu0 %878
    %880 = vrot.lane.b32.xlu0 %v241, 8
    %v881 = vpop.permute.xlu0 %880
    %882 = vrot.lane.b32.xlu0 %v242, 8
    %v883 = vpop.permute.xlu0 %882
    %884 = vrot.lane.b32.xlu0 %v243, 8
    %v885 = vpop.permute.xlu0 %884
    %1014 = vrot.lane.b32.xlu0 %v244, 16
    %v1015 = vpop.permute.xlu0 %1014
    %1016 = vrot.lane.b32.xlu0 %v245, 16
    %v1017 = vpop.permute.xlu0 %1016
    %1018 = vrot.lane.b32.xlu0 %v246, 16
    %v1019 = vpop.permute.xlu0 %1018
    %1020 = vrot.lane.b32.xlu0 %v247, 16
    %v1021 = vpop.permute.xlu0 %1020
    %1022 = vrot.lane.b32.xlu0 %v248, 16
    %v1023 = vpop.permute.xlu0 %1022
    %1024 = vrot.lane.b32.xlu0 %v249, 16
    %v1025 = vpop.permute.xlu0 %1024
    %1026 = vrot.lane.b32.xlu0 %v250, 16
    %v1027 = vpop.permute.xlu0 %1026
    %1028 = vrot.lane.b32.xlu0 %v251, 16
    %v1029 = vpop.permute.xlu0 %1028
    %1030 = vrot.lane.b32.xlu0 %v252, 16
    %v1031 = vpop.permute.xlu0 %1030
    %1032 = vrot.lane.b32.xlu0 %v253, 16
    %v1033 = vpop.permute.xlu0 %1032
    %1034 = vrot.lane.b32.xlu0 %v254, 16
    %v1035 = vpop.permute.xlu0 %1034
    %1036 = vrot.lane.b32.xlu0 %v255, 16
    %v1037 = vpop.permute.xlu0 %1036
    %1038 = vrot.lane.b32.xlu0 %v256, 16
    %v1039 = vpop.permute.xlu0 %1038
    %1040 = vrot.lane.b32.xlu0 %v257, 16
    %v1041 = vpop.permute.xlu0 %1040
    %1042 = vrot.lane.b32.xlu0 %v258, 16
    %v1043 = vpop.permute.xlu0 %1042
    %1044 = vrot.lane.b32.xlu0 %v259, 16
    %v1045 = vpop.permute.xlu0 %1044
    %1046 = vrot.lane.b32.xlu0 %v260, 16
    %v1047 = vpop.permute.xlu0 %1046
    %1048 = vrot.lane.b32.xlu0 %v261, 16
    %v1049 = vpop.permute.xlu0 %1048
    %1050 = vrot.lane.b32.xlu0 %v262, 16
    %v1051 = vpop.permute.xlu0 %1050
    %1052 = vrot.lane.b32.xlu0 %v263, 16
    %v1053 = vpop.permute.xlu0 %1052
    %1054 = vrot.lane.b32.xlu0 %v264, 16
    %v1055 = vpop.permute.xlu0 %1054
    %1056 = vrot.lane.b32.xlu0 %v265, 16
    %v1057 = vpop.permute.xlu0 %1056
    %1058 = vrot.lane.b32.xlu0 %v266, 16
    %v1059 = vpop.permute.xlu0 %1058
    %1060 = vrot.lane.b32.xlu0 %v267, 16
    %v1061 = vpop.permute.xlu0 %1060
    %1062 = vrot.lane.b32.xlu0 %v268, 16
    %v1063 = vpop.permute.xlu0 %1062
    %1064 = vrot.lane.b32.xlu0 %v269, 16
    %v1065 = vpop.permute.xlu0 %1064
    %1066 = vrot.lane.b32.xlu0 %v270, 16
    %v1067 = vpop.permute.xlu0 %1066
    %1068 = vrot.lane.b32.xlu0 %v271, 16
    %v1069 = vpop.permute.xlu0 %1068
    %1070 = vrot.lane.b32.xlu0 %v272, 16
    %v1071 = vpop.permute.xlu0 %1070
    %1072 = vrot.lane.b32.xlu0 %v273, 16
    %v1073 = vpop.permute.xlu0 %1072
    %1074 = vrot.lane.b32.xlu0 %v274, 16
    %v1075 = vpop.permute.xlu0 %1074
    %1076 = vrot.lane.b32.xlu0 %v275, 16
    %v1077 = vpop.permute.xlu0 %1076
    %1078 = vrot.lane.b32.xlu0 %v276, 16
    %v1079 = vpop.permute.xlu0 %1078
    %1080 = vrot.lane.b32.xlu0 %v277, 16
    %v1081 = vpop.permute.xlu0 %1080
    %1082 = vrot.lane.b32.xlu0 %v278, 16
    %v1083 = vpop.permute.xlu0 %1082
    %1084 = vrot.lane.b32.xlu0 %v279, 16
    %v1085 = vpop.permute.xlu0 %1084
    %1086 = vrot.lane.b32.xlu0 %v280, 16
    %v1087 = vpop.permute.xlu0 %1086
    %1088 = vrot.lane.b32.xlu0 %v281, 16
    %v1089 = vpop.permute.xlu0 %1088
    %1090 = vrot.lane.b32.xlu0 %v282, 16
    %v1091 = vpop.permute.xlu0 %1090
    %1092 = vrot.lane.b32.xlu0 %v283, 16
    %v1093 = vpop.permute.xlu0 %1092
    %1094 = vrot.lane.b32.xlu0 %v284, 16
    %v1095 = vpop.permute.xlu0 %1094
    %1096 = vrot.lane.b32.xlu0 %v285, 16
    %v1097 = vpop.permute.xlu0 %1096
    %1098 = vrot.lane.b32.xlu0 %v286, 16
    %v1099 = vpop.permute.xlu0 %1098
    %1100 = vrot.lane.b32.xlu0 %v287, 16
    %v1101 = vpop.permute.xlu0 %1100
    %1102 = vrot.lane.b32.xlu0 %v288, 16
    %v1103 = vpop.permute.xlu0 %1102
    %1104 = vrot.lane.b32.xlu0 %v289, 16
    %v1105 = vpop.permute.xlu0 %1104
    %1106 = vrot.lane.b32.xlu0 %v290, 16
    %v1107 = vpop.permute.xlu0 %1106
    %1108 = vrot.lane.b32.xlu0 %v291, 16
    %v1109 = vpop.permute.xlu0 %1108
    %1110 = vrot.lane.b32.xlu0 %v292, 16
    %v1111 = vpop.permute.xlu0 %1110
    %1112 = vrot.lane.b32.xlu0 %v293, 16
    %v1113 = vpop.permute.xlu0 %1112
    %1114 = vrot.lane.b32.xlu0 %v294, 16
    %v1115 = vpop.permute.xlu0 %1114
    %1116 = vrot.lane.b32.xlu0 %v295, 16
    %v1117 = vpop.permute.xlu0 %1116
    %1118 = vrot.lane.b32.xlu0 %v296, 16
    %v1119 = vpop.permute.xlu0 %1118
    %1120 = vrot.lane.b32.xlu0 %v297, 16
    %v1121 = vpop.permute.xlu0 %1120
    %1122 = vrot.lane.b32.xlu0 %v298, 16
    %v1123 = vpop.permute.xlu0 %1122
    %1124 = vrot.lane.b32.xlu0 %v299, 16
    %v1125 = vpop.permute.xlu0 %1124
    %1126 = vrot.lane.b32.xlu0 %v300, 16
    %v1127 = vpop.permute.xlu0 %1126
    %1128 = vrot.lane.b32.xlu0 %v301, 16
    %v1129 = vpop.permute.xlu0 %1128
    %1130 = vrot.lane.b32.xlu0 %v302, 16
    %v1131 = vpop.permute.xlu0 %1130
    %1132 = vrot.lane.b32.xlu0 %v303, 16
    %v1133 = vpop.permute.xlu0 %1132
    %1134 = vrot.lane.b32.xlu0 %v304, 16
    %v1135 = vpop.permute.xlu0 %1134
    %1136 = vrot.lane.b32.xlu0 %v305, 16
    %v1137 = vpop.permute.xlu0 %1136
    %1138 = vrot.lane.b32.xlu0 %v306, 16
    %v1139 = vpop.permute.xlu0 %1138
    %1140 = vrot.lane.b32.xlu0 %v307, 16
    %v1141 = vpop.permute.xlu0 %1140
    %1270 = vrot.lane.b32.xlu0 %v309, 24
    %v1271 = vpop.permute.xlu0 %1270
    %1272 = vrot.lane.b32.xlu0 %v310, 24
    %v1273 = vpop.permute.xlu0 %1272
    %1274 = vrot.lane.b32.xlu0 %v311, 24
    %v1275 = vpop.permute.xlu0 %1274
    %1276 = vrot.lane.b32.xlu0 %v312, 24
    %v1277 = vpop.permute.xlu0 %1276
    %1278 = vrot.lane.b32.xlu0 %v313, 24
    %v1279 = vpop.permute.xlu0 %1278
    %1280 = vrot.lane.b32.xlu0 %v314, 24
    %v1281 = vpop.permute.xlu0 %1280
    %1282 = vrot.lane.b32.xlu0 %v315, 24
    %v1283 = vpop.permute.xlu0 %1282
    %1284 = vrot.lane.b32.xlu0 %v316, 24
    %v1285 = vpop.permute.xlu0 %1284
    %1286 = vrot.lane.b32.xlu0 %v317, 24
    %v1287 = vpop.permute.xlu0 %1286
    %1288 = vrot.lane.b32.xlu0 %v318, 24
    %v1289 = vpop.permute.xlu0 %1288
    %1290 = vrot.lane.b32.xlu0 %v319, 24
    %v1291 = vpop.permute.xlu0 %1290
    %1292 = vrot.lane.b32.xlu0 %v320, 24
    %v1293 = vpop.permute.xlu0 %1292
    %1294 = vrot.lane.b32.xlu0 %v321, 24
    %v1295 = vpop.permute.xlu0 %1294
    %1296 = vrot.lane.b32.xlu0 %v322, 24
    %v1297 = vpop.permute.xlu0 %1296
    %1298 = vrot.lane.b32.xlu0 %v323, 24
    %v1299 = vpop.permute.xlu0 %1298
    %1300 = vrot.lane.b32.xlu0 %v324, 24
    %v1301 = vpop.permute.xlu0 %1300
    %1302 = vrot.lane.b32.xlu0 %v325, 24
    %v1303 = vpop.permute.xlu0 %1302
    %1304 = vrot.lane.b32.xlu0 %v326, 24
    %v1305 = vpop.permute.xlu0 %1304
    %1306 = vrot.lane.b32.xlu0 %v327, 24
    %v1307 = vpop.permute.xlu0 %1306
    %1308 = vrot.lane.b32.xlu0 %v328, 24
    %v1309 = vpop.permute.xlu0 %1308
    %1310 = vrot.lane.b32.xlu0 %v329, 24
    %v1311 = vpop.permute.xlu0 %1310
    %1312 = vrot.lane.b32.xlu0 %v330, 24
    %v1313 = vpop.permute.xlu0 %1312
    %1314 = vrot.lane.b32.xlu0 %v331, 24
    %v1315 = vpop.permute.xlu0 %1314
    %1316 = vrot.lane.b32.xlu0 %v332, 24
    %v1317 = vpop.permute.xlu0 %1316
    %1318 = vrot.lane.b32.xlu0 %v333, 24
    %v1319 = vpop.permute.xlu0 %1318
    %1320 = vrot.lane.b32.xlu0 %v334, 24
    %v1321 = vpop.permute.xlu0 %1320
    %1322 = vrot.lane.b32.xlu0 %v335, 24
    %v1323 = vpop.permute.xlu0 %1322
    %1324 = vrot.lane.b32.xlu0 %v336, 24
    %v1325 = vpop.permute.xlu0 %1324
    %1326 = vrot.lane.b32.xlu0 %v337, 24
    %v1327 = vpop.permute.xlu0 %1326
    %1328 = vrot.lane.b32.xlu0 %v338, 24
    %v1329 = vpop.permute.xlu0 %1328
    %1330 = vrot.lane.b32.xlu0 %v339, 24
    %v1331 = vpop.permute.xlu0 %1330
    %1332 = vrot.lane.b32.xlu0 %v340, 24
    %v1333 = vpop.permute.xlu0 %1332
    %1334 = vrot.lane.b32.xlu0 %v341, 24
    %v1335 = vpop.permute.xlu0 %1334
    %1336 = vrot.lane.b32.xlu0 %v342, 24
    %v1337 = vpop.permute.xlu0 %1336
    %1338 = vrot.lane.b32.xlu0 %v343, 24
    %v1339 = vpop.permute.xlu0 %1338
    %1340 = vrot.lane.b32.xlu0 %v344, 24
    %v1341 = vpop.permute.xlu0 %1340
    %1342 = vrot.lane.b32.xlu0 %v345, 24
    %v1343 = vpop.permute.xlu0 %1342
    %1344 = vrot.lane.b32.xlu0 %v346, 24
    %v1345 = vpop.permute.xlu0 %1344
    %1346 = vrot.lane.b32.xlu0 %v347, 24
    %v1347 = vpop.permute.xlu0 %1346
    %1348 = vrot.lane.b32.xlu0 %v348, 24
    %v1349 = vpop.permute.xlu0 %1348
    %1350 = vrot.lane.b32.xlu0 %v349, 24
    %v1351 = vpop.permute.xlu0 %1350
    %1352 = vrot.lane.b32.xlu0 %v350, 24
    %v1353 = vpop.permute.xlu0 %1352
    %1354 = vrot.lane.b32.xlu0 %v351, 24
    %v1355 = vpop.permute.xlu0 %1354
    %1356 = vrot.lane.b32.xlu0 %v352, 24
    %v1357 = vpop.permute.xlu0 %1356
    %1358 = vrot.lane.b32.xlu0 %v353, 24
    %v1359 = vpop.permute.xlu0 %1358
    %1360 = vrot.lane.b32.xlu0 %v354, 24
    %v1361 = vpop.permute.xlu0 %1360
    %1362 = vrot.lane.b32.xlu0 %v355, 24
    %v1363 = vpop.permute.xlu0 %1362
    %1364 = vrot.lane.b32.xlu0 %v356, 24
    %v1365 = vpop.permute.xlu0 %1364
    %1366 = vrot.lane.b32.xlu0 %v357, 24
    %v1367 = vpop.permute.xlu0 %1366
    %1368 = vrot.lane.b32.xlu0 %v358, 24
    %v1369 = vpop.permute.xlu0 %1368
    %1370 = vrot.lane.b32.xlu0 %v359, 24
    %v1371 = vpop.permute.xlu0 %1370
    %1372 = vrot.lane.b32.xlu0 %v360, 24
    %v1373 = vpop.permute.xlu0 %1372
    %1374 = vrot.lane.b32.xlu0 %v361, 24
    %v1375 = vpop.permute.xlu0 %1374
    %1376 = vrot.lane.b32.xlu0 %v362, 24
    %v1377 = vpop.permute.xlu0 %1376
    %1378 = vrot.lane.b32.xlu0 %v363, 24
    %v1379 = vpop.permute.xlu0 %1378
    %1380 = vrot.lane.b32.xlu0 %v364, 24
    %v1381 = vpop.permute.xlu0 %1380
    %1382 = vrot.lane.b32.xlu0 %v365, 24
    %v1383 = vpop.permute.xlu0 %1382
    %1384 = vrot.lane.b32.xlu0 %v366, 24
    %v1385 = vpop.permute.xlu0 %1384
    %1386 = vrot.lane.b32.xlu0 %v367, 24
    %v1387 = vpop.permute.xlu0 %1386
    %1388 = vrot.lane.b32.xlu0 %v368, 24
    %v1389 = vpop.permute.xlu0 %1388
    %1390 = vrot.lane.b32.xlu0 %v369, 24
    %v1391 = vpop.permute.xlu0 %1390
    %1392 = vrot.lane.b32.xlu0 %v370, 24
    %v1393 = vpop.permute.xlu0 %1392
    %1394 = vrot.lane.b32.xlu0 %v371, 24
    %v1395 = vpop.permute.xlu0 %1394
    %1396 = vrot.lane.b32.xlu0 %v372, 24
    %v1397 = vpop.permute.xlu0 %1396
    %1526 = vrot.lane.b32.xlu0 %v373, 32
    %v1527 = vpop.permute.xlu0 %1526
    %1528 = vrot.lane.b32.xlu0 %v374, 32
    %v1529 = vpop.permute.xlu0 %1528
    %1530 = vrot.lane.b32.xlu0 %v375, 32
    %v1531 = vpop.permute.xlu0 %1530
    %1532 = vrot.lane.b32.xlu0 %v376, 32
    %v1533 = vpop.permute.xlu0 %1532
    %1534 = vrot.lane.b32.xlu0 %v377, 32
    %v1535 = vpop.permute.xlu0 %1534
    %1536 = vrot.lane.b32.xlu0 %v378, 32
    %v1537 = vpop.permute.xlu0 %1536
    %1538 = vrot.lane.b32.xlu0 %v379, 32
    %v1539 = vpop.permute.xlu0 %1538
    %1540 = vrot.lane.b32.xlu0 %v380, 32
    %v1541 = vpop.permute.xlu0 %1540
    %1542 = vrot.lane.b32.xlu0 %v381, 32
    %v1543 = vpop.permute.xlu0 %1542
    %1544 = vrot.lane.b32.xlu0 %v382, 32
    %v1545 = vpop.permute.xlu0 %1544
    %1546 = vrot.lane.b32.xlu0 %v383, 32
    %v1547 = vpop.permute.xlu0 %1546
    %1548 = vrot.lane.b32.xlu0 %v384, 32
    %v1549 = vpop.permute.xlu0 %1548
    %1550 = vrot.lane.b32.xlu0 %v385, 32
    %v1551 = vpop.permute.xlu0 %1550
    %1552 = vrot.lane.b32.xlu0 %v386, 32
    %v1553 = vpop.permute.xlu0 %1552
    %1554 = vrot.lane.b32.xlu0 %v387, 32
    %v1555 = vpop.permute.xlu0 %1554
    %1556 = vrot.lane.b32.xlu0 %v388, 32
    %v1557 = vpop.permute.xlu0 %1556
    %1558 = vrot.lane.b32.xlu0 %v389, 32
    %v1559 = vpop.permute.xlu0 %1558
    %1560 = vrot.lane.b32.xlu0 %v390, 32
    %v1561 = vpop.permute.xlu0 %1560
    %1562 = vrot.lane.b32.xlu0 %v391, 32
    %v1563 = vpop.permute.xlu0 %1562
    %1564 = vrot.lane.b32.xlu0 %v392, 32
    %v1565 = vpop.permute.xlu0 %1564
    %1566 = vrot.lane.b32.xlu0 %v393, 32
    %v1567 = vpop.permute.xlu0 %1566
    %1568 = vrot.lane.b32.xlu0 %v394, 32
    %v1569 = vpop.permute.xlu0 %1568
    %1570 = vrot.lane.b32.xlu0 %v395, 32
    %v1571 = vpop.permute.xlu0 %1570
    %1572 = vrot.lane.b32.xlu0 %v396, 32
    %v1573 = vpop.permute.xlu0 %1572
    %1574 = vrot.lane.b32.xlu0 %v397, 32
    %v1575 = vpop.permute.xlu0 %1574
    %1576 = vrot.lane.b32.xlu0 %v398, 32
    %v1577 = vpop.permute.xlu0 %1576
    %1578 = vrot.lane.b32.xlu0 %v399, 32
    %v1579 = vpop.permute.xlu0 %1578
    %1580 = vrot.lane.b32.xlu0 %v400, 32
    %v1581 = vpop.permute.xlu0 %1580
    %1582 = vrot.lane.b32.xlu0 %v401, 32
    %v1583 = vpop.permute.xlu0 %1582
    %1584 = vrot.lane.b32.xlu0 %v402, 32
    %v1585 = vpop.permute.xlu0 %1584
    %1586 = vrot.lane.b32.xlu0 %v403, 32
    %v1587 = vpop.permute.xlu0 %1586
    %1588 = vrot.lane.b32.xlu0 %v404, 32
    %v1589 = vpop.permute.xlu0 %1588
    %1590 = vrot.lane.b32.xlu0 %v405, 32
    %v1591 = vpop.permute.xlu0 %1590
    %1592 = vrot.lane.b32.xlu0 %v406, 32
    %v1593 = vpop.permute.xlu0 %1592
    %1594 = vrot.lane.b32.xlu0 %v407, 32
    %v1595 = vpop.permute.xlu0 %1594
    %1596 = vrot.lane.b32.xlu0 %v408, 32
    %v1597 = vpop.permute.xlu0 %1596
    %1598 = vrot.lane.b32.xlu0 %v409, 32
    %v1599 = vpop.permute.xlu0 %1598
    %1600 = vrot.lane.b32.xlu0 %v410, 32
    %v1601 = vpop.permute.xlu0 %1600
    %1602 = vrot.lane.b32.xlu0 %v411, 32
    %v1603 = vpop.permute.xlu0 %1602
    %1604 = vrot.lane.b32.xlu0 %v412, 32
    %v1605 = vpop.permute.xlu0 %1604
    %1606 = vrot.lane.b32.xlu0 %v413, 32
    %v1607 = vpop.permute.xlu0 %1606
    %1608 = vrot.lane.b32.xlu0 %v414, 32
    %v1609 = vpop.permute.xlu0 %1608
    %1610 = vrot.lane.b32.xlu0 %v415, 32
    %v1611 = vpop.permute.xlu0 %1610
    %1612 = vrot.lane.b32.xlu0 %v416, 32
    %v1613 = vpop.permute.xlu0 %1612
    %1614 = vrot.lane.b32.xlu0 %v417, 32
    %v1615 = vpop.permute.xlu0 %1614
    %1616 = vrot.lane.b32.xlu0 %v418, 32
    %v1617 = vpop.permute.xlu0 %1616
    %1618 = vrot.lane.b32.xlu0 %v419, 32
    %v1619 = vpop.permute.xlu0 %1618
    %1620 = vrot.lane.b32.xlu0 %v420, 32
    %v1621 = vpop.permute.xlu0 %1620
    %1622 = vrot.lane.b32.xlu0 %v421, 32
    %v1623 = vpop.permute.xlu0 %1622
    %1624 = vrot.lane.b32.xlu0 %v422, 32
    %v1625 = vpop.permute.xlu0 %1624
    %1626 = vrot.lane.b32.xlu0 %v423, 32
    %v1627 = vpop.permute.xlu0 %1626
    %1628 = vrot.lane.b32.xlu0 %v424, 32
    %v1629 = vpop.permute.xlu0 %1628
    %1630 = vrot.lane.b32.xlu0 %v425, 32
    %v1631 = vpop.permute.xlu0 %1630
    %1632 = vrot.lane.b32.xlu0 %v426, 32
    %v1633 = vpop.permute.xlu0 %1632
    %1634 = vrot.lane.b32.xlu0 %v427, 32
    %v1635 = vpop.permute.xlu0 %1634
    %1636 = vrot.lane.b32.xlu0 %v428, 32
    %v1637 = vpop.permute.xlu0 %1636
    %1638 = vrot.lane.b32.xlu0 %v429, 32
    %v1639 = vpop.permute.xlu0 %1638
    %1640 = vrot.lane.b32.xlu0 %v430, 32
    %v1641 = vpop.permute.xlu0 %1640
    %1642 = vrot.lane.b32.xlu0 %v431, 32
    %v1643 = vpop.permute.xlu0 %1642
    %1644 = vrot.lane.b32.xlu0 %v432, 32
    %v1645 = vpop.permute.xlu0 %1644
    %1646 = vrot.lane.b32.xlu0 %v433, 32
    %v1647 = vpop.permute.xlu0 %1646
    %1648 = vrot.lane.b32.xlu0 %v434, 32
    %v1649 = vpop.permute.xlu0 %1648
    %1650 = vrot.lane.b32.xlu0 %v435, 32
    %v1651 = vpop.permute.xlu0 %1650
    %1652 = vrot.lane.b32.xlu0 %v436, 32
    %v1653 = vpop.permute.xlu0 %1652
    %1782 = vrot.lane.b32.xlu0 %v437, 40
    %v1783 = vpop.permute.xlu0 %1782
    %1784 = vrot.lane.b32.xlu0 %v438, 40
    %v1785 = vpop.permute.xlu0 %1784
    %1786 = vrot.lane.b32.xlu0 %v439, 40
    %v1787 = vpop.permute.xlu0 %1786
    %1788 = vrot.lane.b32.xlu0 %v440, 40
    %v1789 = vpop.permute.xlu0 %1788
    %1790 = vrot.lane.b32.xlu0 %v441, 40
    %v1791 = vpop.permute.xlu0 %1790
    %1792 = vrot.lane.b32.xlu0 %v442, 40
    %v1793 = vpop.permute.xlu0 %1792
    %1794 = vrot.lane.b32.xlu0 %v443, 40
    %v1795 = vpop.permute.xlu0 %1794
    %1796 = vrot.lane.b32.xlu0 %v444, 40
    %v1797 = vpop.permute.xlu0 %1796
    %1798 = vrot.lane.b32.xlu0 %v445, 40
    %v1799 = vpop.permute.xlu0 %1798
    %1800 = vrot.lane.b32.xlu0 %v446, 40
    %v1801 = vpop.permute.xlu0 %1800
    %1802 = vrot.lane.b32.xlu0 %v447, 40
    %v1803 = vpop.permute.xlu0 %1802
    %1804 = vrot.lane.b32.xlu0 %v448, 40
    %v1805 = vpop.permute.xlu0 %1804
    %1806 = vrot.lane.b32.xlu0 %v449, 40
    %v1807 = vpop.permute.xlu0 %1806
    %1808 = vrot.lane.b32.xlu0 %v450, 40
    %v1809 = vpop.permute.xlu0 %1808
    %1810 = vrot.lane.b32.xlu0 %v451, 40
    %v1811 = vpop.permute.xlu0 %1810
    %1812 = vrot.lane.b32.xlu0 %v452, 40
    %v1813 = vpop.permute.xlu0 %1812
    %1814 = vrot.lane.b32.xlu0 %v453, 40
    %v1815 = vpop.permute.xlu0 %1814
    %1816 = vrot.lane.b32.xlu0 %v454, 40
    %v1817 = vpop.permute.xlu0 %1816
    %1818 = vrot.lane.b32.xlu0 %v455, 40
    %v1819 = vpop.permute.xlu0 %1818
    %1820 = vrot.lane.b32.xlu0 %v456, 40
    %v1821 = vpop.permute.xlu0 %1820
    %1822 = vrot.lane.b32.xlu0 %v457, 40
    %v1823 = vpop.permute.xlu0 %1822
    %1824 = vrot.lane.b32.xlu0 %v458, 40
    %v1825 = vpop.permute.xlu0 %1824
    %1826 = vrot.lane.b32.xlu0 %v459, 40
    %v1827 = vpop.permute.xlu0 %1826
    %1828 = vrot.lane.b32.xlu0 %v460, 40
    %v1829 = vpop.permute.xlu0 %1828
    %1830 = vrot.lane.b32.xlu0 %v461, 40
    %v1831 = vpop.permute.xlu0 %1830
    %1832 = vrot.lane.b32.xlu0 %v462, 40
    %v1833 = vpop.permute.xlu0 %1832
    %1834 = vrot.lane.b32.xlu0 %v463, 40
    %v1835 = vpop.permute.xlu0 %1834
    %1836 = vrot.lane.b32.xlu0 %v464, 40
    %v1837 = vpop.permute.xlu0 %1836
    %1838 = vrot.lane.b32.xlu0 %v465, 40
    %v1839 = vpop.permute.xlu0 %1838
    %1840 = vrot.lane.b32.xlu0 %v466, 40
    %v1841 = vpop.permute.xlu0 %1840
    %1842 = vrot.lane.b32.xlu0 %v467, 40
    %v1843 = vpop.permute.xlu0 %1842
    %1844 = vrot.lane.b32.xlu0 %v468, 40
    %v1845 = vpop.permute.xlu0 %1844
    %1846 = vrot.lane.b32.xlu0 %v469, 40
    %v1847 = vpop.permute.xlu0 %1846
    %1848 = vrot.lane.b32.xlu0 %v470, 40
    %v1849 = vpop.permute.xlu0 %1848
    %1850 = vrot.lane.b32.xlu0 %v471, 40
    %v1851 = vpop.permute.xlu0 %1850
    %1852 = vrot.lane.b32.xlu0 %v472, 40
    %v1853 = vpop.permute.xlu0 %1852
    %1854 = vrot.lane.b32.xlu0 %v473, 40
    %v1855 = vpop.permute.xlu0 %1854
    %1856 = vrot.lane.b32.xlu0 %v474, 40
    %v1857 = vpop.permute.xlu0 %1856
    %1858 = vrot.lane.b32.xlu0 %v475, 40
    %v1859 = vpop.permute.xlu0 %1858
    %1860 = vrot.lane.b32.xlu0 %v476, 40
    %v1861 = vpop.permute.xlu0 %1860
    %1862 = vrot.lane.b32.xlu0 %v477, 40
    %v1863 = vpop.permute.xlu0 %1862
    %1864 = vrot.lane.b32.xlu0 %v478, 40
    %v1865 = vpop.permute.xlu0 %1864
    %1866 = vrot.lane.b32.xlu0 %v479, 40
    %v1867 = vpop.permute.xlu0 %1866
    %1868 = vrot.lane.b32.xlu0 %v480, 40
    %v1869 = vpop.permute.xlu0 %1868
    %1870 = vrot.lane.b32.xlu0 %v481, 40
    %v1871 = vpop.permute.xlu0 %1870
    %1872 = vrot.lane.b32.xlu0 %v482, 40
    %v1873 = vpop.permute.xlu0 %1872
    %1874 = vrot.lane.b32.xlu0 %v483, 40
    %v1875 = vpop.permute.xlu0 %1874
    %1876 = vrot.lane.b32.xlu0 %v484, 40
    %v1877 = vpop.permute.xlu0 %1876
    %1878 = vrot.lane.b32.xlu0 %v485, 40
    %v1879 = vpop.permute.xlu0 %1878
    %1880 = vrot.lane.b32.xlu0 %v486, 40
    %v1881 = vpop.permute.xlu0 %1880
    %1882 = vrot.lane.b32.xlu0 %v487, 40
    %v1883 = vpop.permute.xlu0 %1882
    %1884 = vrot.lane.b32.xlu0 %v488, 40
    %v1885 = vpop.permute.xlu0 %1884
    %1886 = vrot.lane.b32.xlu0 %v489, 40
    %v1887 = vpop.permute.xlu0 %1886
    %1888 = vrot.lane.b32.xlu0 %v490, 40
    %v1889 = vpop.permute.xlu0 %1888
    %1890 = vrot.lane.b32.xlu0 %v491, 40
    %v1891 = vpop.permute.xlu0 %1890
    %1892 = vrot.lane.b32.xlu0 %v492, 40
    %v1893 = vpop.permute.xlu0 %1892
    %1894 = vrot.lane.b32.xlu0 %v493, 40
    %v1895 = vpop.permute.xlu0 %1894
    %1896 = vrot.lane.b32.xlu0 %v494, 40
    %v1897 = vpop.permute.xlu0 %1896
    %1898 = vrot.lane.b32.xlu0 %v495, 40
    %v1899 = vpop.permute.xlu0 %1898
    %1900 = vrot.lane.b32.xlu0 %v496, 40
    %v1901 = vpop.permute.xlu0 %1900
    %1902 = vrot.lane.b32.xlu0 %v497, 40
    %v1903 = vpop.permute.xlu0 %1902
    %1904 = vrot.lane.b32.xlu0 %v498, 40
    %v1905 = vpop.permute.xlu0 %1904
    %1906 = vrot.lane.b32.xlu0 %v499, 40
    %v1907 = vpop.permute.xlu0 %1906
    %1908 = vrot.lane.b32.xlu0 %v500, 40
    %v1909 = vpop.permute.xlu0 %1908
    %2038 = vrot.lane.b32.xlu0 %v502, 48
    %v2039 = vpop.permute.xlu0 %2038
    %2040 = vrot.lane.b32.xlu0 %v503, 48
    %v2041 = vpop.permute.xlu0 %2040
    %2042 = vrot.lane.b32.xlu0 %v504, 48
    %v2043 = vpop.permute.xlu0 %2042
    %2044 = vrot.lane.b32.xlu0 %v505, 48
    %v2045 = vpop.permute.xlu0 %2044
    %2046 = vrot.lane.b32.xlu0 %v506, 48
    %v2047 = vpop.permute.xlu0 %2046
    %2048 = vrot.lane.b32.xlu0 %v507, 48
    %v2049 = vpop.permute.xlu0 %2048
    %2050 = vrot.lane.b32.xlu0 %v508, 48
    %v2051 = vpop.permute.xlu0 %2050
    %2052 = vrot.lane.b32.xlu0 %v509, 48
    %v2053 = vpop.permute.xlu0 %2052
    %2054 = vrot.lane.b32.xlu0 %v510, 48
    %v2055 = vpop.permute.xlu0 %2054
    %2056 = vrot.lane.b32.xlu0 %v511, 48
    %v2057 = vpop.permute.xlu0 %2056
    %2058 = vrot.lane.b32.xlu0 %v512, 48
    %v2059 = vpop.permute.xlu0 %2058
    %2060 = vrot.lane.b32.xlu0 %v513, 48
    %v2061 = vpop.permute.xlu0 %2060
    %2062 = vrot.lane.b32.xlu0 %v514, 48
    %v2063 = vpop.permute.xlu0 %2062
    %2064 = vrot.lane.b32.xlu0 %v515, 48
    %v2065 = vpop.permute.xlu0 %2064
    %2066 = vrot.lane.b32.xlu0 %v516, 48
    %v2067 = vpop.permute.xlu0 %2066
    %2068 = vrot.lane.b32.xlu0 %v517, 48
    %v2069 = vpop.permute.xlu0 %2068
    %2070 = vrot.lane.b32.xlu0 %v518, 48
    %v2071 = vpop.permute.xlu0 %2070
    %2072 = vrot.lane.b32.xlu0 %v519, 48
    %v2073 = vpop.permute.xlu0 %2072
    %2074 = vrot.lane.b32.xlu0 %v520, 48
    %v2075 = vpop.permute.xlu0 %2074
    %2076 = vrot.lane.b32.xlu0 %v521, 48
    %v2077 = vpop.permute.xlu0 %2076
    %2078 = vrot.lane.b32.xlu0 %v522, 48
    %v2079 = vpop.permute.xlu0 %2078
    %2080 = vrot.lane.b32.xlu0 %v523, 48
    %v2081 = vpop.permute.xlu0 %2080
    %2082 = vrot.lane.b32.xlu0 %v524, 48
    %v2083 = vpop.permute.xlu0 %2082
    %2084 = vrot.lane.b32.xlu0 %v525, 48
    %v2085 = vpop.permute.xlu0 %2084
    %2086 = vrot.lane.b32.xlu0 %v526, 48
    %v2087 = vpop.permute.xlu0 %2086
    %2088 = vrot.lane.b32.xlu0 %v527, 48
    %v2089 = vpop.permute.xlu0 %2088
    %2090 = vrot.lane.b32.xlu0 %v528, 48
    %v2091 = vpop.permute.xlu0 %2090
    %2092 = vrot.lane.b32.xlu0 %v529, 48
    %v2093 = vpop.permute.xlu0 %2092
    %2094 = vrot.lane.b32.xlu0 %v530, 48
    %v2095 = vpop.permute.xlu0 %2094
    %2096 = vrot.lane.b32.xlu0 %v531, 48
    %v2097 = vpop.permute.xlu0 %2096
    %2098 = vrot.lane.b32.xlu0 %v532, 48
    %v2099 = vpop.permute.xlu0 %2098
    %2100 = vrot.lane.b32.xlu0 %v533, 48
    %v2101 = vpop.permute.xlu0 %2100
    %2102 = vrot.lane.b32.xlu0 %v534, 48
    %v2103 = vpop.permute.xlu0 %2102
    %2104 = vrot.lane.b32.xlu0 %v535, 48
    %v2105 = vpop.permute.xlu0 %2104
    %2106 = vrot.lane.b32.xlu0 %v536, 48
    %v2107 = vpop.permute.xlu0 %2106
    %2108 = vrot.lane.b32.xlu0 %v537, 48
    %v2109 = vpop.permute.xlu0 %2108
    %2110 = vrot.lane.b32.xlu0 %v538, 48
    %v2111 = vpop.permute.xlu0 %2110
    %2112 = vrot.lane.b32.xlu0 %v539, 48
    %v2113 = vpop.permute.xlu0 %2112
    %2114 = vrot.lane.b32.xlu0 %v540, 48
    %v2115 = vpop.permute.xlu0 %2114
    %2116 = vrot.lane.b32.xlu0 %v541, 48
    %v2117 = vpop.permute.xlu0 %2116
    %2118 = vrot.lane.b32.xlu0 %v542, 48
    %v2119 = vpop.permute.xlu0 %2118
    %2120 = vrot.lane.b32.xlu0 %v543, 48
    %v2121 = vpop.permute.xlu0 %2120
    %2122 = vrot.lane.b32.xlu0 %v544, 48
    %v2123 = vpop.permute.xlu0 %2122
    %2124 = vrot.lane.b32.xlu0 %v545, 48
    %v2125 = vpop.permute.xlu0 %2124
    %2126 = vrot.lane.b32.xlu0 %v546, 48
    %v2127 = vpop.permute.xlu0 %2126
    %2128 = vrot.lane.b32.xlu0 %v547, 48
    %v2129 = vpop.permute.xlu0 %2128
    %2130 = vrot.lane.b32.xlu0 %v548, 48
    %v2131 = vpop.permute.xlu0 %2130
    %2132 = vrot.lane.b32.xlu0 %v549, 48
    %v2133 = vpop.permute.xlu0 %2132
    %2134 = vrot.lane.b32.xlu0 %v550, 48
    %v2135 = vpop.permute.xlu0 %2134
    %2136 = vrot.lane.b32.xlu0 %v551, 48
    %v2137 = vpop.permute.xlu0 %2136
    %2138 = vrot.lane.b32.xlu0 %v552, 48
    %v2139 = vpop.permute.xlu0 %2138
    %2140 = vrot.lane.b32.xlu0 %v553, 48
    %v2141 = vpop.permute.xlu0 %2140
    %2142 = vrot.lane.b32.xlu0 %v554, 48
    %v2143 = vpop.permute.xlu0 %2142
    %2144 = vrot.lane.b32.xlu0 %v555, 48
    %v2145 = vpop.permute.xlu0 %2144
    %2146 = vrot.lane.b32.xlu0 %v556, 48
    %v2147 = vpop.permute.xlu0 %2146
    %2148 = vrot.lane.b32.xlu0 %v557, 48
    %v2149 = vpop.permute.xlu0 %2148
    %2150 = vrot.lane.b32.xlu0 %v558, 48
    %v2151 = vpop.permute.xlu0 %2150
    %2152 = vrot.lane.b32.xlu0 %v559, 48
    %v2153 = vpop.permute.xlu0 %2152
    %2154 = vrot.lane.b32.xlu0 %v560, 48
    %v2155 = vpop.permute.xlu0 %2154
    %2156 = vrot.lane.b32.xlu0 %v561, 48
    %v2157 = vpop.permute.xlu0 %2156
    %2158 = vrot.lane.b32.xlu0 %v562, 48
    %v2159 = vpop.permute.xlu0 %2158
    %2160 = vrot.lane.b32.xlu0 %v563, 48
    %v2161 = vpop.permute.xlu0 %2160
    %2162 = vrot.lane.b32.xlu0 %v564, 48
    %v2163 = vpop.permute.xlu0 %2162
    %2164 = vrot.lane.b32.xlu0 %v565, 48
    %v2165 = vpop.permute.xlu0 %2164
    %2294 = vrot.lane.b32.xlu0 %v566, 56
    %v2295 = vpop.permute.xlu0 %2294
    %2296 = vrot.lane.b32.xlu0 %v567, 56
    %v2297 = vpop.permute.xlu0 %2296
    %2298 = vrot.lane.b32.xlu0 %v568, 56
    %v2299 = vpop.permute.xlu0 %2298
    %2300 = vrot.lane.b32.xlu0 %v569, 56
    %v2301 = vpop.permute.xlu0 %2300
    %2302 = vrot.lane.b32.xlu0 %v570, 56
    %v2303 = vpop.permute.xlu0 %2302
    %2304 = vrot.lane.b32.xlu0 %v571, 56
    %v2305 = vpop.permute.xlu0 %2304
    %2306 = vrot.lane.b32.xlu0 %v572, 56
    %v2307 = vpop.permute.xlu0 %2306
    %2308 = vrot.lane.b32.xlu0 %v573, 56
    %v2309 = vpop.permute.xlu0 %2308
    %2310 = vrot.lane.b32.xlu0 %v574, 56
    %v2311 = vpop.permute.xlu0 %2310
    %2312 = vrot.lane.b32.xlu0 %v575, 56
    %v2313 = vpop.permute.xlu0 %2312
    %2314 = vrot.lane.b32.xlu0 %v576, 56
    %v2315 = vpop.permute.xlu0 %2314
    %2316 = vrot.lane.b32.xlu0 %v577, 56
    %v2317 = vpop.permute.xlu0 %2316
    %2318 = vrot.lane.b32.xlu0 %v578, 56
    %v2319 = vpop.permute.xlu0 %2318
    %2320 = vrot.lane.b32.xlu0 %v579, 56
    %v2321 = vpop.permute.xlu0 %2320
    %2322 = vrot.lane.b32.xlu0 %v580, 56
    %v2323 = vpop.permute.xlu0 %2322
    %2324 = vrot.lane.b32.xlu0 %v581, 56
    %v2325 = vpop.permute.xlu0 %2324
    %2326 = vrot.lane.b32.xlu0 %v582, 56
    %v2327 = vpop.permute.xlu0 %2326
    %2328 = vrot.lane.b32.xlu0 %v583, 56
    %v2329 = vpop.permute.xlu0 %2328
    %2330 = vrot.lane.b32.xlu0 %v584, 56
    %v2331 = vpop.permute.xlu0 %2330
    %2332 = vrot.lane.b32.xlu0 %v585, 56
    %v2333 = vpop.permute.xlu0 %2332
    %2334 = vrot.lane.b32.xlu0 %v586, 56
    %v2335 = vpop.permute.xlu0 %2334
    %2336 = vrot.lane.b32.xlu0 %v587, 56
    %v2337 = vpop.permute.xlu0 %2336
    %2338 = vrot.lane.b32.xlu0 %v588, 56
    %v2339 = vpop.permute.xlu0 %2338
    %2340 = vrot.lane.b32.xlu0 %v589, 56
    %v2341 = vpop.permute.xlu0 %2340
    %2342 = vrot.lane.b32.xlu0 %v590, 56
    %v2343 = vpop.permute.xlu0 %2342
    %2344 = vrot.lane.b32.xlu0 %v591, 56
    %v2345 = vpop.permute.xlu0 %2344
    %2346 = vrot.lane.b32.xlu0 %v592, 56
    %v2347 = vpop.permute.xlu0 %2346
    %2348 = vrot.lane.b32.xlu0 %v593, 56
    %v2349 = vpop.permute.xlu0 %2348
    %2350 = vrot.lane.b32.xlu0 %v594, 56
    %v2351 = vpop.permute.xlu0 %2350
    %2352 = vrot.lane.b32.xlu0 %v595, 56
    %v2353 = vpop.permute.xlu0 %2352
    %2354 = vrot.lane.b32.xlu0 %v596, 56
    %v2355 = vpop.permute.xlu0 %2354
    %2356 = vrot.lane.b32.xlu0 %v597, 56
    %v2357 = vpop.permute.xlu0 %2356
    %2358 = vrot.lane.b32.xlu0 %v598, 56
    %v2359 = vpop.permute.xlu0 %2358
    %2360 = vrot.lane.b32.xlu0 %v599, 56
    %v2361 = vpop.permute.xlu0 %2360
    %2362 = vrot.lane.b32.xlu0 %v600, 56
    %v2363 = vpop.permute.xlu0 %2362
    %2364 = vrot.lane.b32.xlu0 %v601, 56
    %v2365 = vpop.permute.xlu0 %2364
    %2366 = vrot.lane.b32.xlu0 %v602, 56
    %v2367 = vpop.permute.xlu0 %2366
    %2368 = vrot.lane.b32.xlu0 %v603, 56
    %v2369 = vpop.permute.xlu0 %2368
    %2370 = vrot.lane.b32.xlu0 %v604, 56
    %v2371 = vpop.permute.xlu0 %2370
    %2372 = vrot.lane.b32.xlu0 %v605, 56
    %v2373 = vpop.permute.xlu0 %2372
    %2374 = vrot.lane.b32.xlu0 %v606, 56
    %v2375 = vpop.permute.xlu0 %2374
    %2376 = vrot.lane.b32.xlu0 %v607, 56
    %v2377 = vpop.permute.xlu0 %2376
    %2378 = vrot.lane.b32.xlu0 %v608, 56
    %v2379 = vpop.permute.xlu0 %2378
    %2380 = vrot.lane.b32.xlu0 %v609, 56
    %v2381 = vpop.permute.xlu0 %2380
    %2382 = vrot.lane.b32.xlu0 %v610, 56
    %v2383 = vpop.permute.xlu0 %2382
    %2384 = vrot.lane.b32.xlu0 %v611, 56
    %v2385 = vpop.permute.xlu0 %2384
    %2386 = vrot.lane.b32.xlu0 %v612, 56
    %v2387 = vpop.permute.xlu0 %2386
    %2388 = vrot.lane.b32.xlu0 %v613, 56
    %v2389 = vpop.permute.xlu0 %2388
    %2390 = vrot.lane.b32.xlu0 %v614, 56
    %v2391 = vpop.permute.xlu0 %2390
    %2392 = vrot.lane.b32.xlu0 %v615, 56
    %v2393 = vpop.permute.xlu0 %2392
    %2394 = vrot.lane.b32.xlu0 %v616, 56
    %v2395 = vpop.permute.xlu0 %2394
    %2396 = vrot.lane.b32.xlu0 %v617, 56
    %v2397 = vpop.permute.xlu0 %2396
    %2398 = vrot.lane.b32.xlu0 %v618, 56
    %v2399 = vpop.permute.xlu0 %2398
    %2400 = vrot.lane.b32.xlu0 %v619, 56
    %v2401 = vpop.permute.xlu0 %2400
    %2402 = vrot.lane.b32.xlu0 %v620, 56
    %v2403 = vpop.permute.xlu0 %2402
    %2404 = vrot.lane.b32.xlu0 %v621, 56
    %v2405 = vpop.permute.xlu0 %2404
    %2406 = vrot.lane.b32.xlu0 %v622, 56
    %v2407 = vpop.permute.xlu0 %2406
    %2408 = vrot.lane.b32.xlu0 %v623, 56
    %v2409 = vpop.permute.xlu0 %2408
    %2410 = vrot.lane.b32.xlu0 %v624, 56
    %v2411 = vpop.permute.xlu0 %2410
    %2412 = vrot.lane.b32.xlu0 %v625, 56
    %v2413 = vpop.permute.xlu0 %2412
    %2414 = vrot.lane.b32.xlu0 %v626, 56
    %v2415 = vpop.permute.xlu0 %2414
    %2416 = vrot.lane.b32.xlu0 %v627, 56
    %v2417 = vpop.permute.xlu0 %2416
    %2418 = vrot.lane.b32.xlu0 %v628, 56
    %v2419 = vpop.permute.xlu0 %2418
    %2420 = vrot.lane.b32.xlu0 %v629, 56
    %v2421 = vpop.permute.xlu0 %2420
    %2550 = vrot.lane.b32.xlu0 %v630, 64
    %v2551 = vpop.permute.xlu0 %2550
    %2552 = vrot.lane.b32.xlu0 %v631, 64
    %v2553 = vpop.permute.xlu0 %2552
    %2554 = vrot.lane.b32.xlu0 %v632, 64
    %v2555 = vpop.permute.xlu0 %2554
    %2556 = vrot.lane.b32.xlu0 %v633, 64
    %v2557 = vpop.permute.xlu0 %2556
    %2558 = vrot.lane.b32.xlu0 %v634, 64
    %v2559 = vpop.permute.xlu0 %2558
    %2560 = vrot.lane.b32.xlu0 %v635, 64
    %v2561 = vpop.permute.xlu0 %2560
    %2562 = vrot.lane.b32.xlu0 %v636, 64
    %v2563 = vpop.permute.xlu0 %2562
    %2564 = vrot.lane.b32.xlu0 %v637, 64
    %v2565 = vpop.permute.xlu0 %2564
    %2566 = vrot.lane.b32.xlu0 %v638, 64
    %v2567 = vpop.permute.xlu0 %2566
    %2568 = vrot.lane.b32.xlu0 %v639, 64
    %v2569 = vpop.permute.xlu0 %2568
    %2570 = vrot.lane.b32.xlu0 %v640, 64
    %v2571 = vpop.permute.xlu0 %2570
    %2572 = vrot.lane.b32.xlu0 %v641, 64
    %v2573 = vpop.permute.xlu0 %2572
    %2574 = vrot.lane.b32.xlu0 %v642, 64
    %v2575 = vpop.permute.xlu0 %2574
    %2576 = vrot.lane.b32.xlu0 %v643, 64
    %v2577 = vpop.permute.xlu0 %2576
    %2578 = vrot.lane.b32.xlu0 %v644, 64
    %v2579 = vpop.permute.xlu0 %2578
    %2580 = vrot.lane.b32.xlu0 %v645, 64
    %v2581 = vpop.permute.xlu0 %2580
    %2582 = vrot.lane.b32.xlu0 %v646, 64
    %v2583 = vpop.permute.xlu0 %2582
    %2584 = vrot.lane.b32.xlu0 %v647, 64
    %v2585 = vpop.permute.xlu0 %2584
    %2586 = vrot.lane.b32.xlu0 %v648, 64
    %v2587 = vpop.permute.xlu0 %2586
    %2588 = vrot.lane.b32.xlu0 %v649, 64
    %v2589 = vpop.permute.xlu0 %2588
    %2590 = vrot.lane.b32.xlu0 %v650, 64
    %v2591 = vpop.permute.xlu0 %2590
    %2592 = vrot.lane.b32.xlu0 %v651, 64
    %v2593 = vpop.permute.xlu0 %2592
    %2594 = vrot.lane.b32.xlu0 %v652, 64
    %v2595 = vpop.permute.xlu0 %2594
    %2596 = vrot.lane.b32.xlu0 %v653, 64
    %v2597 = vpop.permute.xlu0 %2596
    %2598 = vrot.lane.b32.xlu0 %v654, 64
    %v2599 = vpop.permute.xlu0 %2598
    %2600 = vrot.lane.b32.xlu0 %v655, 64
    %v2601 = vpop.permute.xlu0 %2600
    %2602 = vrot.lane.b32.xlu0 %v656, 64
    %v2603 = vpop.permute.xlu0 %2602
    %2604 = vrot.lane.b32.xlu0 %v657, 64
    %v2605 = vpop.permute.xlu0 %2604
    %2606 = vrot.lane.b32.xlu0 %v658, 64
    %v2607 = vpop.permute.xlu0 %2606
    %2608 = vrot.lane.b32.xlu0 %v659, 64
    %v2609 = vpop.permute.xlu0 %2608
    %2610 = vrot.lane.b32.xlu0 %v660, 64
    %v2611 = vpop.permute.xlu0 %2610
    %2612 = vrot.lane.b32.xlu0 %v661, 64
    %v2613 = vpop.permute.xlu0 %2612
    %2614 = vrot.lane.b32.xlu0 %v662, 64
    %v2615 = vpop.permute.xlu0 %2614
    %2616 = vrot.lane.b32.xlu0 %v663, 64
    %v2617 = vpop.permute.xlu0 %2616
    %2618 = vrot.lane.b32.xlu0 %v664, 64
    %v2619 = vpop.permute.xlu0 %2618
    %2620 = vrot.lane.b32.xlu0 %v665, 64
    %v2621 = vpop.permute.xlu0 %2620
    %2622 = vrot.lane.b32.xlu0 %v666, 64
    %v2623 = vpop.permute.xlu0 %2622
    %2624 = vrot.lane.b32.xlu0 %v667, 64
    %v2625 = vpop.permute.xlu0 %2624
    %2626 = vrot.lane.b32.xlu0 %v668, 64
    %v2627 = vpop.permute.xlu0 %2626
    %2628 = vrot.lane.b32.xlu0 %v669, 64
    %v2629 = vpop.permute.xlu0 %2628
    %2630 = vrot.lane.b32.xlu0 %v670, 64
    %v2631 = vpop.permute.xlu0 %2630
    %2632 = vrot.lane.b32.xlu0 %v671, 64
    %v2633 = vpop.permute.xlu0 %2632
    %2634 = vrot.lane.b32.xlu0 %v672, 64
    %v2635 = vpop.permute.xlu0 %2634
    %2636 = vrot.lane.b32.xlu0 %v673, 64
    %v2637 = vpop.permute.xlu0 %2636
    %2638 = vrot.lane.b32.xlu0 %v674, 64
    %v2639 = vpop.permute.xlu0 %2638
    %2640 = vrot.lane.b32.xlu0 %v675, 64
    %v2641 = vpop.permute.xlu0 %2640
    %2642 = vrot.lane.b32.xlu0 %v676, 64
    %v2643 = vpop.permute.xlu0 %2642
    %2644 = vrot.lane.b32.xlu0 %v677, 64
    %v2645 = vpop.permute.xlu0 %2644
    %2646 = vrot.lane.b32.xlu0 %v678, 64
    %v2647 = vpop.permute.xlu0 %2646
    %2648 = vrot.lane.b32.xlu0 %v679, 64
    %v2649 = vpop.permute.xlu0 %2648
    %2650 = vrot.lane.b32.xlu0 %v680, 64
    %v2651 = vpop.permute.xlu0 %2650
    %2652 = vrot.lane.b32.xlu0 %v681, 64
    %v2653 = vpop.permute.xlu0 %2652
    %2654 = vrot.lane.b32.xlu0 %v682, 64
    %v2655 = vpop.permute.xlu0 %2654
    %2656 = vrot.lane.b32.xlu0 %v683, 64
    %v2657 = vpop.permute.xlu0 %2656
    %2658 = vrot.lane.b32.xlu0 %v684, 64
    %v2659 = vpop.permute.xlu0 %2658
    %2660 = vrot.lane.b32.xlu0 %v685, 64
    %v2661 = vpop.permute.xlu0 %2660
    %2662 = vrot.lane.b32.xlu0 %v686, 64
    %v2663 = vpop.permute.xlu0 %2662
    %2664 = vrot.lane.b32.xlu0 %v687, 64
    %v2665 = vpop.permute.xlu0 %2664
    %2666 = vrot.lane.b32.xlu0 %v688, 64
    %v2667 = vpop.permute.xlu0 %2666
    %2668 = vrot.lane.b32.xlu0 %v689, 64
    %v2669 = vpop.permute.xlu0 %2668
    %2670 = vrot.lane.b32.xlu0 %v690, 64
    %v2671 = vpop.permute.xlu0 %2670
    %2672 = vrot.lane.b32.xlu0 %v691, 64
    %v2673 = vpop.permute.xlu0 %2672
    %2674 = vrot.lane.b32.xlu0 %v692, 64
    %v2675 = vpop.permute.xlu0 %2674
    %2676 = vrot.lane.b32.xlu0 %v693, 64
    %v2677 = vpop.permute.xlu0 %2676
    %vm2742 = vcmask 64512
    %v2743 = vsel %vm2742, %v116, %v759
    %v2744 = vsel %vm2742, %v117, %v761
    %v2745 = vsel %vm2742, %v118, %v763
    %v2746 = vsel %vm2742, %v119, %v765
    %v2747 = vsel %vm2742, %v120, %v767
    %v2748 = vsel %vm2742, %v121, %v769
    %v2749 = vsel %vm2742, %v122, %v771
    %v2750 = vsel %vm2742, %v123, %v773
    %v2751 = vsel %vm2742, %v124, %v775
    %v2752 = vsel %vm2742, %v125, %v777
    %v2753 = vsel %vm2742, %v126, %v779
    %v2754 = vsel %vm2742, %v127, %v781
    %v2755 = vsel %vm2742, %v128, %v783
    %v2756 = vsel %vm2742, %v129, %v785
    %v2757 = vsel %vm2742, %v130, %v787
    %v2758 = vsel %vm2742, %v131, %v789
    %v2759 = vsel %vm2742, %v132, %v791
    %v2760 = vsel %vm2742, %v133, %v793
    %v2761 = vsel %vm2742, %v134, %v795
    %v2762 = vsel %vm2742, %v135, %v797
    %v2763 = vsel %vm2742, %v136, %v799
    %v2764 = vsel %vm2742, %v137, %v801
    %v2765 = vsel %vm2742, %v138, %v803
    %v2766 = vsel %vm2742, %v139, %v805
    %v2767 = vsel %vm2742, %v140, %v807
    %v2768 = vsel %vm2742, %v141, %v809
    %v2769 = vsel %vm2742, %v142, %v811
    %v2770 = vsel %vm2742, %v143, %v813
    %v2771 = vsel %vm2742, %v144, %v815
    %v2772 = vsel %vm2742, %v145, %v817
    %v2773 = vsel %vm2742, %v146, %v819
    %v2774 = vsel %vm2742, %v147, %v821
    %v2775 = vsel %vm2742, %v148, %v823
    %v2776 = vsel %vm2742, %v149, %v825
    %v2777 = vsel %vm2742, %v150, %v827
    %v2778 = vsel %vm2742, %v151, %v829
    %v2779 = vsel %vm2742, %v152, %v831
    %v2780 = vsel %vm2742, %v153, %v833
    %v2781 = vsel %vm2742, %v154, %v835
    %v2782 = vsel %vm2742, %v155, %v837
    %v2783 = vsel %vm2742, %v156, %v839
    %v2784 = vsel %vm2742, %v157, %v841
    %v2785 = vsel %vm2742, %v158, %v843
    %v2786 = vsel %vm2742, %v159, %v845
    %v2787 = vsel %vm2742, %v160, %v847
    %v2788 = vsel %vm2742, %v161, %v849
    %v2789 = vsel %vm2742, %v162, %v851
    %v2790 = vsel %vm2742, %v163, %v853
    %v2791 = vsel %vm2742, %v164, %v855
    %v2792 = vsel %vm2742, %v165, %v857
    %v2793 = vsel %vm2742, %v166, %v859
    %v2794 = vsel %vm2742, %v167, %v861
    %v2795 = vsel %vm2742, %v168, %v863
    %v2796 = vsel %vm2742, %v169, %v865
    %v2797 = vsel %vm2742, %v170, %v867
    %v2798 = vsel %vm2742, %v171, %v869
    %v2799 = vsel %vm2742, %v172, %v871
    %v2800 = vsel %vm2742, %v173, %v873
    %v2801 = vsel %vm2742, %v174, %v875
    %v2802 = vsel %vm2742, %v175, %v877
    %v2803 = vsel %vm2742, %v176, %v879
    %v2804 = vsel %vm2742, %v177, %v881
    %v2805 = vsel %vm2742, %v178, %v883
    %v2806 = vsel %vm2742, %v179, %v885
    %v2807 = vsel %vm48, %v2743, %v1015
    %v2808 = vsel %vm48, %v2744, %v1017
    %v2809 = vsel %vm48, %v2745, %v1019
    %v2810 = vsel %vm48, %v2746, %v1021
    %v2811 = vsel %vm48, %v2747, %v1023
    %v2812 = vsel %vm48, %v2748, %v1025
    %v2813 = vsel %vm48, %v2749, %v1027
    %v2814 = vsel %vm48, %v2750, %v1029
    %v2815 = vsel %vm48, %v2751, %v1031
    %v2816 = vsel %vm48, %v2752, %v1033
    %v2817 = vsel %vm48, %v2753, %v1035
    %v2818 = vsel %vm48, %v2754, %v1037
    %v2819 = vsel %vm48, %v2755, %v1039
    %v2820 = vsel %vm48, %v2756, %v1041
    %v2821 = vsel %vm48, %v2757, %v1043
    %v2822 = vsel %vm48, %v2758, %v1045
    %v2823 = vsel %vm48, %v2759, %v1047
    %v2824 = vsel %vm48, %v2760, %v1049
    %v2825 = vsel %vm48, %v2761, %v1051
    %v2826 = vsel %vm48, %v2762, %v1053
    %v2827 = vsel %vm48, %v2763, %v1055
    %v2828 = vsel %vm48, %v2764, %v1057
    %v2829 = vsel %vm48, %v2765, %v1059
    %v2830 = vsel %vm48, %v2766, %v1061
    %v2831 = vsel %vm48, %v2767, %v1063
    %v2832 = vsel %vm48, %v2768, %v1065
    %v2833 = vsel %vm48, %v2769, %v1067
    %v2834 = vsel %vm48, %v2770, %v1069
    %v2835 = vsel %vm48, %v2771, %v1071
    %v2836 = vsel %vm48, %v2772, %v1073
    %v2837 = vsel %vm48, %v2773, %v1075
    %v2838 = vsel %vm48, %v2774, %v1077
    %v2839 = vsel %vm48, %v2775, %v1079
    %v2840 = vsel %vm48, %v2776, %v1081
    %v2841 = vsel %vm48, %v2777, %v1083
    %v2842 = vsel %vm48, %v2778, %v1085
    %v2843 = vsel %vm48, %v2779, %v1087
    %v2844 = vsel %vm48, %v2780, %v1089
    %v2845 = vsel %vm48, %v2781, %v1091
    %v2846 = vsel %vm48, %v2782, %v1093
    %v2847 = vsel %vm48, %v2783, %v1095
    %v2848 = vsel %vm48, %v2784, %v1097
    %v2849 = vsel %vm48, %v2785, %v1099
    %v2850 = vsel %vm48, %v2786, %v1101
    %v2851 = vsel %vm48, %v2787, %v1103
    %v2852 = vsel %vm48, %v2788, %v1105
    %v2853 = vsel %vm48, %v2789, %v1107
    %v2854 = vsel %vm48, %v2790, %v1109
    %v2855 = vsel %vm48, %v2791, %v1111
    %v2856 = vsel %vm48, %v2792, %v1113
    %v2857 = vsel %vm48, %v2793, %v1115
    %v2858 = vsel %vm48, %v2794, %v1117
    %v2859 = vsel %vm48, %v2795, %v1119
    %v2860 = vsel %vm48, %v2796, %v1121
    %v2861 = vsel %vm48, %v2797, %v1123
    %v2862 = vsel %vm48, %v2798, %v1125
    %v2863 = vsel %vm48, %v2799, %v1127
    %v2864 = vsel %vm48, %v2800, %v1129
    %v2865 = vsel %vm48, %v2801, %v1131
    %v2866 = vsel %vm48, %v2802, %v1133
    %v2867 = vsel %vm48, %v2803, %v1135
    %v2868 = vsel %vm48, %v2804, %v1137
    %v2869 = vsel %vm48, %v2805, %v1139
    %v2870 = vsel %vm48, %v2806, %v1141
    %vm2871 = vcmask 195584
    %v2872 = vsel %vm2871, %v2807, %v1271
    %v2873 = vsel %vm2871, %v2808, %v1273
    %v2874 = vsel %vm2871, %v2809, %v1275
    %v2875 = vsel %vm2871, %v2810, %v1277
    %v2876 = vsel %vm2871, %v2811, %v1279
    %v2877 = vsel %vm2871, %v2812, %v1281
    %v2878 = vsel %vm2871, %v2813, %v1283
    %v2879 = vsel %vm2871, %v2814, %v1285
    %v2880 = vsel %vm2871, %v2815, %v1287
    %v2881 = vsel %vm2871, %v2816, %v1289
    %v2882 = vsel %vm2871, %v2817, %v1291
    %v2883 = vsel %vm2871, %v2818, %v1293
    %v2884 = vsel %vm2871, %v2819, %v1295
    %v2885 = vsel %vm2871, %v2820, %v1297
    %v2886 = vsel %vm2871, %v2821, %v1299
    %v2887 = vsel %vm2871, %v2822, %v1301
    %v2888 = vsel %vm2871, %v2823, %v1303
    %v2889 = vsel %vm2871, %v2824, %v1305
    %v2890 = vsel %vm2871, %v2825, %v1307
    %v2891 = vsel %vm2871, %v2826, %v1309
    %v2892 = vsel %vm2871, %v2827, %v1311
    %v2893 = vsel %vm2871, %v2828, %v1313
    %v2894 = vsel %vm2871, %v2829, %v1315
    %v2895 = vsel %vm2871, %v2830, %v1317
    %v2896 = vsel %vm2871, %v2831, %v1319
    %v2897 = vsel %vm2871, %v2832, %v1321
    %v2898 = vsel %vm2871, %v2833, %v1323
    %v2899 = vsel %vm2871, %v2834, %v1325
    %v2900 = vsel %vm2871, %v2835, %v1327
    %v2901 = vsel %vm2871, %v2836, %v1329
    %v2902 = vsel %vm2871, %v2837, %v1331
    %v2903 = vsel %vm2871, %v2838, %v1333
    %v2904 = vsel %vm2871, %v2839, %v1335
    %v2905 = vsel %vm2871, %v2840, %v1337
    %v2906 = vsel %vm2871, %v2841, %v1339
    %v2907 = vsel %vm2871, %v2842, %v1341
    %v2908 = vsel %vm2871, %v2843, %v1343
    %v2909 = vsel %vm2871, %v2844, %v1345
    %v2910 = vsel %vm2871, %v2845, %v1347
    %v2911 = vsel %vm2871, %v2846, %v1349
    %v2912 = vsel %vm2871, %v2847, %v1351
    %v2913 = vsel %vm2871, %v2848, %v1353
    %v2914 = vsel %vm2871, %v2849, %v1355
    %v2915 = vsel %vm2871, %v2850, %v1357
    %v2916 = vsel %vm2871, %v2851, %v1359
    %v2917 = vsel %vm2871, %v2852, %v1361
    %v2918 = vsel %vm2871, %v2853, %v1363
    %v2919 = vsel %vm2871, %v2854, %v1365
    %v2920 = vsel %vm2871, %v2855, %v1367
    %v2921 = vsel %vm2871, %v2856, %v1369
    %v2922 = vsel %vm2871, %v2857, %v1371
    %v2923 = vsel %vm2871, %v2858, %v1373
    %v2924 = vsel %vm2871, %v2859, %v1375
    %v2925 = vsel %vm2871, %v2860, %v1377
    %v2926 = vsel %vm2871, %v2861, %v1379
    %v2927 = vsel %vm2871, %v2862, %v1381
    %v2928 = vsel %vm2871, %v2863, %v1383
    %v2929 = vsel %vm2871, %v2864, %v1385
    %v2930 = vsel %vm2871, %v2865, %v1387
    %v2931 = vsel %vm2871, %v2866, %v1389
    %v2932 = vsel %vm2871, %v2867, %v1391
    %v2933 = vsel %vm2871, %v2868, %v1393
    %v2934 = vsel %vm2871, %v2869, %v1395
    %v2935 = vsel %vm2871, %v2870, %v1397
    %v2936 = vsel %vm90, %v2872, %v1527
    %v2937 = vsel %vm90, %v2873, %v1529
    %v2938 = vsel %vm90, %v2874, %v1531
    %v2939 = vsel %vm90, %v2875, %v1533
    %v2940 = vsel %vm90, %v2876, %v1535
    %v2941 = vsel %vm90, %v2877, %v1537
    %v2942 = vsel %vm90, %v2878, %v1539
    %v2943 = vsel %vm90, %v2879, %v1541
    %v2944 = vsel %vm90, %v2880, %v1543
    %v2945 = vsel %vm90, %v2881, %v1545
    %v2946 = vsel %vm90, %v2882, %v1547
    %v2947 = vsel %vm90, %v2883, %v1549
    %v2948 = vsel %vm90, %v2884, %v1551
    %v2949 = vsel %vm90, %v2885, %v1553
    %v2950 = vsel %vm90, %v2886, %v1555
    %v2951 = vsel %vm90, %v2887, %v1557
    %v2952 = vsel %vm90, %v2888, %v1559
    %v2953 = vsel %vm90, %v2889, %v1561
    %v2954 = vsel %vm90, %v2890, %v1563
    %v2955 = vsel %vm90, %v2891, %v1565
    %v2956 = vsel %vm90, %v2892, %v1567
    %v2957 = vsel %vm90, %v2893, %v1569
    %v2958 = vsel %vm90, %v2894, %v1571
    %v2959 = vsel %vm90, %v2895, %v1573
    %v2960 = vsel %vm90, %v2896, %v1575
    %v2961 = vsel %vm90, %v2897, %v1577
    %v2962 = vsel %vm90, %v2898, %v1579
    %v2963 = vsel %vm90, %v2899, %v1581
    %v2964 = vsel %vm90, %v2900, %v1583
    %v2965 = vsel %vm90, %v2901, %v1585
    %v2966 = vsel %vm90, %v2902, %v1587
    %v2967 = vsel %vm90, %v2903, %v1589
    %v2968 = vsel %vm90, %v2904, %v1591
    %v2969 = vsel %vm90, %v2905, %v1593
    %v2970 = vsel %vm90, %v2906, %v1595
    %v2971 = vsel %vm90, %v2907, %v1597
    %v2972 = vsel %vm90, %v2908, %v1599
    %v2973 = vsel %vm90, %v2909, %v1601
    %v2974 = vsel %vm90, %v2910, %v1603
    %v2975 = vsel %vm90, %v2911, %v1605
    %v2976 = vsel %vm90, %v2912, %v1607
    %v2977 = vsel %vm90, %v2913, %v1609
    %v2978 = vsel %vm90, %v2914, %v1611
    %v2979 = vsel %vm90, %v2915, %v1613
    %v2980 = vsel %vm90, %v2916, %v1615
    %v2981 = vsel %vm90, %v2917, %v1617
    %v2982 = vsel %vm90, %v2918, %v1619
    %v2983 = vsel %vm90, %v2919, %v1621
    %v2984 = vsel %vm90, %v2920, %v1623
    %v2985 = vsel %vm90, %v2921, %v1625
    %v2986 = vsel %vm90, %v2922, %v1627
    %v2987 = vsel %vm90, %v2923, %v1629
    %v2988 = vsel %vm90, %v2924, %v1631
    %v2989 = vsel %vm90, %v2925, %v1633
    %v2990 = vsel %vm90, %v2926, %v1635
    %v2991 = vsel %vm90, %v2927, %v1637
    %v2992 = vsel %vm90, %v2928, %v1639
    %v2993 = vsel %vm90, %v2929, %v1641
    %v2994 = vsel %vm90, %v2930, %v1643
    %v2995 = vsel %vm90, %v2931, %v1645
    %v2996 = vsel %vm90, %v2932, %v1647
    %v2997 = vsel %vm90, %v2933, %v1649
    %v2998 = vsel %vm90, %v2934, %v1651
    %v2999 = vsel %vm90, %v2935, %v1653
    %vm3000 = vcmask 326656
    %v3001 = vsel %vm3000, %v2936, %v1783
    %v3002 = vsel %vm3000, %v2937, %v1785
    %v3003 = vsel %vm3000, %v2938, %v1787
    %v3004 = vsel %vm3000, %v2939, %v1789
    %v3005 = vsel %vm3000, %v2940, %v1791
    %v3006 = vsel %vm3000, %v2941, %v1793
    %v3007 = vsel %vm3000, %v2942, %v1795
    %v3008 = vsel %vm3000, %v2943, %v1797
    %v3009 = vsel %vm3000, %v2944, %v1799
    %v3010 = vsel %vm3000, %v2945, %v1801
    %v3011 = vsel %vm3000, %v2946, %v1803
    %v3012 = vsel %vm3000, %v2947, %v1805
    %v3013 = vsel %vm3000, %v2948, %v1807
    %v3014 = vsel %vm3000, %v2949, %v1809
    %v3015 = vsel %vm3000, %v2950, %v1811
    %v3016 = vsel %vm3000, %v2951, %v1813
    %v3017 = vsel %vm3000, %v2952, %v1815
    %v3018 = vsel %vm3000, %v2953, %v1817
    %v3019 = vsel %vm3000, %v2954, %v1819
    %v3020 = vsel %vm3000, %v2955, %v1821
    %v3021 = vsel %vm3000, %v2956, %v1823
    %v3022 = vsel %vm3000, %v2957, %v1825
    %v3023 = vsel %vm3000, %v2958, %v1827
    %v3024 = vsel %vm3000, %v2959, %v1829
    %v3025 = vsel %vm3000, %v2960, %v1831
    %v3026 = vsel %vm3000, %v2961, %v1833
    %v3027 = vsel %vm3000, %v2962, %v1835
    %v3028 = vsel %vm3000, %v2963, %v1837
    %v3029 = vsel %vm3000, %v2964, %v1839
    %v3030 = vsel %vm3000, %v2965, %v1841
    %v3031 = vsel %vm3000, %v2966, %v1843
    %v3032 = vsel %vm3000, %v2967, %v1845
    %v3033 = vsel %vm3000, %v2968, %v1847
    %v3034 = vsel %vm3000, %v2969, %v1849
    %v3035 = vsel %vm3000, %v2970, %v1851
    %v3036 = vsel %vm3000, %v2971, %v1853
    %v3037 = vsel %vm3000, %v2972, %v1855
    %v3038 = vsel %vm3000, %v2973, %v1857
    %v3039 = vsel %vm3000, %v2974, %v1859
    %v3040 = vsel %vm3000, %v2975, %v1861
    %v3041 = vsel %vm3000, %v2976, %v1863
    %v3042 = vsel %vm3000, %v2977, %v1865
    %v3043 = vsel %vm3000, %v2978, %v1867
    %v3044 = vsel %vm3000, %v2979, %v1869
    %v3045 = vsel %vm3000, %v2980, %v1871
    %v3046 = vsel %vm3000, %v2981, %v1873
    %v3047 = vsel %vm3000, %v2982, %v1875
    %v3048 = vsel %vm3000, %v2983, %v1877
    %v3049 = vsel %vm3000, %v2984, %v1879
    %v3050 = vsel %vm3000, %v2985, %v1881
    %v3051 = vsel %vm3000, %v2986, %v1883
    %v3052 = vsel %vm3000, %v2987, %v1885
    %v3053 = vsel %vm3000, %v2988, %v1887
    %v3054 = vsel %vm3000, %v2989, %v1889
    %v3055 = vsel %vm3000, %v2990, %v1891
    %v3056 = vsel %vm3000, %v2991, %v1893
    %v3057 = vsel %vm3000, %v2992, %v1895
    %v3058 = vsel %vm3000, %v2993, %v1897
    %v3059 = vsel %vm3000, %v2994, %v1899
    %v3060 = vsel %vm3000, %v2995, %v1901
    %v3061 = vsel %vm3000, %v2996, %v1903
    %v3062 = vsel %vm3000, %v2997, %v1905
    %v3063 = vsel %vm3000, %v2998, %v1907
    %v3064 = vsel %vm3000, %v2999, %v1909
    %vm3065 = vcmask 392192
    %v3066 = vsel %vm3065, %v3001, %v2039
    %v3067 = vsel %vm3065, %v3002, %v2041
    %v3068 = vsel %vm3065, %v3003, %v2043
    %v3069 = vsel %vm3065, %v3004, %v2045
    %v3070 = vsel %vm3065, %v3005, %v2047
    %v3071 = vsel %vm3065, %v3006, %v2049
    %v3072 = vsel %vm3065, %v3007, %v2051
    %v3073 = vsel %vm3065, %v3008, %v2053
    %v3074 = vsel %vm3065, %v3009, %v2055
    %v3075 = vsel %vm3065, %v3010, %v2057
    %v3076 = vsel %vm3065, %v3011, %v2059
    %v3077 = vsel %vm3065, %v3012, %v2061
    %v3078 = vsel %vm3065, %v3013, %v2063
    %v3079 = vsel %vm3065, %v3014, %v2065
    %v3080 = vsel %vm3065, %v3015, %v2067
    %v3081 = vsel %vm3065, %v3016, %v2069
    %v3082 = vsel %vm3065, %v3017, %v2071
    %v3083 = vsel %vm3065, %v3018, %v2073
    %v3084 = vsel %vm3065, %v3019, %v2075
    %v3085 = vsel %vm3065, %v3020, %v2077
    %v3086 = vsel %vm3065, %v3021, %v2079
    %v3087 = vsel %vm3065, %v3022, %v2081
    %v3088 = vsel %vm3065, %v3023, %v2083
    %v3089 = vsel %vm3065, %v3024, %v2085
    %v3090 = vsel %vm3065, %v3025, %v2087
    %v3091 = vsel %vm3065, %v3026, %v2089
    %v3092 = vsel %vm3065, %v3027, %v2091
    %v3093 = vsel %vm3065, %v3028, %v2093
    %v3094 = vsel %vm3065, %v3029, %v2095
    %v3095 = vsel %vm3065, %v3030, %v2097
    %v3096 = vsel %vm3065, %v3031, %v2099
    %v3097 = vsel %vm3065, %v3032, %v2101
    %v3098 = vsel %vm3065, %v3033, %v2103
    %v3099 = vsel %vm3065, %v3034, %v2105
    %v3100 = vsel %vm3065, %v3035, %v2107
    %v3101 = vsel %vm3065, %v3036, %v2109
    %v3102 = vsel %vm3065, %v3037, %v2111
    %v3103 = vsel %vm3065, %v3038, %v2113
    %v3104 = vsel %vm3065, %v3039, %v2115
    %v3105 = vsel %vm3065, %v3040, %v2117
    %v3106 = vsel %vm3065, %v3041, %v2119
    %v3107 = vsel %vm3065, %v3042, %v2121
    %v3108 = vsel %vm3065, %v3043, %v2123
    %v3109 = vsel %vm3065, %v3044, %v2125
    %v3110 = vsel %vm3065, %v3045, %v2127
    %v3111 = vsel %vm3065, %v3046, %v2129
    %v3112 = vsel %vm3065, %v3047, %v2131
    %v3113 = vsel %vm3065, %v3048, %v2133
    %v3114 = vsel %vm3065, %v3049, %v2135
    %v3115 = vsel %vm3065, %v3050, %v2137
    %v3116 = vsel %vm3065, %v3051, %v2139
    %v3117 = vsel %vm3065, %v3052, %v2141
    %v3118 = vsel %vm3065, %v3053, %v2143
    %v3119 = vsel %vm3065, %v3054, %v2145
    %v3120 = vsel %vm3065, %v3055, %v2147
    %v3121 = vsel %vm3065, %v3056, %v2149
    %v3122 = vsel %vm3065, %v3057, %v2151
    %v3123 = vsel %vm3065, %v3058, %v2153
    %v3124 = vsel %vm3065, %v3059, %v2155
    %v3125 = vsel %vm3065, %v3060, %v2157
    %v3126 = vsel %vm3065, %v3061, %v2159
    %v3127 = vsel %vm3065, %v3062, %v2161
    %v3128 = vsel %vm3065, %v3063, %v2163
    %v3129 = vsel %vm3065, %v3064, %v2165
    %vm3130 = vcmask 457728
    %v3131 = vsel %vm3130, %v3066, %v2295
    %v3132 = vsel %vm3130, %v3067, %v2297
    %v3133 = vsel %vm3130, %v3068, %v2299
    %v3134 = vsel %vm3130, %v3069, %v2301
    %v3135 = vsel %vm3130, %v3070, %v2303
    %v3136 = vsel %vm3130, %v3071, %v2305
    %v3137 = vsel %vm3130, %v3072, %v2307
    %v3138 = vsel %vm3130, %v3073, %v2309
    %v3139 = vsel %vm3130, %v3074, %v2311
    %v3140 = vsel %vm3130, %v3075, %v2313
    %v3141 = vsel %vm3130, %v3076, %v2315
    %v3142 = vsel %vm3130, %v3077, %v2317
    %v3143 = vsel %vm3130, %v3078, %v2319
    %v3144 = vsel %vm3130, %v3079, %v2321
    %v3145 = vsel %vm3130, %v3080, %v2323
    %v3146 = vsel %vm3130, %v3081, %v2325
    %v3147 = vsel %vm3130, %v3082, %v2327
    %v3148 = vsel %vm3130, %v3083, %v2329
    %v3149 = vsel %vm3130, %v3084, %v2331
    %v3150 = vsel %vm3130, %v3085, %v2333
    %v3151 = vsel %vm3130, %v3086, %v2335
    %v3152 = vsel %vm3130, %v3087, %v2337
    %v3153 = vsel %vm3130, %v3088, %v2339
    %v3154 = vsel %vm3130, %v3089, %v2341
    %v3155 = vsel %vm3130, %v3090, %v2343
    %v3156 = vsel %vm3130, %v3091, %v2345
    %v3157 = vsel %vm3130, %v3092, %v2347
    %v3158 = vsel %vm3130, %v3093, %v2349
    %v3159 = vsel %vm3130, %v3094, %v2351
    %v3160 = vsel %vm3130, %v3095, %v2353
    %v3161 = vsel %vm3130, %v3096, %v2355
    %v3162 = vsel %vm3130, %v3097, %v2357
    %v3163 = vsel %vm3130, %v3098, %v2359
    %v3164 = vsel %vm3130, %v3099, %v2361
    %v3165 = vsel %vm3130, %v3100, %v2363
    %v3166 = vsel %vm3130, %v3101, %v2365
    %v3167 = vsel %vm3130, %v3102, %v2367
    %v3168 = vsel %vm3130, %v3103, %v2369
    %v3169 = vsel %vm3130, %v3104, %v2371
    %v3170 = vsel %vm3130, %v3105, %v2373
    %v3171 = vsel %vm3130, %v3106, %v2375
    %v3172 = vsel %vm3130, %v3107, %v2377
    %v3173 = vsel %vm3130, %v3108, %v2379
    %v3174 = vsel %vm3130, %v3109, %v2381
    %v3175 = vsel %vm3130, %v3110, %v2383
    %v3176 = vsel %vm3130, %v3111, %v2385
    %v3177 = vsel %vm3130, %v3112, %v2387
    %v3178 = vsel %vm3130, %v3113, %v2389
    %v3179 = vsel %vm3130, %v3114, %v2391
    %v3180 = vsel %vm3130, %v3115, %v2393
    %v3181 = vsel %vm3130, %v3116, %v2395
    %v3182 = vsel %vm3130, %v3117, %v2397
    %v3183 = vsel %vm3130, %v3118, %v2399
    %v3184 = vsel %vm3130, %v3119, %v2401
    %v3185 = vsel %vm3130, %v3120, %v2403
    %v3186 = vsel %vm3130, %v3121, %v2405
    %v3187 = vsel %vm3130, %v3122, %v2407
    %v3188 = vsel %vm3130, %v3123, %v2409
    %v3189 = vsel %vm3130, %v3124, %v2411
    %v3190 = vsel %vm3130, %v3125, %v2413
    %v3191 = vsel %vm3130, %v3126, %v2415
    %v3192 = vsel %vm3130, %v3127, %v2417
    %v3193 = vsel %vm3130, %v3128, %v2419
    %v3194 = vsel %vm3130, %v3129, %v2421
    %vm3195 = vcmask 523264
    %v3196 = vsel %vm3195, %v3131, %v2551
    %v3197 = vsel %vm3195, %v3132, %v2553
    %v3198 = vsel %vm3195, %v3133, %v2555
    %v3199 = vsel %vm3195, %v3134, %v2557
    %v3200 = vsel %vm3195, %v3135, %v2559
    %v3201 = vsel %vm3195, %v3136, %v2561
    %v3202 = vsel %vm3195, %v3137, %v2563
    %v3203 = vsel %vm3195, %v3138, %v2565
    %v3204 = vsel %vm3195, %v3139, %v2567
    %v3205 = vsel %vm3195, %v3140, %v2569
    %v3206 = vsel %vm3195, %v3141, %v2571
    %v3207 = vsel %vm3195, %v3142, %v2573
    %v3208 = vsel %vm3195, %v3143, %v2575
    %v3209 = vsel %vm3195, %v3144, %v2577
    %v3210 = vsel %vm3195, %v3145, %v2579
    %v3211 = vsel %vm3195, %v3146, %v2581
    %v3212 = vsel %vm3195, %v3147, %v2583
    %v3213 = vsel %vm3195, %v3148, %v2585
    %v3214 = vsel %vm3195, %v3149, %v2587
    %v3215 = vsel %vm3195, %v3150, %v2589
    %v3216 = vsel %vm3195, %v3151, %v2591
    %v3217 = vsel %vm3195, %v3152, %v2593
    %v3218 = vsel %vm3195, %v3153, %v2595
    %v3219 = vsel %vm3195, %v3154, %v2597
    %v3220 = vsel %vm3195, %v3155, %v2599
    %v3221 = vsel %vm3195, %v3156, %v2601
    %v3222 = vsel %vm3195, %v3157, %v2603
    %v3223 = vsel %vm3195, %v3158, %v2605
    %v3224 = vsel %vm3195, %v3159, %v2607
    %v3225 = vsel %vm3195, %v3160, %v2609
    %v3226 = vsel %vm3195, %v3161, %v2611
    %v3227 = vsel %vm3195, %v3162, %v2613
    %v3228 = vsel %vm3195, %v3163, %v2615
    %v3229 = vsel %vm3195, %v3164, %v2617
    %v3230 = vsel %vm3195, %v3165, %v2619
    %v3231 = vsel %vm3195, %v3166, %v2621
    %v3232 = vsel %vm3195, %v3167, %v2623
    %v3233 = vsel %vm3195, %v3168, %v2625
    %v3234 = vsel %vm3195, %v3169, %v2627
    %v3235 = vsel %vm3195, %v3170, %v2629
    %v3236 = vsel %vm3195, %v3171, %v2631
    %v3237 = vsel %vm3195, %v3172, %v2633
    %v3238 = vsel %vm3195, %v3173, %v2635
    %v3239 = vsel %vm3195, %v3174, %v2637
    %v3240 = vsel %vm3195, %v3175, %v2639
    %v3241 = vsel %vm3195, %v3176, %v2641
    %v3242 = vsel %vm3195, %v3177, %v2643
    %v3243 = vsel %vm3195, %v3178, %v2645
    %v3244 = vsel %vm3195, %v3179, %v2647
    %v3245 = vsel %vm3195, %v3180, %v2649
    %v3246 = vsel %vm3195, %v3181, %v2651
    %v3247 = vsel %vm3195, %v3182, %v2653
    %v3248 = vsel %vm3195, %v3183, %v2655
    %v3249 = vsel %vm3195, %v3184, %v2657
    %v3250 = vsel %vm3195, %v3185, %v2659
    %v3251 = vsel %vm3195, %v3186, %v2661
    %v3252 = vsel %vm3195, %v3187, %v2663
    %v3253 = vsel %vm3195, %v3188, %v2665
    %v3254 = vsel %vm3195, %v3189, %v2667
    %v3255 = vsel %vm3195, %v3190, %v2669
    %v3256 = vsel %vm3195, %v3191, %v2671
    %v3257 = vsel %vm3195, %v3192, %v2673
    %v3258 = vsel %vm3195, %v3193, %v2675
    %v3259 = vsel %vm3195, %v3194, %v2677
    %v3260 = vld [vmem:[%s1] sm:$0xff]
    %v3261 = vld [vmem:[%s1 + $0x8] sm:$0xff]
    %v3262 = vld [vmem:[%s1 + $0x10] sm:$0xff]
    %v3263 = vld [vmem:[%s1 + $0x18] sm:$0xff]
    %v3264 = vld [vmem:[%s1 + $0x20] sm:$0xff]
    %v3265 = vld [vmem:[%s1 + $0x28] sm:$0xff]
    %v3266 = vld [vmem:[%s1 + $0x30] sm:$0xff]
    %v3267 = vld [vmem:[%s1 + $0x38] sm:$0xff]
    %v3268 = vld [vmem:[%s1 + $0x40] sm:$0xff]
    %v3269 = vld [vmem:[%s2] sm:$0x1]
    %v3271 = vlaneseq
    %v3272 = vshrl.u32 %v3271, 7
    %v3273 = vsub.s32 0, %v3272
    %v3274 = vrot.slane %v3269, %v3273
    %vm3276 = vcmask 588800
    %v3278 = vsel %vm3276, %v3196, 0
    %v3281 = vsel %vm3276, %v3197, 0
    %v3284 = vsel %vm3276, %v3198, 0
    %v3287 = vsel %vm3276, %v3199, 0
    %v3290 = vsel %vm3276, %v3200, 0
    %v3293 = vsel %vm3276, %v3201, 0
    %v3296 = vsel %vm3276, %v3202, 0
    %v3299 = vsel %vm3276, %v3203, 0
    %v3302 = vsel %vm3276, %v3204, 0
    %v3305 = vsel %vm3276, %v3205, 0
    %v3308 = vsel %vm3276, %v3206, 0
    %v3311 = vsel %vm3276, %v3207, 0
    %v3314 = vsel %vm3276, %v3208, 0
    %v3317 = vsel %vm3276, %v3209, 0
    %v3320 = vsel %vm3276, %v3210, 0
    %v3323 = vsel %vm3276, %v3211, 0
    %v3326 = vsel %vm3276, %v3212, 0
    %v3329 = vsel %vm3276, %v3213, 0
    %v3332 = vsel %vm3276, %v3214, 0
    %v3335 = vsel %vm3276, %v3215, 0
    %v3338 = vsel %vm3276, %v3216, 0
    %v3341 = vsel %vm3276, %v3217, 0
    %v3344 = vsel %vm3276, %v3218, 0
    %v3347 = vsel %vm3276, %v3219, 0
    %v3350 = vsel %vm3276, %v3220, 0
    %v3353 = vsel %vm3276, %v3221, 0
    %v3356 = vsel %vm3276, %v3222, 0
    %v3359 = vsel %vm3276, %v3223, 0
    %v3362 = vsel %vm3276, %v3224, 0
    %v3365 = vsel %vm3276, %v3225, 0
    %v3368 = vsel %vm3276, %v3226, 0
    %v3371 = vsel %vm3276, %v3227, 0
    %v3374 = vsel %vm3276, %v3228, 0
    %v3377 = vsel %vm3276, %v3229, 0
    %v3380 = vsel %vm3276, %v3230, 0
    %v3383 = vsel %vm3276, %v3231, 0
    %v3386 = vsel %vm3276, %v3232, 0
    %v3389 = vsel %vm3276, %v3233, 0
    %v3392 = vsel %vm3276, %v3234, 0
    %v3395 = vsel %vm3276, %v3235, 0
    %v3398 = vsel %vm3276, %v3236, 0
    %v3401 = vsel %vm3276, %v3237, 0
    %v3404 = vsel %vm3276, %v3238, 0
    %v3407 = vsel %vm3276, %v3239, 0
    %v3410 = vsel %vm3276, %v3240, 0
    %v3413 = vsel %vm3276, %v3241, 0
    %v3416 = vsel %vm3276, %v3242, 0
    %v3419 = vsel %vm3276, %v3243, 0
    %v3422 = vsel %vm3276, %v3244, 0
    %v3425 = vsel %vm3276, %v3245, 0
    %v3428 = vsel %vm3276, %v3246, 0
    %v3431 = vsel %vm3276, %v3247, 0
    %v3434 = vsel %vm3276, %v3248, 0
    %v3437 = vsel %vm3276, %v3249, 0
    %v3440 = vsel %vm3276, %v3250, 0
    %v3443 = vsel %vm3276, %v3251, 0
    %v3446 = vsel %vm3276, %v3252, 0
    %v3449 = vsel %vm3276, %v3253, 0
    %v3452 = vsel %vm3276, %v3254, 0
    %v3455 = vsel %vm3276, %v3255, 0
    %v3458 = vsel %vm3276, %v3256, 0
    %v3461 = vsel %vm3276, %v3257, 0
    %v3464 = vsel %vm3276, %v3258, 0
    %v3467 = vsel %vm3276, %v3259, 0
    %3469 = vmatprep.subr.mxu0 0.0
    %3470 = vmatpush1.msra.mxu0 0.0
    %3471 = vmatprep.subr.mxu0 0.0
    %3472 = vmatpush1.msra.mxu0 0.0
    %3473 = vmatprep.subr.mxu0 0.0
    %3474 = vmatpush1.msra.mxu0 0.0
    %3475 = vmatprep.subr.mxu0 0.0
    %3476 = vmatpush1.msra.mxu0 0.0
    %3477 = vmatprep.subr.mxu0 0.0
    %3478 = vmatpush1.msra.mxu0 0.0
    %3479 = vmatprep.subr.mxu0 0.0
    %3480 = vmatpush1.msra.mxu0 0.0
    %3481 = vmatprep.subr.mxu0 0.0
    %3482 = vmatpush1.msra.mxu0 0.0
    %3483 = vmatprep.subr.mxu0 0.0
    %3484 = vmatpush1.msra.mxu0 %v3268
    %3485 = vmatprep.subr.mxu0 0.0
    %3486 = vmatpush1.msra.mxu0 %v3267
    %3487 = vmatprep.subr.mxu0 0.0
    %3488 = vmatpush1.msra.mxu0 %v3266
    %3489 = vmatprep.subr.mxu0 0.0
    %3490 = vmatpush1.msra.mxu0 %v3265
    %3491 = vmatprep.subr.mxu0 0.0
    %3492 = vmatpush1.msra.mxu0 %v3264
    %3493 = vmatprep.subr.mxu0 0.0
    %3494 = vmatpush1.msra.mxu0 %v3263
    %3495 = vmatprep.subr.mxu0 0.0
    %3496 = vmatpush1.msra.mxu0 %v3262
    %3497 = vmatprep.subr.mxu0 0.0
    %3498 = vmatpush1.msra.mxu0 %v3261
    %3499 = vmatprep.subr.mxu0 0.0
    %3500 = vmatpush1.msra.mxu0 %v3260
    %3501 = vmatprep.subr.mxu0 0.0
    %3502 = vmatpush2.msra.mxu0 0.0
    %3503 = vmatprep.subr.mxu0 0.0
    %3504 = vmatpush2.msra.mxu0 0.0
    %3505 = vmatprep.subr.mxu0 0.0
    %3506 = vmatpush2.msra.mxu0 0.0
    %3507 = vmatprep.subr.mxu0 0.0
    %3508 = vmatpush2.msra.mxu0 0.0
    %3509 = vmatprep.subr.mxu0 0.0
    %3510 = vmatpush2.msra.mxu0 0.0
    %3511 = vmatprep.subr.mxu0 0.0
    %3512 = vmatpush2.msra.mxu0 0.0
    %3513 = vmatprep.subr.mxu0 0.0
    %3514 = vmatpush2.msra.mxu0 0.0
    %3515 = vmatprep.subr.mxu0 0.0
    %3516 = vmatpush2.msra.mxu0 0.0
    %3517 = vmatprep.subr.mxu0 0.0
    %3518 = vmatpush2.msra.mxu0 0.0
    %3519 = vmatprep.subr.mxu0 0.0
    %3520 = vmatpush2.msra.mxu0 0.0
    %3521 = vmatprep.subr.mxu0 0.0
    %3522 = vmatpush2.msra.mxu0 0.0
    %3523 = vmatprep.subr.mxu0 0.0
    %3524 = vmatpush2.msra.mxu0 0.0
    %3525 = vmatprep.subr.mxu0 0.0
    %3526 = vmatpush2.msra.mxu0 0.0
    %3527 = vmatprep.subr.mxu0 0.0
    %3528 = vmatpush2.msra.mxu0 0.0
    %3529 = vmatprep.subr.mxu0 0.0
    %3530 = vmatpush2.msra.mxu0 0.0
    %3531 = vmatprep.subr.mxu0 0.0
    %3532 = vmatpush2.msra.mxu0 0.0
    %3533 = vmatprep.mubr.f32.mxu0 0.0
    %3534 = vmatmul.mubr.f32.gmra.mxu0 %v3278
    %v3535 = vpop.f32.mrf.mxu0
    %v3536 = vadd.f32 %v3274, %v3535
    %v3537 = vpop.f32.mrf.mxu0
    %3538 = vmatprep.mubr.f32.mxu0 0.0
    %3539 = vmatmul.mubr.f32.gmra.mxu0 %v3281
    %v3540 = vpop.f32.mrf.mxu0
    %v3541 = vadd.f32 %v3274, %v3540
    %v3542 = vpop.f32.mrf.mxu0
    %3543 = vmatprep.mubr.f32.mxu0 0.0
    %3544 = vmatmul.mubr.f32.gmra.mxu0 %v3284
    %v3545 = vpop.f32.mrf.mxu0
    %v3546 = vadd.f32 %v3274, %v3545
    %v3547 = vpop.f32.mrf.mxu0
    %3548 = vmatprep.mubr.f32.mxu0 0.0
    %3549 = vmatmul.mubr.f32.gmra.mxu0 %v3287
    %v3550 = vpop.f32.mrf.mxu0
    %v3551 = vadd.f32 %v3274, %v3550
    %v3552 = vpop.f32.mrf.mxu0
    %3553 = vmatprep.mubr.f32.mxu0 0.0
    %3554 = vmatmul.mubr.f32.gmra.mxu0 %v3290
    %v3555 = vpop.f32.mrf.mxu0
    %v3556 = vadd.f32 %v3274, %v3555
    %v3557 = vpop.f32.mrf.mxu0
    %3558 = vmatprep.mubr.f32.mxu0 0.0
    %3559 = vmatmul.mubr.f32.gmra.mxu0 %v3293
    %v3560 = vpop.f32.mrf.mxu0
    %v3561 = vadd.f32 %v3274, %v3560
    %v3562 = vpop.f32.mrf.mxu0
    %3563 = vmatprep.mubr.f32.mxu0 0.0
    %3564 = vmatmul.mubr.f32.gmra.mxu0 %v3296
    %v3565 = vpop.f32.mrf.mxu0
    %v3566 = vadd.f32 %v3274, %v3565
    %v3567 = vpop.f32.mrf.mxu0
    %3568 = vmatprep.mubr.f32.mxu0 0.0
    %3569 = vmatmul.mubr.f32.gmra.mxu0 %v3299
    %v3570 = vpop.f32.mrf.mxu0
    %v3571 = vadd.f32 %v3274, %v3570
    %v3572 = vpop.f32.mrf.mxu0
    %3573 = vmatprep.mubr.f32.mxu0 0.0
    %3574 = vmatmul.mubr.f32.gmra.mxu0 %v3302
    %v3575 = vpop.f32.mrf.mxu0
    %v3576 = vadd.f32 %v3274, %v3575
    %v3577 = vpop.f32.mrf.mxu0
    %3578 = vmatprep.mubr.f32.mxu0 0.0
    %3579 = vmatmul.mubr.f32.gmra.mxu0 %v3305
    %v3580 = vpop.f32.mrf.mxu0
    %v3581 = vadd.f32 %v3274, %v3580
    %v3582 = vpop.f32.mrf.mxu0
    %3583 = vmatprep.mubr.f32.mxu0 0.0
    %3584 = vmatmul.mubr.f32.gmra.mxu0 %v3308
    %v3585 = vpop.f32.mrf.mxu0
    %v3586 = vadd.f32 %v3274, %v3585
    %v3587 = vpop.f32.mrf.mxu0
    %3588 = vmatprep.mubr.f32.mxu0 0.0
    %3589 = vmatmul.mubr.f32.gmra.mxu0 %v3311
    %v3590 = vpop.f32.mrf.mxu0
    %v3591 = vadd.f32 %v3274, %v3590
    %v3592 = vpop.f32.mrf.mxu0
    %3593 = vmatprep.mubr.f32.mxu0 0.0
    %3594 = vmatmul.mubr.f32.gmra.mxu0 %v3314
    %v3595 = vpop.f32.mrf.mxu0
    %v3596 = vadd.f32 %v3274, %v3595
    %v3597 = vpop.f32.mrf.mxu0
    %3598 = vmatprep.mubr.f32.mxu0 0.0
    %3599 = vmatmul.mubr.f32.gmra.mxu0 %v3317
    %v3600 = vpop.f32.mrf.mxu0
    %v3601 = vadd.f32 %v3274, %v3600
    %v3602 = vpop.f32.mrf.mxu0
    %3603 = vmatprep.mubr.f32.mxu0 0.0
    %3604 = vmatmul.mubr.f32.gmra.mxu0 %v3320
    %v3605 = vpop.f32.mrf.mxu0
    %v3606 = vadd.f32 %v3274, %v3605
    %v3607 = vpop.f32.mrf.mxu0
    %3608 = vmatprep.mubr.f32.mxu0 0.0
    %3609 = vmatmul.mubr.f32.gmra.mxu0 %v3323
    %v3610 = vpop.f32.mrf.mxu0
    %v3611 = vadd.f32 %v3274, %v3610
    %v3612 = vpop.f32.mrf.mxu0
    %3613 = vmatprep.mubr.f32.mxu0 0.0
    %3614 = vmatmul.mubr.f32.gmra.mxu0 %v3326
    %v3615 = vpop.f32.mrf.mxu0
    %v3616 = vadd.f32 %v3274, %v3615
    %v3617 = vpop.f32.mrf.mxu0
    %3618 = vmatprep.mubr.f32.mxu0 0.0
    %3619 = vmatmul.mubr.f32.gmra.mxu0 %v3329
    %v3620 = vpop.f32.mrf.mxu0
    %v3621 = vadd.f32 %v3274, %v3620
    %v3622 = vpop.f32.mrf.mxu0
    %3623 = vmatprep.mubr.f32.mxu0 0.0
    %3624 = vmatmul.mubr.f32.gmra.mxu0 %v3332
    %v3625 = vpop.f32.mrf.mxu0
    %v3626 = vadd.f32 %v3274, %v3625
    %v3627 = vpop.f32.mrf.mxu0
    %3628 = vmatprep.mubr.f32.mxu0 0.0
    %3629 = vmatmul.mubr.f32.gmra.mxu0 %v3335
    %v3630 = vpop.f32.mrf.mxu0
    %v3631 = vadd.f32 %v3274, %v3630
    %v3632 = vpop.f32.mrf.mxu0
    %3633 = vmatprep.mubr.f32.mxu0 0.0
    %3634 = vmatmul.mubr.f32.gmra.mxu0 %v3338
    %v3635 = vpop.f32.mrf.mxu0
    %v3636 = vadd.f32 %v3274, %v3635
    %v3637 = vpop.f32.mrf.mxu0
    %3638 = vmatprep.mubr.f32.mxu0 0.0
    %3639 = vmatmul.mubr.f32.gmra.mxu0 %v3341
    %v3640 = vpop.f32.mrf.mxu0
    %v3641 = vadd.f32 %v3274, %v3640
    %v3642 = vpop.f32.mrf.mxu0
    %3643 = vmatprep.mubr.f32.mxu0 0.0
    %3644 = vmatmul.mubr.f32.gmra.mxu0 %v3344
    %v3645 = vpop.f32.mrf.mxu0
    %v3646 = vadd.f32 %v3274, %v3645
    %v3647 = vpop.f32.mrf.mxu0
    %3648 = vmatprep.mubr.f32.mxu0 0.0
    %3649 = vmatmul.mubr.f32.gmra.mxu0 %v3347
    %v3650 = vpop.f32.mrf.mxu0
    %v3651 = vadd.f32 %v3274, %v3650
    %v3652 = vpop.f32.mrf.mxu0
    %3653 = vmatprep.mubr.f32.mxu0 0.0
    %3654 = vmatmul.mubr.f32.gmra.mxu0 %v3350
    %v3655 = vpop.f32.mrf.mxu0
    %v3656 = vadd.f32 %v3274, %v3655
    %v3657 = vpop.f32.mrf.mxu0
    %3658 = vmatprep.mubr.f32.mxu0 0.0
    %3659 = vmatmul.mubr.f32.gmra.mxu0 %v3353
    %v3660 = vpop.f32.mrf.mxu0
    %v3661 = vadd.f32 %v3274, %v3660
    %v3662 = vpop.f32.mrf.mxu0
    %3663 = vmatprep.mubr.f32.mxu0 0.0
    %3664 = vmatmul.mubr.f32.gmra.mxu0 %v3356
    %v3665 = vpop.f32.mrf.mxu0
    %v3666 = vadd.f32 %v3274, %v3665
    %v3667 = vpop.f32.mrf.mxu0
    %3668 = vmatprep.mubr.f32.mxu0 0.0
    %3669 = vmatmul.mubr.f32.gmra.mxu0 %v3359
    %v3670 = vpop.f32.mrf.mxu0
    %v3671 = vadd.f32 %v3274, %v3670
    %v3672 = vpop.f32.mrf.mxu0
    %3673 = vmatprep.mubr.f32.mxu0 0.0
    %3674 = vmatmul.mubr.f32.gmra.mxu0 %v3362
    %v3675 = vpop.f32.mrf.mxu0
    %v3676 = vadd.f32 %v3274, %v3675
    %v3677 = vpop.f32.mrf.mxu0
    %3678 = vmatprep.mubr.f32.mxu0 0.0
    %3679 = vmatmul.mubr.f32.gmra.mxu0 %v3365
    %v3680 = vpop.f32.mrf.mxu0
    %v3681 = vadd.f32 %v3274, %v3680
    %v3682 = vpop.f32.mrf.mxu0
    %3683 = vmatprep.mubr.f32.mxu0 0.0
    %3684 = vmatmul.mubr.f32.gmra.mxu0 %v3368
    %v3685 = vpop.f32.mrf.mxu0
    %v3686 = vadd.f32 %v3274, %v3685
    %v3687 = vpop.f32.mrf.mxu0
    %3688 = vmatprep.mubr.f32.mxu0 0.0
    %3689 = vmatmul.mubr.f32.gmra.mxu0 %v3371
    %v3690 = vpop.f32.mrf.mxu0
    %v3691 = vadd.f32 %v3274, %v3690
    %v3692 = vpop.f32.mrf.mxu0
    %3693 = vmatprep.mubr.f32.mxu0 0.0
    %3694 = vmatmul.mubr.f32.gmra.mxu0 %v3374
    %v3695 = vpop.f32.mrf.mxu0
    %v3696 = vadd.f32 %v3274, %v3695
    %v3697 = vpop.f32.mrf.mxu0
    %3698 = vmatprep.mubr.f32.mxu0 0.0
    %3699 = vmatmul.mubr.f32.gmra.mxu0 %v3377
    %v3700 = vpop.f32.mrf.mxu0
    %v3701 = vadd.f32 %v3274, %v3700
    %v3702 = vpop.f32.mrf.mxu0
    %3703 = vmatprep.mubr.f32.mxu0 0.0
    %3704 = vmatmul.mubr.f32.gmra.mxu0 %v3380
    %v3705 = vpop.f32.mrf.mxu0
    %v3706 = vadd.f32 %v3274, %v3705
    %v3707 = vpop.f32.mrf.mxu0
    %3708 = vmatprep.mubr.f32.mxu0 0.0
    %3709 = vmatmul.mubr.f32.gmra.mxu0 %v3383
    %v3710 = vpop.f32.mrf.mxu0
    %v3711 = vadd.f32 %v3274, %v3710
    %v3712 = vpop.f32.mrf.mxu0
    %3713 = vmatprep.mubr.f32.mxu0 0.0
    %3714 = vmatmul.mubr.f32.gmra.mxu0 %v3386
    %v3715 = vpop.f32.mrf.mxu0
    %v3716 = vadd.f32 %v3274, %v3715
    %v3717 = vpop.f32.mrf.mxu0
    %3718 = vmatprep.mubr.f32.mxu0 0.0
    %3719 = vmatmul.mubr.f32.gmra.mxu0 %v3389
    %v3720 = vpop.f32.mrf.mxu0
    %v3721 = vadd.f32 %v3274, %v3720
    %v3722 = vpop.f32.mrf.mxu0
    %3723 = vmatprep.mubr.f32.mxu0 0.0
    %3724 = vmatmul.mubr.f32.gmra.mxu0 %v3392
    %v3725 = vpop.f32.mrf.mxu0
    %v3726 = vadd.f32 %v3274, %v3725
    %v3727 = vpop.f32.mrf.mxu0
    %3728 = vmatprep.mubr.f32.mxu0 0.0
    %3729 = vmatmul.mubr.f32.gmra.mxu0 %v3395
    %v3730 = vpop.f32.mrf.mxu0
    %v3731 = vadd.f32 %v3274, %v3730
    %v3732 = vpop.f32.mrf.mxu0
    %3733 = vmatprep.mubr.f32.mxu0 0.0
    %3734 = vmatmul.mubr.f32.gmra.mxu0 %v3398
    %v3735 = vpop.f32.mrf.mxu0
    %v3736 = vadd.f32 %v3274, %v3735
    %v3737 = vpop.f32.mrf.mxu0
    %3738 = vmatprep.mubr.f32.mxu0 0.0
    %3739 = vmatmul.mubr.f32.gmra.mxu0 %v3401
    %v3740 = vpop.f32.mrf.mxu0
    %v3741 = vadd.f32 %v3274, %v3740
    %v3742 = vpop.f32.mrf.mxu0
    %3743 = vmatprep.mubr.f32.mxu0 0.0
    %3744 = vmatmul.mubr.f32.gmra.mxu0 %v3404
    %v3745 = vpop.f32.mrf.mxu0
    %v3746 = vadd.f32 %v3274, %v3745
    %v3747 = vpop.f32.mrf.mxu0
    %3748 = vmatprep.mubr.f32.mxu0 0.0
    %3749 = vmatmul.mubr.f32.gmra.mxu0 %v3407
    %v3750 = vpop.f32.mrf.mxu0
    %v3751 = vadd.f32 %v3274, %v3750
    %v3752 = vpop.f32.mrf.mxu0
    %3753 = vmatprep.mubr.f32.mxu0 0.0
    %3754 = vmatmul.mubr.f32.gmra.mxu0 %v3410
    %v3755 = vpop.f32.mrf.mxu0
    %v3756 = vadd.f32 %v3274, %v3755
    %v3757 = vpop.f32.mrf.mxu0
    %3758 = vmatprep.mubr.f32.mxu0 0.0
    %3759 = vmatmul.mubr.f32.gmra.mxu0 %v3413
    %v3760 = vpop.f32.mrf.mxu0
    %v3761 = vadd.f32 %v3274, %v3760
    %v3762 = vpop.f32.mrf.mxu0
    %3763 = vmatprep.mubr.f32.mxu0 0.0
    %3764 = vmatmul.mubr.f32.gmra.mxu0 %v3416
    %v3765 = vpop.f32.mrf.mxu0
    %v3766 = vadd.f32 %v3274, %v3765
    %v3767 = vpop.f32.mrf.mxu0
    %3768 = vmatprep.mubr.f32.mxu0 0.0
    %3769 = vmatmul.mubr.f32.gmra.mxu0 %v3419
    %v3770 = vpop.f32.mrf.mxu0
    %v3771 = vadd.f32 %v3274, %v3770
    %v3772 = vpop.f32.mrf.mxu0
    %3773 = vmatprep.mubr.f32.mxu0 0.0
    %3774 = vmatmul.mubr.f32.gmra.mxu0 %v3422
    %v3775 = vpop.f32.mrf.mxu0
    %v3776 = vadd.f32 %v3274, %v3775
    %v3777 = vpop.f32.mrf.mxu0
    %3778 = vmatprep.mubr.f32.mxu0 0.0
    %3779 = vmatmul.mubr.f32.gmra.mxu0 %v3425
    %v3780 = vpop.f32.mrf.mxu0
    %v3781 = vadd.f32 %v3274, %v3780
    %v3782 = vpop.f32.mrf.mxu0
    %3783 = vmatprep.mubr.f32.mxu0 0.0
    %3784 = vmatmul.mubr.f32.gmra.mxu0 %v3428
    %v3785 = vpop.f32.mrf.mxu0
    %v3786 = vadd.f32 %v3274, %v3785
    %v3787 = vpop.f32.mrf.mxu0
    %3788 = vmatprep.mubr.f32.mxu0 0.0
    %3789 = vmatmul.mubr.f32.gmra.mxu0 %v3431
    %v3790 = vpop.f32.mrf.mxu0
    %v3791 = vadd.f32 %v3274, %v3790
    %v3792 = vpop.f32.mrf.mxu0
    %3793 = vmatprep.mubr.f32.mxu0 0.0
    %3794 = vmatmul.mubr.f32.gmra.mxu0 %v3434
    %v3795 = vpop.f32.mrf.mxu0
    %v3796 = vadd.f32 %v3274, %v3795
    %v3797 = vpop.f32.mrf.mxu0
    %3798 = vmatprep.mubr.f32.mxu0 0.0
    %3799 = vmatmul.mubr.f32.gmra.mxu0 %v3437
    %v3800 = vpop.f32.mrf.mxu0
    %v3801 = vadd.f32 %v3274, %v3800
    %v3802 = vpop.f32.mrf.mxu0
    %3803 = vmatprep.mubr.f32.mxu0 0.0
    %3804 = vmatmul.mubr.f32.gmra.mxu0 %v3440
    %v3805 = vpop.f32.mrf.mxu0
    %v3806 = vadd.f32 %v3274, %v3805
    %v3807 = vpop.f32.mrf.mxu0
    %3808 = vmatprep.mubr.f32.mxu0 0.0
    %3809 = vmatmul.mubr.f32.gmra.mxu0 %v3443
    %v3810 = vpop.f32.mrf.mxu0
    %v3811 = vadd.f32 %v3274, %v3810
    %v3812 = vpop.f32.mrf.mxu0
    %3813 = vmatprep.mubr.f32.mxu0 0.0
    %3814 = vmatmul.mubr.f32.gmra.mxu0 %v3446
    %v3815 = vpop.f32.mrf.mxu0
    %v3816 = vadd.f32 %v3274, %v3815
    %v3817 = vpop.f32.mrf.mxu0
    %3818 = vmatprep.mubr.f32.mxu0 0.0
    %3819 = vmatmul.mubr.f32.gmra.mxu0 %v3449
    %v3820 = vpop.f32.mrf.mxu0
    %v3821 = vadd.f32 %v3274, %v3820
    %v3822 = vpop.f32.mrf.mxu0
    %3823 = vmatprep.mubr.f32.mxu0 0.0
    %3824 = vmatmul.mubr.f32.gmra.mxu0 %v3452
    %v3825 = vpop.f32.mrf.mxu0
    %v3826 = vadd.f32 %v3274, %v3825
    %v3827 = vpop.f32.mrf.mxu0
    %3828 = vmatprep.mubr.f32.mxu0 0.0
    %3829 = vmatmul.mubr.f32.gmra.mxu0 %v3455
    %v3830 = vpop.f32.mrf.mxu0
    %v3831 = vadd.f32 %v3274, %v3830
    %v3832 = vpop.f32.mrf.mxu0
    %3833 = vmatprep.mubr.f32.mxu0 0.0
    %3834 = vmatmul.mubr.f32.gmra.mxu0 %v3458
    %v3835 = vpop.f32.mrf.mxu0
    %v3836 = vadd.f32 %v3274, %v3835
    %v3837 = vpop.f32.mrf.mxu0
    %3838 = vmatprep.mubr.f32.mxu0 0.0
    %3839 = vmatmul.mubr.f32.gmra.mxu0 %v3461
    %v3840 = vpop.f32.mrf.mxu0
    %v3841 = vadd.f32 %v3274, %v3840
    %v3842 = vpop.f32.mrf.mxu0
    %3843 = vmatprep.mubr.f32.mxu0 0.0
    %3844 = vmatmul.mubr.f32.gmra.mxu0 %v3464
    %v3845 = vpop.f32.mrf.mxu0
    %v3846 = vadd.f32 %v3274, %v3845
    %v3847 = vpop.f32.mrf.mxu0
    %3848 = vmatprep.mubr.f32.mxu0 0.0
    %3849 = vmatmul.mubr.f32.gmra.mxu0 %v3467
    %v3850 = vpop.f32.mrf.mxu0
    %v3851 = vadd.f32 %v3274, %v3850
    %v3852 = vpop.f32.mrf.mxu0
    %3853 = vdwg.mxu0
    %v3854 = vmax.f32 %v3536, 0.0
    %v3855 = vmax.f32 %v3541, 0.0
    %v3856 = vmax.f32 %v3546, 0.0
    %v3857 = vmax.f32 %v3551, 0.0
    %v3858 = vmax.f32 %v3556, 0.0
    %v3859 = vmax.f32 %v3561, 0.0
    %v3860 = vmax.f32 %v3566, 0.0
    %v3861 = vmax.f32 %v3571, 0.0
    %v3862 = vmax.f32 %v3576, 0.0
    %v3863 = vmax.f32 %v3581, 0.0
    %v3864 = vmax.f32 %v3586, 0.0
    %v3865 = vmax.f32 %v3591, 0.0
    %v3866 = vmax.f32 %v3596, 0.0
    %v3867 = vmax.f32 %v3601, 0.0
    %v3868 = vmax.f32 %v3606, 0.0
    %v3869 = vmax.f32 %v3611, 0.0
    %v3870 = vmax.f32 %v3616, 0.0
    %v3871 = vmax.f32 %v3621, 0.0
    %v3872 = vmax.f32 %v3626, 0.0
    %v3873 = vmax.f32 %v3631, 0.0
    %v3874 = vmax.f32 %v3636, 0.0
    %v3875 = vmax.f32 %v3641, 0.0
    %v3876 = vmax.f32 %v3646, 0.0
    %v3877 = vmax.f32 %v3651, 0.0
    %v3878 = vmax.f32 %v3656, 0.0
    %v3879 = vmax.f32 %v3661, 0.0
    %v3880 = vmax.f32 %v3666, 0.0
    %v3881 = vmax.f32 %v3671, 0.0
    %v3882 = vmax.f32 %v3676, 0.0
    %v3883 = vmax.f32 %v3681, 0.0
    %v3884 = vmax.f32 %v3686, 0.0
    %v3885 = vmax.f32 %v3691, 0.0
    %v3886 = vmax.f32 %v3696, 0.0
    %v3887 = vmax.f32 %v3701, 0.0
    %v3888 = vmax.f32 %v3706, 0.0
    %v3889 = vmax.f32 %v3711, 0.0
    %v3890 = vmax.f32 %v3716, 0.0
    %v3891 = vmax.f32 %v3721, 0.0
    %v3892 = vmax.f32 %v3726, 0.0
    %v3893 = vmax.f32 %v3731, 0.0
    %v3894 = vmax.f32 %v3736, 0.0
    %v3895 = vmax.f32 %v3741, 0.0
    %v3896 = vmax.f32 %v3746, 0.0
    %v3897 = vmax.f32 %v3751, 0.0
    %v3898 = vmax.f32 %v3756, 0.0
    %v3899 = vmax.f32 %v3761, 0.0
    %v3900 = vmax.f32 %v3766, 0.0
    %v3901 = vmax.f32 %v3771, 0.0
    %v3902 = vmax.f32 %v3776, 0.0
    %v3903 = vmax.f32 %v3781, 0.0
    %v3904 = vmax.f32 %v3786, 0.0
    %v3905 = vmax.f32 %v3791, 0.0
    %v3906 = vmax.f32 %v3796, 0.0
    %v3907 = vmax.f32 %v3801, 0.0
    %v3908 = vmax.f32 %v3806, 0.0
    %v3909 = vmax.f32 %v3811, 0.0
    %v3910 = vmax.f32 %v3816, 0.0
    %v3911 = vmax.f32 %v3821, 0.0
    %v3912 = vmax.f32 %v3826, 0.0
    %v3913 = vmax.f32 %v3831, 0.0
    %v3914 = vmax.f32 %v3836, 0.0
    %v3915 = vmax.f32 %v3841, 0.0
    %v3916 = vmax.f32 %v3846, 0.0
    %v3917 = vmax.f32 %v3851, 0.0
    %v3918 = vmax.f32 %v3854, %v3856
    %v3919 = vmax.f32 %v3855, %v3857
    %v3920 = vmax.f32 %v3858, %v3860
    %v3921 = vmax.f32 %v3859, %v3861
    %v3922 = vmax.f32 %v3862, %v3864
    %v3923 = vmax.f32 %v3863, %v3865
    %v3924 = vmax.f32 %v3866, %v3868
    %v3925 = vmax.f32 %v3867, %v3869
    %v3926 = vmax.f32 %v3870, %v3872
    %v3927 = vmax.f32 %v3871, %v3873
    %v3928 = vmax.f32 %v3874, %v3876
    %v3929 = vmax.f32 %v3875, %v3877
    %v3930 = vmax.f32 %v3878, %v3880
    %v3931 = vmax.f32 %v3879, %v3881
    %v3932 = vmax.f32 %v3882, %v3884
    %v3933 = vmax.f32 %v3883, %v3885
    %v3934 = vmax.f32 %v3886, %v3888
    %v3935 = vmax.f32 %v3887, %v3889
    %v3936 = vmax.f32 %v3890, %v3892
    %v3937 = vmax.f32 %v3891, %v3893
    %v3938 = vmax.f32 %v3894, %v3896
    %v3939 = vmax.f32 %v3895, %v3897
    %v3940 = vmax.f32 %v3898, %v3900
    %v3941 = vmax.f32 %v3899, %v3901
    %v3942 = vmax.f32 %v3902, %v3904
    %v3943 = vmax.f32 %v3903, %v3905
    %v3944 = vmax.f32 %v3906, %v3908
    %v3945 = vmax.f32 %v3907, %v3909
    %v3946 = vmax.f32 %v3910, %v3912
    %v3947 = vmax.f32 %v3911, %v3913
    %v3948 = vmax.f32 %v3914, %v3916
    %v3949 = vmax.f32 %v3915, %v3917
    %v3950 = vld [vmem:[%s7] sm:$0xff]
    %v3951 = vld [vmem:[%s7 + $0x8] sm:$0xff]
    %v3952 = vld [vmem:[%s7 + $0x10] sm:$0xff]
    %v3953 = vld [vmem:[%s7 + $0x18] sm:$0xff]
    %v3954 = vld [vmem:[%s7 + $0x20] sm:$0xff]
    %v3955 = vld [vmem:[%s7 + $0x28] sm:$0xff]
    %v3956 = vld [vmem:[%s7 + $0x30] sm:$0xff]
    %v3957 = vld [vmem:[%s7 + $0x38] sm:$0xff]
    %v3958 = vld [vmem:[%s7 + $0x40] sm:$0xff]
    %v3959 = vld [vmem:[%s7 + $0x48] sm:$0xff]
    %v3960 = vld [vmem:[%s7 + $0x50] sm:$0xff]
    %v3961 = vld [vmem:[%s7 + $0x58] sm:$0xff]
    %v3962 = vld [vmem:[%s7 + $0x60] sm:$0xff]
    %v3963 = vld [vmem:[%s7 + $0x68] sm:$0xff]
    %v3964 = vld [vmem:[%s7 + $0x70] sm:$0xff]
    %v3965 = vld [vmem:[%s7 + $0x78] sm:$0xff]
    %v3966 = vld [vmem:[%s7 + $0x80] sm:$0xff]
    %v3967 = vld [vmem:[%s7 + $0x88] sm:$0xff]
    %v3968 = vld [vmem:[%s7 + $0x90] sm:$0xff]
    %v3969 = vld [vmem:[%s7 + $0x98] sm:$0xff]
    %v3970 = vld [vmem:[%s7 + $0xa0] sm:$0xff]
    %v3971 = vld [vmem:[%s7 + $0xa8] sm:$0xff]
    %v3972 = vld [vmem:[%s7 + $0xb0] sm:$0xff]
    %v3973 = vld [vmem:[%s7 + $0xb8] sm:$0xff]
    %v3974 = vld [vmem:[%s7 + $0xc0] sm:$0xff]
    %v3975 = vld [vmem:[%s7 + $0xc8] sm:$0xff]
    %v3976 = vld [vmem:[%s7 + $0xd0] sm:$0xff]
    %v3977 = vld [vmem:[%s7 + $0xd8] sm:$0xff]
    %v3978 = vld [vmem:[%s7 + $0xe0] sm:$0xff]
    %v3979 = vld [vmem:[%s7 + $0xe8] sm:$0xff]
    %v3980 = vld [vmem:[%s7 + $0xf0] sm:$0xff]
    %v3981 = vld [vmem:[%s7 + $0xf8] sm:$0xff]
    %3982 = vmatprep.subr.mxu0 0.0
    %3983 = vmatpush1.msra.mxu0 %v3933
    %3984 = vmatprep.subr.mxu0 0.0
    %3985 = vmatpush1.msra.mxu0 %v3932
    %3986 = vmatprep.subr.mxu0 0.0
    %3987 = vmatpush1.msra.mxu0 %v3931
    %3988 = vmatprep.subr.mxu0 0.0
    %3989 = vmatpush1.msra.mxu0 %v3930
    %3990 = vmatprep.subr.mxu0 0.0
    %3991 = vmatpush1.msra.mxu0 %v3929
    %3992 = vmatprep.subr.mxu0 0.0
    %3993 = vmatpush1.msra.mxu0 %v3928
    %3994 = vmatprep.subr.mxu0 0.0
    %3995 = vmatpush1.msra.mxu0 %v3927
    %3996 = vmatprep.subr.mxu0 0.0
    %3997 = vmatpush1.msra.mxu0 %v3926
    %3998 = vmatprep.subr.mxu0 0.0
    %3999 = vmatpush1.msra.mxu0 %v3925
    %4000 = vmatprep.subr.mxu0 0.0
    %4001 = vmatpush1.msra.mxu0 %v3924
    %4002 = vmatprep.subr.mxu0 0.0
    %4003 = vmatpush1.msra.mxu0 %v3923
    %4004 = vmatprep.subr.mxu0 0.0
    %4005 = vmatpush1.msra.mxu0 %v3922
    %4006 = vmatprep.subr.mxu0 0.0
    %4007 = vmatpush1.msra.mxu0 %v3921
    %4008 = vmatprep.subr.mxu0 0.0
    %4009 = vmatpush1.msra.mxu0 %v3920
    %4010 = vmatprep.subr.mxu0 0.0
    %4011 = vmatpush1.msra.mxu0 %v3919
    %4012 = vmatprep.subr.mxu0 0.0
    %4013 = vmatpush1.msra.mxu0 %v3918
    %4014 = vmatprep.subr.mxu0 0.0
    %4015 = vmatpush2.msra.mxu0 %v3949
    %4016 = vmatprep.subr.mxu0 0.0
    %4017 = vmatpush2.msra.mxu0 %v3948
    %4018 = vmatprep.subr.mxu0 0.0
    %4019 = vmatpush2.msra.mxu0 %v3947
    %4020 = vmatprep.subr.mxu0 0.0
    %4021 = vmatpush2.msra.mxu0 %v3946
    %4022 = vmatprep.subr.mxu0 0.0
    %4023 = vmatpush2.msra.mxu0 %v3945
    %4024 = vmatprep.subr.mxu0 0.0
    %4025 = vmatpush2.msra.mxu0 %v3944
    %4026 = vmatprep.subr.mxu0 0.0
    %4027 = vmatpush2.msra.mxu0 %v3943
    %4028 = vmatprep.subr.mxu0 0.0
    %4029 = vmatpush2.msra.mxu0 %v3942
    %4030 = vmatprep.subr.mxu0 0.0
    %4031 = vmatpush2.msra.mxu0 %v3941
    %4032 = vmatprep.subr.mxu0 0.0
    %4033 = vmatpush2.msra.mxu0 %v3940
    %4034 = vmatprep.subr.mxu0 0.0
    %4035 = vmatpush2.msra.mxu0 %v3939
    %4036 = vmatprep.subr.mxu0 0.0
    %4037 = vmatpush2.msra.mxu0 %v3938
    %4038 = vmatprep.subr.mxu0 0.0
    %4039 = vmatpush2.msra.mxu0 %v3937
    %4040 = vmatprep.subr.mxu0 0.0
    %4041 = vmatpush2.msra.mxu0 %v3936
    %4042 = vmatprep.subr.mxu0 0.0
    %4043 = vmatpush2.msra.mxu0 %v3935
    %4044 = vmatprep.subr.mxu0 0.0
    %4045 = vmatpush2.msra.mxu0 %v3934
    %4046 = vmatprep.mubr.f32.mxu0 %v3951
    %4047 = vmatmul.mubr.f32.gmra.mxu0 %v3950
    %v4048 = vpop.f32.mrf.mxu0
    %v4049 = vadd.f32 0.0, %v4048
    %v4050 = vpop.f32.mrf.mxu0
    %4051 = vmatprep.mubr.f32.mxu0 %v3953
    %4052 = vmatmul.mubr.f32.gmra.mxu0 %v3952
    %v4053 = vpop.f32.mrf.mxu0
    %v4054 = vadd.f32 0.0, %v4053
    %v4055 = vpop.f32.mrf.mxu0
    %4056 = vmatprep.mubr.f32.mxu0 %v3955
    %4057 = vmatmul.mubr.f32.gmra.mxu0 %v3954
    %v4058 = vpop.f32.mrf.mxu0
    %v4059 = vadd.f32 0.0, %v4058
    %v4060 = vpop.f32.mrf.mxu0
    %4061 = vmatprep.mubr.f32.mxu0 %v3957
    %4062 = vmatmul.mubr.f32.gmra.mxu0 %v3956
    %v4063 = vpop.f32.mrf.mxu0
    %v4064 = vadd.f32 0.0, %v4063
    %v4065 = vpop.f32.mrf.mxu0
    %4066 = vmatprep.mubr.f32.mxu0 %v3959
    %4067 = vmatmul.mubr.f32.gmra.mxu0 %v3958
    %v4068 = vpop.f32.mrf.mxu0
    %v4069 = vadd.f32 0.0, %v4068
    %v4070 = vpop.f32.mrf.mxu0
    %4071 = vmatprep.mubr.f32.mxu0 %v3961
    %4072 = vmatmul.mubr.f32.gmra.mxu0 %v3960
    %v4073 = vpop.f32.mrf.mxu0
    %v4074 = vadd.f32 0.0, %v4073
    %v4075 = vpop.f32.mrf.mxu0
    %4076 = vmatprep.mubr.f32.mxu0 %v3963
    %4077 = vmatmul.mubr.f32.gmra.mxu0 %v3962
    %v4078 = vpop.f32.mrf.mxu0
    %v4079 = vadd.f32 0.0, %v4078
    %v4080 = vpop.f32.mrf.mxu0
    %4081 = vmatprep.mubr.f32.mxu0 %v3965
    %4082 = vmatmul.mubr.f32.gmra.mxu0 %v3964
    %v4083 = vpop.f32.mrf.mxu0
    %v4084 = vadd.f32 0.0, %v4083
    %v4085 = vpop.f32.mrf.mxu0
    %4086 = vmatprep.mubr.f32.mxu0 %v3967
    %4087 = vmatmul.mubr.f32.gmra.mxu0 %v3966
    %v4088 = vpop.f32.mrf.mxu0
    %v4089 = vadd.f32 0.0, %v4088
    %v4090 = vpop.f32.mrf.mxu0
    %4091 = vmatprep.mubr.f32.mxu0 %v3969
    %4092 = vmatmul.mubr.f32.gmra.mxu0 %v3968
    %v4093 = vpop.f32.mrf.mxu0
    %v4094 = vadd.f32 0.0, %v4093
    %v4095 = vpop.f32.mrf.mxu0
    %4096 = vmatprep.mubr.f32.mxu0 %v3971
    %4097 = vmatmul.mubr.f32.gmra.mxu0 %v3970
    %v4098 = vpop.f32.mrf.mxu0
    %v4099 = vadd.f32 0.0, %v4098
    %v4100 = vpop.f32.mrf.mxu0
    %4101 = vmatprep.mubr.f32.mxu0 %v3973
    %4102 = vmatmul.mubr.f32.gmra.mxu0 %v3972
    %v4103 = vpop.f32.mrf.mxu0
    %v4104 = vadd.f32 0.0, %v4103
    %v4105 = vpop.f32.mrf.mxu0
    %4106 = vmatprep.mubr.f32.mxu0 %v3975
    %4107 = vmatmul.mubr.f32.gmra.mxu0 %v3974
    %v4108 = vpop.f32.mrf.mxu0
    %v4109 = vadd.f32 0.0, %v4108
    %v4110 = vpop.f32.mrf.mxu0
    %4111 = vmatprep.mubr.f32.mxu0 %v3977
    %4112 = vmatmul.mubr.f32.gmra.mxu0 %v3976
    %v4113 = vpop.f32.mrf.mxu0
    %v4114 = vadd.f32 0.0, %v4113
    %v4115 = vpop.f32.mrf.mxu0
    %4116 = vmatprep.mubr.f32.mxu0 %v3979
    %4117 = vmatmul.mubr.f32.gmra.mxu0 %v3978
    %v4118 = vpop.f32.mrf.mxu0
    %v4119 = vadd.f32 0.0, %v4118
    %v4120 = vpop.f32.mrf.mxu0
    %4121 = vmatprep.mubr.f32.mxu0 %v3981
    %4122 = vmatmul.mubr.f32.gmra.mxu0 %v3980
    %v4123 = vpop.f32.mrf.mxu0
    %v4124 = vadd.f32 0.0, %v4123
    %v4125 = vpop.f32.mrf.mxu0
    %4126 = vdwg.mxu0
    %s4127 = scalar_lea.vmem %s7, 256
    %v4128 = vld [vmem:[%s4127] sm:$0xff]
    %v4129 = vld [vmem:[%s4127 + $0x8] sm:$0xff]
    %v4130 = vld [vmem:[%s4127 + $0x10] sm:$0xff]
    %v4131 = vld [vmem:[%s4127 + $0x18] sm:$0xff]
    %v4132 = vld [vmem:[%s4127 + $0x20] sm:$0xff]
    %v4133 = vld [vmem:[%s4127 + $0x28] sm:$0xff]
    %v4134 = vld [vmem:[%s4127 + $0x30] sm:$0xff]
    %v4135 = vld [vmem:[%s4127 + $0x38] sm:$0xff]
    %v4136 = vld [vmem:[%s4127 + $0x40] sm:$0xff]
    %v4137 = vld [vmem:[%s4127 + $0x48] sm:$0xff]
    %v4138 = vld [vmem:[%s4127 + $0x50] sm:$0xff]
    %v4139 = vld [vmem:[%s4127 + $0x58] sm:$0xff]
    %v4140 = vld [vmem:[%s4127 + $0x60] sm:$0xff]
    %v4141 = vld [vmem:[%s4127 + $0x68] sm:$0xff]
    %v4142 = vld [vmem:[%s4127 + $0x70] sm:$0xff]
    %v4143 = vld [vmem:[%s4127 + $0x78] sm:$0xff]
    %v4144 = vld [vmem:[%s4127 + $0x80] sm:$0xff]
    %v4145 = vld [vmem:[%s4127 + $0x88] sm:$0xff]
    %v4146 = vld [vmem:[%s4127 + $0x90] sm:$0xff]
    %v4147 = vld [vmem:[%s4127 + $0x98] sm:$0xff]
    %v4148 = vld [vmem:[%s4127 + $0xa0] sm:$0xff]
    %v4149 = vld [vmem:[%s4127 + $0xa8] sm:$0xff]
    %v4150 = vld [vmem:[%s4127 + $0xb0] sm:$0xff]
    %v4151 = vld [vmem:[%s4127 + $0xb8] sm:$0xff]
    %v4152 = vld [vmem:[%s4127 + $0xc0] sm:$0xff]
    %v4153 = vld [vmem:[%s4127 + $0xc8] sm:$0xff]
    %v4154 = vld [vmem:[%s4127 + $0xd0] sm:$0xff]
    %v4155 = vld [vmem:[%s4127 + $0xd8] sm:$0xff]
    %v4156 = vld [vmem:[%s4127 + $0xe0] sm:$0xff]
    %v4157 = vld [vmem:[%s4127 + $0xe8] sm:$0xff]
    %v4158 = vld [vmem:[%s4127 + $0xf0] sm:$0xff]
    %v4159 = vld [vmem:[%s4127 + $0xf8] sm:$0xff]
    %4160 = vmatprep.subr.mxu0 0.0
    %4161 = vmatpush1.msra.mxu0 %v3933
    %4162 = vmatprep.subr.mxu0 0.0
    %4163 = vmatpush1.msra.mxu0 %v3932
    %4164 = vmatprep.subr.mxu0 0.0
    %4165 = vmatpush1.msra.mxu0 %v3931
    %4166 = vmatprep.subr.mxu0 0.0
    %4167 = vmatpush1.msra.mxu0 %v3930
    %4168 = vmatprep.subr.mxu0 0.0
    %4169 = vmatpush1.msra.mxu0 %v3929
    %4170 = vmatprep.subr.mxu0 0.0
    %4171 = vmatpush1.msra.mxu0 %v3928
    %4172 = vmatprep.subr.mxu0 0.0
    %4173 = vmatpush1.msra.mxu0 %v3927
    %4174 = vmatprep.subr.mxu0 0.0
    %4175 = vmatpush1.msra.mxu0 %v3926
    %4176 = vmatprep.subr.mxu0 0.0
    %4177 = vmatpush1.msra.mxu0 %v3925
    %4178 = vmatprep.subr.mxu0 0.0
    %4179 = vmatpush1.msra.mxu0 %v3924
    %4180 = vmatprep.subr.mxu0 0.0
    %4181 = vmatpush1.msra.mxu0 %v3923
    %4182 = vmatprep.subr.mxu0 0.0
    %4183 = vmatpush1.msra.mxu0 %v3922
    %4184 = vmatprep.subr.mxu0 0.0
    %4185 = vmatpush1.msra.mxu0 %v3921
    %4186 = vmatprep.subr.mxu0 0.0
    %4187 = vmatpush1.msra.mxu0 %v3920
    %4188 = vmatprep.subr.mxu0 0.0
    %4189 = vmatpush1.msra.mxu0 %v3919
    %4190 = vmatprep.subr.mxu0 0.0
    %4191 = vmatpush1.msra.mxu0 %v3918
    %4192 = vmatprep.subr.mxu0 0.0
    %4193 = vmatpush2.msra.mxu0 %v3949
    %4194 = vmatprep.subr.mxu0 0.0
    %4195 = vmatpush2.msra.mxu0 %v3948
    %4196 = vmatprep.subr.mxu0 0.0
    %4197 = vmatpush2.msra.mxu0 %v3947
    %4198 = vmatprep.subr.mxu0 0.0
    %4199 = vmatpush2.msra.mxu0 %v3946
    %4200 = vmatprep.subr.mxu0 0.0
    %4201 = vmatpush2.msra.mxu0 %v3945
    %4202 = vmatprep.subr.mxu0 0.0
    %4203 = vmatpush2.msra.mxu0 %v3944
    %4204 = vmatprep.subr.mxu0 0.0
    %4205 = vmatpush2.msra.mxu0 %v3943
    %4206 = vmatprep.subr.mxu0 0.0
    %4207 = vmatpush2.msra.mxu0 %v3942
    %4208 = vmatprep.subr.mxu0 0.0
    %4209 = vmatpush2.msra.mxu0 %v3941
    %4210 = vmatprep.subr.mxu0 0.0
    %4211 = vmatpush2.msra.mxu0 %v3940
    %4212 = vmatprep.subr.mxu0 0.0
    %4213 = vmatpush2.msra.mxu0 %v3939
    %4214 = vmatprep.subr.mxu0 0.0
    %4215 = vmatpush2.msra.mxu0 %v3938
    %4216 = vmatprep.subr.mxu0 0.0
    %4217 = vmatpush2.msra.mxu0 %v3937
    %4218 = vmatprep.subr.mxu0 0.0
    %4219 = vmatpush2.msra.mxu0 %v3936
    %4220 = vmatprep.subr.mxu0 0.0
    %4221 = vmatpush2.msra.mxu0 %v3935
    %4222 = vmatprep.subr.mxu0 0.0
    %4223 = vmatpush2.msra.mxu0 %v3934
    %4224 = vmatprep.mubr.f32.mxu0 %v4129
    %4225 = vmatmul.mubr.f32.gmra.mxu0 %v4128
    %v4226 = vpop.f32.mrf.mxu0
    %v4227 = vadd.f32 0.0, %v4226
    %v4228 = vpop.f32.mrf.mxu0
    %4229 = vmatprep.mubr.f32.mxu0 %v4131
    %4230 = vmatmul.mubr.f32.gmra.mxu0 %v4130
    %v4231 = vpop.f32.mrf.mxu0
    %v4232 = vadd.f32 0.0, %v4231
    %v4233 = vpop.f32.mrf.mxu0
    %4234 = vmatprep.mubr.f32.mxu0 %v4133
    %4235 = vmatmul.mubr.f32.gmra.mxu0 %v4132
    %v4236 = vpop.f32.mrf.mxu0
    %v4237 = vadd.f32 0.0, %v4236
    %v4238 = vpop.f32.mrf.mxu0
    %4239 = vmatprep.mubr.f32.mxu0 %v4135
    %4240 = vmatmul.mubr.f32.gmra.mxu0 %v4134
    %v4241 = vpop.f32.mrf.mxu0
    %v4242 = vadd.f32 0.0, %v4241
    %v4243 = vpop.f32.mrf.mxu0
    %4244 = vmatprep.mubr.f32.mxu0 %v4137
    %4245 = vmatmul.mubr.f32.gmra.mxu0 %v4136
    %v4246 = vpop.f32.mrf.mxu0
    %v4247 = vadd.f32 0.0, %v4246
    %v4248 = vpop.f32.mrf.mxu0
    %4249 = vmatprep.mubr.f32.mxu0 %v4139
    %4250 = vmatmul.mubr.f32.gmra.mxu0 %v4138
    %v4251 = vpop.f32.mrf.mxu0
    %v4252 = vadd.f32 0.0, %v4251
    %v4253 = vpop.f32.mrf.mxu0
    %4254 = vmatprep.mubr.f32.mxu0 %v4141
    %4255 = vmatmul.mubr.f32.gmra.mxu0 %v4140
    %v4256 = vpop.f32.mrf.mxu0
    %v4257 = vadd.f32 0.0, %v4256
    %v4258 = vpop.f32.mrf.mxu0
    %4259 = vmatprep.mubr.f32.mxu0 %v4143
    %4260 = vmatmul.mubr.f32.gmra.mxu0 %v4142
    %v4261 = vpop.f32.mrf.mxu0
    %v4262 = vadd.f32 0.0, %v4261
    %v4263 = vpop.f32.mrf.mxu0
    %4264 = vmatprep.mubr.f32.mxu0 %v4145
    %4265 = vmatmul.mubr.f32.gmra.mxu0 %v4144
    %v4266 = vpop.f32.mrf.mxu0
    %v4267 = vadd.f32 0.0, %v4266
    %v4268 = vpop.f32.mrf.mxu0
    %4269 = vmatprep.mubr.f32.mxu0 %v4147
    %4270 = vmatmul.mubr.f32.gmra.mxu0 %v4146
    %v4271 = vpop.f32.mrf.mxu0
    %v4272 = vadd.f32 0.0, %v4271
    %v4273 = vpop.f32.mrf.mxu0
    %4274 = vmatprep.mubr.f32.mxu0 %v4149
    %4275 = vmatmul.mubr.f32.gmra.mxu0 %v4148
    %v4276 = vpop.f32.mrf.mxu0
    %v4277 = vadd.f32 0.0, %v4276
    %v4278 = vpop.f32.mrf.mxu0
    %4279 = vmatprep.mubr.f32.mxu0 %v4151
    %4280 = vmatmul.mubr.f32.gmra.mxu0 %v4150
    %v4281 = vpop.f32.mrf.mxu0
    %v4282 = vadd.f32 0.0, %v4281
    %v4283 = vpop.f32.mrf.mxu0
    %4284 = vmatprep.mubr.f32.mxu0 %v4153
    %4285 = vmatmul.mubr.f32.gmra.mxu0 %v4152
    %v4286 = vpop.f32.mrf.mxu0
    %v4287 = vadd.f32 0.0, %v4286
    %v4288 = vpop.f32.mrf.mxu0
    %4289 = vmatprep.mubr.f32.mxu0 %v4155
    %4290 = vmatmul.mubr.f32.gmra.mxu0 %v4154
    %v4291 = vpop.f32.mrf.mxu0
    %v4292 = vadd.f32 0.0, %v4291
    %v4293 = vpop.f32.mrf.mxu0
    %4294 = vmatprep.mubr.f32.mxu0 %v4157
    %4295 = vmatmul.mubr.f32.gmra.mxu0 %v4156
    %v4296 = vpop.f32.mrf.mxu0
    %v4297 = vadd.f32 0.0, %v4296
    %v4298 = vpop.f32.mrf.mxu0
    %4299 = vmatprep.mubr.f32.mxu0 %v4159
    %4300 = vmatmul.mubr.f32.gmra.mxu0 %v4158
    %v4301 = vpop.f32.mrf.mxu0
    %v4302 = vadd.f32 0.0, %v4301
    %v4303 = vpop.f32.mrf.mxu0
    %4304 = vdwg.mxu0
    %v4305 = vmax.f32 %v4049, %v4227
    %v4306 = vmax.f32 %v4054, %v4232
    %v4307 = vmax.f32 %v4059, %v4237
    %v4308 = vmax.f32 %v4064, %v4242
    %v4309 = vmax.f32 %v4069, %v4247
    %v4310 = vmax.f32 %v4074, %v4252
    %v4311 = vmax.f32 %v4079, %v4257
    %v4312 = vmax.f32 %v4084, %v4262
    %v4313 = vmax.f32 %v4089, %v4267
    %v4314 = vmax.f32 %v4094, %v4272
    %v4315 = vmax.f32 %v4099, %v4277
    %v4316 = vmax.f32 %v4104, %v4282
    %v4317 = vmax.f32 %v4109, %v4287
    %v4318 = vmax.f32 %v4114, %v4292
    %v4319 = vmax.f32 %v4119, %v4297
    %v4320 = vmax.f32 %v4124, %v4302
    %s4321 = scalar_lea.vmem [#allocation2], 16
    %4322 = vst.msk [vmem:[%s4321 + $0x1] sm:$0xff] %vm48, %v4305
    %4323 = vst.msk [vmem:[%s4321 + $0x11] sm:$0xff] %vm48, %v4306
    %4324 = vst.msk [vmem:[%s4321 + $0x21] sm:$0xff] %vm48, %v4307
    %4325 = vst.msk [vmem:[%s4321 + $0x31] sm:$0xff] %vm48, %v4308
    %4326 = vst.msk [vmem:[%s4321 + $0x41] sm:$0xff] %vm48, %v4309
    %4327 = vst.msk [vmem:[%s4321 + $0x51] sm:$0xff] %vm48, %v4310
    %4328 = vst.msk [vmem:[%s4321 + $0x61] sm:$0xff] %vm48, %v4311
    %4329 = vst.msk [vmem:[%s4321 + $0x71] sm:$0xff] %vm48, %v4312
    %4330 = vst.msk [vmem:[%s4321 + $0xa1] sm:$0xff] %vm48, %v4313
    %4331 = vst.msk [vmem:[%s4321 + $0xb1] sm:$0xff] %vm48, %v4314
    %4332 = vst.msk [vmem:[%s4321 + $0xc1] sm:$0xff] %vm48, %v4315
    %4333 = vst.msk [vmem:[%s4321 + $0xd1] sm:$0xff] %vm48, %v4316
    %4334 = vst.msk [vmem:[%s4321 + $0xe1] sm:$0xff] %vm48, %v4317
    %4335 = vst.msk [vmem:[%s4321 + $0xf1] sm:$0xff] %vm48, %v4318
    %4336 = vst.msk [vmem:[%s4321 + $0x101] sm:$0xff] %vm48, %v4319
    %4337 = vst.msk [vmem:[%s4321 + $0x111] sm:$0xff] %vm48, %v4320
    %v4338 = vld [vmem:[#allocation2] sm:$0xff]
    %v4339 = vld [vmem:[#allocation2 + $0x10] sm:$0xff]
    %v4340 = vld [vmem:[#allocation2 + $0x20] sm:$0xff]
    %v4341 = vld [vmem:[#allocation2 + $0x30] sm:$0xff]
    %v4342 = vld [vmem:[#allocation2 + $0x40] sm:$0xff]
    %v4343 = vld [vmem:[#allocation2 + $0x50] sm:$0xff]
    %v4344 = vld [vmem:[#allocation2 + $0x60] sm:$0xff]
    %v4345 = vld [vmem:[#allocation2 + $0x70] sm:$0xff]
    %v4346 = vld [vmem:[#allocation2 + $0xa0] sm:$0xff]
    %v4347 = vld [vmem:[#allocation2 + $0xb0] sm:$0xff]
    %v4348 = vld [vmem:[#allocation2 + $0xc0] sm:$0xff]
    %v4349 = vld [vmem:[#allocation2 + $0xd0] sm:$0xff]
    %v4350 = vld [vmem:[#allocation2 + $0xe0] sm:$0xff]
    %v4351 = vld [vmem:[#allocation2 + $0xf0] sm:$0xff]
    %v4352 = vld [vmem:[#allocation2 + $0x100] sm:$0xff]
    %v4353 = vld [vmem:[#allocation2 + $0x110] sm:$0xff]
    %v4354 = vld [vmem:[#allocation2 + $0x1] sm:$0xff]
    %v4355 = vld [vmem:[#allocation2 + $0x11] sm:$0xff]
    %v4356 = vld [vmem:[#allocation2 + $0x21] sm:$0xff]
    %v4357 = vld [vmem:[#allocation2 + $0x31] sm:$0xff]
    %v4358 = vld [vmem:[#allocation2 + $0x41] sm:$0xff]
    %v4359 = vld [vmem:[#allocation2 + $0x51] sm:$0xff]
    %v4360 = vld [vmem:[#allocation2 + $0x61] sm:$0xff]
    %v4361 = vld [vmem:[#allocation2 + $0x71] sm:$0xff]
    %v4362 = vld [vmem:[#allocation2 + $0xa1] sm:$0xff]
    %v4363 = vld [vmem:[#allocation2 + $0xb1] sm:$0xff]
    %v4364 = vld [vmem:[#allocation2 + $0xc1] sm:$0xff]
    %v4365 = vld [vmem:[#allocation2 + $0xd1] sm:$0xff]
    %v4366 = vld [vmem:[#allocation2 + $0xe1] sm:$0xff]
    %v4367 = vld [vmem:[#allocation2 + $0xf1] sm:$0xff]
    %v4368 = vld [vmem:[#allocation2 + $0x101] sm:$0xff]
    %v4369 = vld [vmem:[#allocation2 + $0x111] sm:$0xff]
    %v4370 = vld [vmem:[#allocation2 + $0x2] sm:$0xff]
    %v4371 = vld [vmem:[#allocation2 + $0x12] sm:$0xff]
    %v4372 = vld [vmem:[#allocation2 + $0x22] sm:$0xff]
    %v4373 = vld [vmem:[#allocation2 + $0x32] sm:$0xff]
    %v4374 = vld [vmem:[#allocation2 + $0x42] sm:$0xff]
    %v4375 = vld [vmem:[#allocation2 + $0x52] sm:$0xff]
    %v4376 = vld [vmem:[#allocation2 + $0x62] sm:$0xff]
    %v4377 = vld [vmem:[#allocation2 + $0x72] sm:$0xff]
    %v4378 = vld [vmem:[#allocation2 + $0xa2] sm:$0xff]
    %v4379 = vld [vmem:[#allocation2 + $0xb2] sm:$0xff]
    %v4380 = vld [vmem:[#allocation2 + $0xc2] sm:$0xff]
    %v4381 = vld [vmem:[#allocation2 + $0xd2] sm:$0xff]
    %v4382 = vld [vmem:[#allocation2 + $0xe2] sm:$0xff]
    %v4383 = vld [vmem:[#allocation2 + $0xf2] sm:$0xff]
    %v4384 = vld [vmem:[#allocation2 + $0x102] sm:$0xff]
    %v4385 = vld [vmem:[#allocation2 + $0x112] sm:$0xff]
    %v4386 = vld [vmem:[%s4321] sm:$0xff]
    %v4387 = vld [vmem:[%s4321 + $0x10] sm:$0xff]
    %v4388 = vld [vmem:[%s4321 + $0x20] sm:$0xff]
    %v4389 = vld [vmem:[%s4321 + $0x30] sm:$0xff]
    %v4390 = vld [vmem:[%s4321 + $0x40] sm:$0xff]
    %v4391 = vld [vmem:[%s4321 + $0x50] sm:$0xff]
    %v4392 = vld [vmem:[%s4321 + $0x60] sm:$0xff]
    %v4393 = vld [vmem:[%s4321 + $0x70] sm:$0xff]
    %v4394 = vld [vmem:[%s4321 + $0xa0] sm:$0xff]
    %v4395 = vld [vmem:[%s4321 + $0xb0] sm:$0xff]
    %v4396 = vld [vmem:[%s4321 + $0xc0] sm:$0xff]
    %v4397 = vld [vmem:[%s4321 + $0xd0] sm:$0xff]
    %v4398 = vld [vmem:[%s4321 + $0xe0] sm:$0xff]
    %v4399 = vld [vmem:[%s4321 + $0xf0] sm:$0xff]
    %v4400 = vld [vmem:[%s4321 + $0x100] sm:$0xff]
    %v4401 = vld [vmem:[%s4321 + $0x110] sm:$0xff]
    %v4402 = vld [vmem:[%s4321 + $0x1] sm:$0xff]
    %v4403 = vld [vmem:[%s4321 + $0x11] sm:$0xff]
    %v4404 = vld [vmem:[%s4321 + $0x21] sm:$0xff]
    %v4405 = vld [vmem:[%s4321 + $0x31] sm:$0xff]
    %v4406 = vld [vmem:[%s4321 + $0x41] sm:$0xff]
    %v4407 = vld [vmem:[%s4321 + $0x51] sm:$0xff]
    %v4408 = vld [vmem:[%s4321 + $0x61] sm:$0xff]
    %v4409 = vld [vmem:[%s4321 + $0x71] sm:$0xff]
    %v4410 = vld [vmem:[%s4321 + $0xa1] sm:$0xff]
    %v4411 = vld [vmem:[%s4321 + $0xb1] sm:$0xff]
    %v4412 = vld [vmem:[%s4321 + $0xc1] sm:$0xff]
    %v4413 = vld [vmem:[%s4321 + $0xd1] sm:$0xff]
    %v4414 = vld [vmem:[%s4321 + $0xe1] sm:$0xff]
    %v4415 = vld [vmem:[%s4321 + $0xf1] sm:$0xff]
    %v4416 = vld [vmem:[%s4321 + $0x101] sm:$0xff]
    %v4417 = vld [vmem:[%s4321 + $0x111] sm:$0xff]
    %v4418 = vld [vmem:[%s4321 + $0x2] sm:$0xff]
    %v4419 = vld [vmem:[%s4321 + $0x12] sm:$0xff]
    %v4420 = vld [vmem:[%s4321 + $0x22] sm:$0xff]
    %v4421 = vld [vmem:[%s4321 + $0x32] sm:$0xff]
    %v4422 = vld [vmem:[%s4321 + $0x42] sm:$0xff]
    %v4423 = vld [vmem:[%s4321 + $0x52] sm:$0xff]
    %v4424 = vld [vmem:[%s4321 + $0x62] sm:$0xff]
    %v4425 = vld [vmem:[%s4321 + $0x72] sm:$0xff]
    %v4426 = vld [vmem:[%s4321 + $0xa2] sm:$0xff]
    %v4427 = vld [vmem:[%s4321 + $0xb2] sm:$0xff]
    %v4428 = vld [vmem:[%s4321 + $0xc2] sm:$0xff]
    %v4429 = vld [vmem:[%s4321 + $0xd2] sm:$0xff]
    %v4430 = vld [vmem:[%s4321 + $0xe2] sm:$0xff]
    %v4431 = vld [vmem:[%s4321 + $0xf2] sm:$0xff]
    %v4432 = vld [vmem:[%s4321 + $0x102] sm:$0xff]
    %v4433 = vld [vmem:[%s4321 + $0x112] sm:$0xff]
    %s4434 = scalar_lea.vmem [#allocation2], 32
    %v4435 = vld [vmem:[%s4434] sm:$0xff]
    %v4436 = vld [vmem:[%s4434 + $0x10] sm:$0xff]
    %v4437 = vld [vmem:[%s4434 + $0x20] sm:$0xff]
    %v4438 = vld [vmem:[%s4434 + $0x30] sm:$0xff]
    %v4439 = vld [vmem:[%s4434 + $0x40] sm:$0xff]
    %v4440 = vld [vmem:[%s4434 + $0x50] sm:$0xff]
    %v4441 = vld [vmem:[%s4434 + $0x60] sm:$0xff]
    %v4442 = vld [vmem:[%s4434 + $0x70] sm:$0xff]
    %v4443 = vld [vmem:[%s4434 + $0xa0] sm:$0xff]
    %v4444 = vld [vmem:[%s4434 + $0xb0] sm:$0xff]
    %v4445 = vld [vmem:[%s4434 + $0xc0] sm:$0xff]
    %v4446 = vld [vmem:[%s4434 + $0xd0] sm:$0xff]
    %v4447 = vld [vmem:[%s4434 + $0xe0] sm:$0xff]
    %v4448 = vld [vmem:[%s4434 + $0xf0] sm:$0xff]
    %v4449 = vld [vmem:[%s4434 + $0x100] sm:$0xff]
    %v4450 = vld [vmem:[%s4434 + $0x110] sm:$0xff]
    %v4451 = vld [vmem:[%s4434 + $0x1] sm:$0xff]
    %v4452 = vld [vmem:[%s4434 + $0x11] sm:$0xff]
    %v4453 = vld [vmem:[%s4434 + $0x21] sm:$0xff]
    %v4454 = vld [vmem:[%s4434 + $0x31] sm:$0xff]
    %v4455 = vld [vmem:[%s4434 + $0x41] sm:$0xff]
    %v4456 = vld [vmem:[%s4434 + $0x51] sm:$0xff]
    %v4457 = vld [vmem:[%s4434 + $0x61] sm:$0xff]
    %v4458 = vld [vmem:[%s4434 + $0x71] sm:$0xff]
    %v4459 = vld [vmem:[%s4434 + $0xa1] sm:$0xff]
    %v4460 = vld [vmem:[%s4434 + $0xb1] sm:$0xff]
    %v4461 = vld [vmem:[%s4434 + $0xc1] sm:$0xff]
    %v4462 = vld [vmem:[%s4434 + $0xd1] sm:$0xff]
    %v4463 = vld [vmem:[%s4434 + $0xe1] sm:$0xff]
    %v4464 = vld [vmem:[%s4434 + $0xf1] sm:$0xff]
    %v4465 = vld [vmem:[%s4434 + $0x101] sm:$0xff]
    %v4466 = vld [vmem:[%s4434 + $0x111] sm:$0xff]
    %v4467 = vld [vmem:[%s4434 + $0x2] sm:$0xff]
    %v4468 = vld [vmem:[%s4434 + $0x12] sm:$0xff]
    %v4469 = vld [vmem:[%s4434 + $0x22] sm:$0xff]
    %v4470 = vld [vmem:[%s4434 + $0x32] sm:$0xff]
    %v4471 = vld [vmem:[%s4434 + $0x42] sm:$0xff]
    %v4472 = vld [vmem:[%s4434 + $0x52] sm:$0xff]
    %v4473 = vld [vmem:[%s4434 + $0x62] sm:$0xff]
    %v4474 = vld [vmem:[%s4434 + $0x72] sm:$0xff]
    %v4475 = vld [vmem:[%s4434 + $0xa2] sm:$0xff]
    %v4476 = vld [vmem:[%s4434 + $0xb2] sm:$0xff]
    %v4477 = vld [vmem:[%s4434 + $0xc2] sm:$0xff]
    %v4478 = vld [vmem:[%s4434 + $0xd2] sm:$0xff]
    %v4479 = vld [vmem:[%s4434 + $0xe2] sm:$0xff]
    %v4480 = vld [vmem:[%s4434 + $0xf2] sm:$0xff]
    %v4481 = vld [vmem:[%s4434 + $0x102] sm:$0xff]
    %v4482 = vld [vmem:[%s4434 + $0x112] sm:$0xff]
    %4499 = vrot.lane.b32.xlu0 %v4354, 16
    %v4500 = vpop.permute.xlu0 %4499
    %4501 = vrot.lane.b32.xlu0 %v4355, 16
    %v4502 = vpop.permute.xlu0 %4501
    %4503 = vrot.lane.b32.xlu0 %v4356, 16
    %v4504 = vpop.permute.xlu0 %4503
    %4505 = vrot.lane.b32.xlu0 %v4357, 16
    %v4506 = vpop.permute.xlu0 %4505
    %4507 = vrot.lane.b32.xlu0 %v4358, 16
    %v4508 = vpop.permute.xlu0 %4507
    %4509 = vrot.lane.b32.xlu0 %v4359, 16
    %v4510 = vpop.permute.xlu0 %4509
    %4511 = vrot.lane.b32.xlu0 %v4360, 16
    %v4512 = vpop.permute.xlu0 %4511
    %4513 = vrot.lane.b32.xlu0 %v4361, 16
    %v4514 = vpop.permute.xlu0 %4513
    %4515 = vrot.lane.b32.xlu0 %v4362, 16
    %v4516 = vpop.permute.xlu0 %4515
    %4517 = vrot.lane.b32.xlu0 %v4363, 16
    %v4518 = vpop.permute.xlu0 %4517
    %4519 = vrot.lane.b32.xlu0 %v4364, 16
    %v4520 = vpop.permute.xlu0 %4519
    %4521 = vrot.lane.b32.xlu0 %v4365, 16
    %v4522 = vpop.permute.xlu0 %4521
    %4523 = vrot.lane.b32.xlu0 %v4366, 16
    %v4524 = vpop.permute.xlu0 %4523
    %4525 = vrot.lane.b32.xlu0 %v4367, 16
    %v4526 = vpop.permute.xlu0 %4525
    %4527 = vrot.lane.b32.xlu0 %v4368, 16
    %v4528 = vpop.permute.xlu0 %4527
    %4529 = vrot.lane.b32.xlu0 %v4369, 16
    %v4530 = vpop.permute.xlu0 %4529
    %4563 = vrot.lane.b32.xlu0 %v4370, 32
    %v4564 = vpop.permute.xlu0 %4563
    %4565 = vrot.lane.b32.xlu0 %v4371, 32
    %v4566 = vpop.permute.xlu0 %4565
    %4567 = vrot.lane.b32.xlu0 %v4372, 32
    %v4568 = vpop.permute.xlu0 %4567
    %4569 = vrot.lane.b32.xlu0 %v4373, 32
    %v4570 = vpop.permute.xlu0 %4569
    %4571 = vrot.lane.b32.xlu0 %v4374, 32
    %v4572 = vpop.permute.xlu0 %4571
    %4573 = vrot.lane.b32.xlu0 %v4375, 32
    %v4574 = vpop.permute.xlu0 %4573
    %4575 = vrot.lane.b32.xlu0 %v4376, 32
    %v4576 = vpop.permute.xlu0 %4575
    %4577 = vrot.lane.b32.xlu0 %v4377, 32
    %v4578 = vpop.permute.xlu0 %4577
    %4579 = vrot.lane.b32.xlu0 %v4378, 32
    %v4580 = vpop.permute.xlu0 %4579
    %4581 = vrot.lane.b32.xlu0 %v4379, 32
    %v4582 = vpop.permute.xlu0 %4581
    %4583 = vrot.lane.b32.xlu0 %v4380, 32
    %v4584 = vpop.permute.xlu0 %4583
    %4585 = vrot.lane.b32.xlu0 %v4381, 32
    %v4586 = vpop.permute.xlu0 %4585
    %4587 = vrot.lane.b32.xlu0 %v4382, 32
    %v4588 = vpop.permute.xlu0 %4587
    %4589 = vrot.lane.b32.xlu0 %v4383, 32
    %v4590 = vpop.permute.xlu0 %4589
    %4591 = vrot.lane.b32.xlu0 %v4384, 32
    %v4592 = vpop.permute.xlu0 %4591
    %4593 = vrot.lane.b32.xlu0 %v4385, 32
    %v4594 = vpop.permute.xlu0 %4593
    %4627 = vrot.lane.b32.xlu0 %v4386, 48
    %v4628 = vpop.permute.xlu0 %4627
    %4629 = vrot.lane.b32.xlu0 %v4387, 48
    %v4630 = vpop.permute.xlu0 %4629
    %4631 = vrot.lane.b32.xlu0 %v4388, 48
    %v4632 = vpop.permute.xlu0 %4631
    %4633 = vrot.lane.b32.xlu0 %v4389, 48
    %v4634 = vpop.permute.xlu0 %4633
    %4635 = vrot.lane.b32.xlu0 %v4390, 48
    %v4636 = vpop.permute.xlu0 %4635
    %4637 = vrot.lane.b32.xlu0 %v4391, 48
    %v4638 = vpop.permute.xlu0 %4637
    %4639 = vrot.lane.b32.xlu0 %v4392, 48
    %v4640 = vpop.permute.xlu0 %4639
    %4641 = vrot.lane.b32.xlu0 %v4393, 48
    %v4642 = vpop.permute.xlu0 %4641
    %4643 = vrot.lane.b32.xlu0 %v4394, 48
    %v4644 = vpop.permute.xlu0 %4643
    %4645 = vrot.lane.b32.xlu0 %v4395, 48
    %v4646 = vpop.permute.xlu0 %4645
    %4647 = vrot.lane.b32.xlu0 %v4396, 48
    %v4648 = vpop.permute.xlu0 %4647
    %4649 = vrot.lane.b32.xlu0 %v4397, 48
    %v4650 = vpop.permute.xlu0 %4649
    %4651 = vrot.lane.b32.xlu0 %v4398, 48
    %v4652 = vpop.permute.xlu0 %4651
    %4653 = vrot.lane.b32.xlu0 %v4399, 48
    %v4654 = vpop.permute.xlu0 %4653
    %4655 = vrot.lane.b32.xlu0 %v4400, 48
    %v4656 = vpop.permute.xlu0 %4655
    %4657 = vrot.lane.b32.xlu0 %v4401, 48
    %v4658 = vpop.permute.xlu0 %4657
    %4691 = vrot.lane.b32.xlu0 %v4402, 64
    %v4692 = vpop.permute.xlu0 %4691
    %4693 = vrot.lane.b32.xlu0 %v4403, 64
    %v4694 = vpop.permute.xlu0 %4693
    %4695 = vrot.lane.b32.xlu0 %v4404, 64
    %v4696 = vpop.permute.xlu0 %4695
    %4697 = vrot.lane.b32.xlu0 %v4405, 64
    %v4698 = vpop.permute.xlu0 %4697
    %4699 = vrot.lane.b32.xlu0 %v4406, 64
    %v4700 = vpop.permute.xlu0 %4699
    %4701 = vrot.lane.b32.xlu0 %v4407, 64
    %v4702 = vpop.permute.xlu0 %4701
    %4703 = vrot.lane.b32.xlu0 %v4408, 64
    %v4704 = vpop.permute.xlu0 %4703
    %4705 = vrot.lane.b32.xlu0 %v4409, 64
    %v4706 = vpop.permute.xlu0 %4705
    %4707 = vrot.lane.b32.xlu0 %v4410, 64
    %v4708 = vpop.permute.xlu0 %4707
    %4709 = vrot.lane.b32.xlu0 %v4411, 64
    %v4710 = vpop.permute.xlu0 %4709
    %4711 = vrot.lane.b32.xlu0 %v4412, 64
    %v4712 = vpop.permute.xlu0 %4711
    %4713 = vrot.lane.b32.xlu0 %v4413, 64
    %v4714 = vpop.permute.xlu0 %4713
    %4715 = vrot.lane.b32.xlu0 %v4414, 64
    %v4716 = vpop.permute.xlu0 %4715
    %4717 = vrot.lane.b32.xlu0 %v4415, 64
    %v4718 = vpop.permute.xlu0 %4717
    %4719 = vrot.lane.b32.xlu0 %v4416, 64
    %v4720 = vpop.permute.xlu0 %4719
    %4721 = vrot.lane.b32.xlu0 %v4417, 64
    %v4722 = vpop.permute.xlu0 %4721
    %4755 = vrot.lane.b32.xlu0 %v4418, 80
    %v4756 = vpop.permute.xlu0 %4755
    %4757 = vrot.lane.b32.xlu0 %v4419, 80
    %v4758 = vpop.permute.xlu0 %4757
    %4759 = vrot.lane.b32.xlu0 %v4420, 80
    %v4760 = vpop.permute.xlu0 %4759
    %4761 = vrot.lane.b32.xlu0 %v4421, 80
    %v4762 = vpop.permute.xlu0 %4761
    %4763 = vrot.lane.b32.xlu0 %v4422, 80
    %v4764 = vpop.permute.xlu0 %4763
    %4765 = vrot.lane.b32.xlu0 %v4423, 80
    %v4766 = vpop.permute.xlu0 %4765
    %4767 = vrot.lane.b32.xlu0 %v4424, 80
    %v4768 = vpop.permute.xlu0 %4767
    %4769 = vrot.lane.b32.xlu0 %v4425, 80
    %v4770 = vpop.permute.xlu0 %4769
    %4771 = vrot.lane.b32.xlu0 %v4426, 80
    %v4772 = vpop.permute.xlu0 %4771
    %4773 = vrot.lane.b32.xlu0 %v4427, 80
    %v4774 = vpop.permute.xlu0 %4773
    %4775 = vrot.lane.b32.xlu0 %v4428, 80
    %v4776 = vpop.permute.xlu0 %4775
    %4777 = vrot.lane.b32.xlu0 %v4429, 80
    %v4778 = vpop.permute.xlu0 %4777
    %4779 = vrot.lane.b32.xlu0 %v4430, 80
    %v4780 = vpop.permute.xlu0 %4779
    %4781 = vrot.lane.b32.xlu0 %v4431, 80
    %v4782 = vpop.permute.xlu0 %4781
    %4783 = vrot.lane.b32.xlu0 %v4432, 80
    %v4784 = vpop.permute.xlu0 %4783
    %4785 = vrot.lane.b32.xlu0 %v4433, 80
    %v4786 = vpop.permute.xlu0 %4785
    %4819 = vrot.lane.b32.xlu0 %v4435, 96
    %v4820 = vpop.permute.xlu0 %4819
    %4821 = vrot.lane.b32.xlu0 %v4436, 96
    %v4822 = vpop.permute.xlu0 %4821
    %4823 = vrot.lane.b32.xlu0 %v4437, 96
    %v4824 = vpop.permute.xlu0 %4823
    %4825 = vrot.lane.b32.xlu0 %v4438, 96
    %v4826 = vpop.permute.xlu0 %4825
    %4827 = vrot.lane.b32.xlu0 %v4439, 96
    %v4828 = vpop.permute.xlu0 %4827
    %4829 = vrot.lane.b32.xlu0 %v4440, 96
    %v4830 = vpop.permute.xlu0 %4829
    %4831 = vrot.lane.b32.xlu0 %v4441, 96
    %v4832 = vpop.permute.xlu0 %4831
    %4833 = vrot.lane.b32.xlu0 %v4442, 96
    %v4834 = vpop.permute.xlu0 %4833
    %4835 = vrot.lane.b32.xlu0 %v4443, 96
    %v4836 = vpop.permute.xlu0 %4835
    %4837 = vrot.lane.b32.xlu0 %v4444, 96
    %v4838 = vpop.permute.xlu0 %4837
    %4839 = vrot.lane.b32.xlu0 %v4445, 96
    %v4840 = vpop.permute.xlu0 %4839
    %4841 = vrot.lane.b32.xlu0 %v4446, 96
    %v4842 = vpop.permute.xlu0 %4841
    %4843 = vrot.lane.b32.xlu0 %v4447, 96
    %v4844 = vpop.permute.xlu0 %4843
    %4845 = vrot.lane.b32.xlu0 %v4448, 96
    %v4846 = vpop.permute.xlu0 %4845
    %4847 = vrot.lane.b32.xlu0 %v4449, 96
    %v4848 = vpop.permute.xlu0 %4847
    %4849 = vrot.lane.b32.xlu0 %v4450, 96
    %v4850 = vpop.permute.xlu0 %4849
    %4883 = vrot.lane.b32.xlu0 %v4451, 112
    %v4884 = vpop.permute.xlu0 %4883
    %4885 = vrot.lane.b32.xlu0 %v4452, 112
    %v4886 = vpop.permute.xlu0 %4885
    %4887 = vrot.lane.b32.xlu0 %v4453, 112
    %v4888 = vpop.permute.xlu0 %4887
    %4889 = vrot.lane.b32.xlu0 %v4454, 112
    %v4890 = vpop.permute.xlu0 %4889
    %4891 = vrot.lane.b32.xlu0 %v4455, 112
    %v4892 = vpop.permute.xlu0 %4891
    %4893 = vrot.lane.b32.xlu0 %v4456, 112
    %v4894 = vpop.permute.xlu0 %4893
    %4895 = vrot.lane.b32.xlu0 %v4457, 112
    %v4896 = vpop.permute.xlu0 %4895
    %4897 = vrot.lane.b32.xlu0 %v4458, 112
    %v4898 = vpop.permute.xlu0 %4897
    %4899 = vrot.lane.b32.xlu0 %v4459, 112
    %v4900 = vpop.permute.xlu0 %4899
    %4901 = vrot.lane.b32.xlu0 %v4460, 112
    %v4902 = vpop.permute.xlu0 %4901
    %4903 = vrot.lane.b32.xlu0 %v4461, 112
    %v4904 = vpop.permute.xlu0 %4903
    %4905 = vrot.lane.b32.xlu0 %v4462, 112
    %v4906 = vpop.permute.xlu0 %4905
    %4907 = vrot.lane.b32.xlu0 %v4463, 112
    %v4908 = vpop.permute.xlu0 %4907
    %4909 = vrot.lane.b32.xlu0 %v4464, 112
    %v4910 = vpop.permute.xlu0 %4909
    %4911 = vrot.lane.b32.xlu0 %v4465, 112
    %v4912 = vpop.permute.xlu0 %4911
    %4913 = vrot.lane.b32.xlu0 %v4466, 112
    %v4914 = vpop.permute.xlu0 %4913
    %v4931 = vsel %vm48, %v4338, %v4500
    %v4932 = vsel %vm48, %v4339, %v4502
    %v4933 = vsel %vm48, %v4340, %v4504
    %v4934 = vsel %vm48, %v4341, %v4506
    %v4935 = vsel %vm48, %v4342, %v4508
    %v4936 = vsel %vm48, %v4343, %v4510
    %v4937 = vsel %vm48, %v4344, %v4512
    %v4938 = vsel %vm48, %v4345, %v4514
    %v4939 = vsel %vm48, %v4346, %v4516
    %v4940 = vsel %vm48, %v4347, %v4518
    %v4941 = vsel %vm48, %v4348, %v4520
    %v4942 = vsel %vm48, %v4349, %v4522
    %v4943 = vsel %vm48, %v4350, %v4524
    %v4944 = vsel %vm48, %v4351, %v4526
    %v4945 = vsel %vm48, %v4352, %v4528
    %v4946 = vsel %vm48, %v4353, %v4530
    %v4947 = vsel %vm90, %v4931, %v4564
    %v4948 = vsel %vm90, %v4932, %v4566
    %v4949 = vsel %vm90, %v4933, %v4568
    %v4950 = vsel %vm90, %v4934, %v4570
    %v4951 = vsel %vm90, %v4935, %v4572
    %v4952 = vsel %vm90, %v4936, %v4574
    %v4953 = vsel %vm90, %v4937, %v4576
    %v4954 = vsel %vm90, %v4938, %v4578
    %v4955 = vsel %vm90, %v4939, %v4580
    %v4956 = vsel %vm90, %v4940, %v4582
    %v4957 = vsel %vm90, %v4941, %v4584
    %v4958 = vsel %vm90, %v4942, %v4586
    %v4959 = vsel %vm90, %v4943, %v4588
    %v4960 = vsel %vm90, %v4944, %v4590
    %v4961 = vsel %vm90, %v4945, %v4592
    %v4962 = vsel %vm90, %v4946, %v4594
    %v4963 = vsel %vm3065, %v4947, %v4628
    %v4964 = vsel %vm3065, %v4948, %v4630
    %v4965 = vsel %vm3065, %v4949, %v4632
    %v4966 = vsel %vm3065, %v4950, %v4634
    %v4967 = vsel %vm3065, %v4951, %v4636
    %v4968 = vsel %vm3065, %v4952, %v4638
    %v4969 = vsel %vm3065, %v4953, %v4640
    %v4970 = vsel %vm3065, %v4954, %v4642
    %v4971 = vsel %vm3065, %v4955, %v4644
    %v4972 = vsel %vm3065, %v4956, %v4646
    %v4973 = vsel %vm3065, %v4957, %v4648
    %v4974 = vsel %vm3065, %v4958, %v4650
    %v4975 = vsel %vm3065, %v4959, %v4652
    %v4976 = vsel %vm3065, %v4960, %v4654
    %v4977 = vsel %vm3065, %v4961, %v4656
    %v4978 = vsel %vm3065, %v4962, %v4658
    %v4979 = vsel %vm3195, %v4963, %v4692
    %v4980 = vsel %vm3195, %v4964, %v4694
    %v4981 = vsel %vm3195, %v4965, %v4696
    %v4982 = vsel %vm3195, %v4966, %v4698
    %v4983 = vsel %vm3195, %v4967, %v4700
    %v4984 = vsel %vm3195, %v4968, %v4702
    %v4985 = vsel %vm3195, %v4969, %v4704
    %v4986 = vsel %vm3195, %v4970, %v4706
    %v4987 = vsel %vm3195, %v4971, %v4708
    %v4988 = vsel %vm3195, %v4972, %v4710
    %v4989 = vsel %vm3195, %v4973, %v4712
    %v4990 = vsel %vm3195, %v4974, %v4714
    %v4991 = vsel %vm3195, %v4975, %v4716
    %v4992 = vsel %vm3195, %v4976, %v4718
    %v4993 = vsel %vm3195, %v4977, %v4720
    %v4994 = vsel %vm3195, %v4978, %v4722
    %vm4995 = vcmask 654336
    %v4996 = vsel %vm4995, %v4979, %v4756
    %v4997 = vsel %vm4995, %v4980, %v4758
    %v4998 = vsel %vm4995, %v4981, %v4760
    %v4999 = vsel %vm4995, %v4982, %v4762
    %v5000 = vsel %vm4995, %v4983, %v4764
    %v5001 = vsel %vm4995, %v4984, %v4766
    %v5002 = vsel %vm4995, %v4985, %v4768
    %v5003 = vsel %vm4995, %v4986, %v4770
    %v5004 = vsel %vm4995, %v4987, %v4772
    %v5005 = vsel %vm4995, %v4988, %v4774
    %v5006 = vsel %vm4995, %v4989, %v4776
    %v5007 = vsel %vm4995, %v4990, %v4778
    %v5008 = vsel %vm4995, %v4991, %v4780
    %v5009 = vsel %vm4995, %v4992, %v4782
    %v5010 = vsel %vm4995, %v4993, %v4784
    %v5011 = vsel %vm4995, %v4994, %v4786
    %vm5012 = vcmask 785408
    %v5013 = vsel %vm5012, %v4996, %v4820
    %v5014 = vsel %vm5012, %v4997, %v4822
    %v5015 = vsel %vm5012, %v4998, %v4824
    %v5016 = vsel %vm5012, %v4999, %v4826
    %v5017 = vsel %vm5012, %v5000, %v4828
    %v5018 = vsel %vm5012, %v5001, %v4830
    %v5019 = vsel %vm5012, %v5002, %v4832
    %v5020 = vsel %vm5012, %v5003, %v4834
    %v5021 = vsel %vm5012, %v5004, %v4836
    %v5022 = vsel %vm5012, %v5005, %v4838
    %v5023 = vsel %vm5012, %v5006, %v4840
    %v5024 = vsel %vm5012, %v5007, %v4842
    %v5025 = vsel %vm5012, %v5008, %v4844
    %v5026 = vsel %vm5012, %v5009, %v4846
    %v5027 = vsel %vm5012, %v5010, %v4848
    %v5028 = vsel %vm5012, %v5011, %v4850
    %vm5029 = vcmask 916480
    %v5030 = vsel %vm5029, %v5013, %v4884
    %v5031 = vsel %vm5029, %v5014, %v4886
    %v5032 = vsel %vm5029, %v5015, %v4888
    %v5033 = vsel %vm5029, %v5016, %v4890
    %v5034 = vsel %vm5029, %v5017, %v4892
    %v5035 = vsel %vm5029, %v5018, %v4894
    %v5036 = vsel %vm5029, %v5019, %v4896
    %v5037 = vsel %vm5029, %v5020, %v4898
    %v5038 = vsel %vm5029, %v5021, %v4900
    %v5039 = vsel %vm5029, %v5022, %v4902
    %v5040 = vsel %vm5029, %v5023, %v4904
    %v5041 = vsel %vm5029, %v5024, %v4906
    %v5042 = vsel %vm5029, %v5025, %v4908
    %v5043 = vsel %vm5029, %v5026, %v4910
    %v5044 = vsel %vm5029, %v5027, %v4912
    %v5045 = vsel %vm5029, %v5028, %v4914
    %v5046 = vld [vmem:[%s3] sm:$0xff]
    %v5047 = vld [vmem:[%s3 + $0x8] sm:$0xff]
    %v5048 = vld [vmem:[%s3 + $0x10] sm:$0xff]
    %v5049 = vld [vmem:[%s3 + $0x18] sm:$0xff]
    %v5050 = vld [vmem:[%s3 + $0x20] sm:$0xff]
    %v5051 = vld [vmem:[%s3 + $0x28] sm:$0xff]
    %v5052 = vld [vmem:[%s3 + $0x30] sm:$0xff]
    %v5053 = vld [vmem:[%s3 + $0x38] sm:$0xff]
    %v5054 = vld [vmem:[%s3 + $0x40] sm:$0xff]
    %v5055 = vld [vmem:[%s3 + $0x48] sm:$0xff]
    %v5056 = vld [vmem:[%s3 + $0x50] sm:$0xff]
    %v5057 = vld [vmem:[%s3 + $0x58] sm:$0xff]
    %v5058 = vld [vmem:[%s3 + $0x60] sm:$0xff]
    %v5059 = vld [vmem:[%s3 + $0x68] sm:$0xff]
    %v5060 = vld [vmem:[%s3 + $0x70] sm:$0xff]
    %v5061 = vld [vmem:[%s3 + $0x78] sm:$0xff]
    %v5062 = vld [vmem:[%s3 + $0x80] sm:$0xff]
    %v5063 = vld [vmem:[%s3 + $0x88] sm:$0xff]
    %v5064 = vld [vmem:[%s4] sm:$0x1]
    %v5066 = vlaneseq
    %v5067 = vshrl.u32 %v5066, 7
    %v5068 = vsub.s32 0, %v5067
    %v5069 = vrot.slane %v5064, %v5068
    %v5072 = vsel %vm48, %v4467, 0
    %v5075 = vsel %vm48, %v4468, 0
    %v5078 = vsel %vm48, %v4469, 0
    %v5081 = vsel %vm48, %v4470, 0
    %v5084 = vsel %vm48, %v4471, 0
    %v5087 = vsel %vm48, %v4472, 0
    %v5090 = vsel %vm48, %v4473, 0
    %v5093 = vsel %vm48, %v4474, 0
    %v5096 = vsel %vm48, %v4475, 0
    %v5099 = vsel %vm48, %v4476, 0
    %v5102 = vsel %vm48, %v4477, 0
    %v5105 = vsel %vm48, %v4478, 0
    %v5108 = vsel %vm48, %v4479, 0
    %v5111 = vsel %vm48, %v4480, 0
    %v5114 = vsel %vm48, %v4481, 0
    %v5117 = vsel %vm48, %v4482, 0
    %5119 = vmatprep.subr.mxu0 0.0
    %5120 = vmatpush1.msra.mxu0 %v5061
    %5121 = vmatprep.subr.mxu0 0.0
    %5122 = vmatpush1.msra.mxu0 %v5060
    %5123 = vmatprep.subr.mxu0 0.0
    %5124 = vmatpush1.msra.mxu0 %v5059
    %5125 = vmatprep.subr.mxu0 0.0
    %5126 = vmatpush1.msra.mxu0 %v5058
    %5127 = vmatprep.subr.mxu0 0.0
    %5128 = vmatpush1.msra.mxu0 %v5057
    %5129 = vmatprep.subr.mxu0 0.0
    %5130 = vmatpush1.msra.mxu0 %v5056
    %5131 = vmatprep.subr.mxu0 0.0
    %5132 = vmatpush1.msra.mxu0 %v5055
    %5133 = vmatprep.subr.mxu0 0.0
    %5134 = vmatpush1.msra.mxu0 %v5054
    %5135 = vmatprep.subr.mxu0 0.0
    %5136 = vmatpush1.msra.mxu0 %v5053
    %5137 = vmatprep.subr.mxu0 0.0
    %5138 = vmatpush1.msra.mxu0 %v5052
    %5139 = vmatprep.subr.mxu0 0.0
    %5140 = vmatpush1.msra.mxu0 %v5051
    %5141 = vmatprep.subr.mxu0 0.0
    %5142 = vmatpush1.msra.mxu0 %v5050
    %5143 = vmatprep.subr.mxu0 0.0
    %5144 = vmatpush1.msra.mxu0 %v5049
    %5145 = vmatprep.subr.mxu0 0.0
    %5146 = vmatpush1.msra.mxu0 %v5048
    %5147 = vmatprep.subr.mxu0 0.0
    %5148 = vmatpush1.msra.mxu0 %v5047
    %5149 = vmatprep.subr.mxu0 0.0
    %5150 = vmatpush1.msra.mxu0 %v5046
    %5151 = vmatprep.subr.mxu0 0.0
    %5152 = vmatpush2.msra.mxu0 0.0
    %5153 = vmatprep.subr.mxu0 0.0
    %5154 = vmatpush2.msra.mxu0 0.0
    %5155 = vmatprep.subr.mxu0 0.0
    %5156 = vmatpush2.msra.mxu0 0.0
    %5157 = vmatprep.subr.mxu0 0.0
    %5158 = vmatpush2.msra.mxu0 0.0
    %5159 = vmatprep.subr.mxu0 0.0
    %5160 = vmatpush2.msra.mxu0 0.0
    %5161 = vmatprep.subr.mxu0 0.0
    %5162 = vmatpush2.msra.mxu0 0.0
    %5163 = vmatprep.subr.mxu0 0.0
    %5164 = vmatpush2.msra.mxu0 0.0
    %5165 = vmatprep.subr.mxu0 0.0
    %5166 = vmatpush2.msra.mxu0 0.0
    %5167 = vmatprep.subr.mxu0 0.0
    %5168 = vmatpush2.msra.mxu0 0.0
    %5169 = vmatprep.subr.mxu0 0.0
    %5170 = vmatpush2.msra.mxu0 0.0
    %5171 = vmatprep.subr.mxu0 0.0
    %5172 = vmatpush2.msra.mxu0 0.0
    %5173 = vmatprep.subr.mxu0 0.0
    %5174 = vmatpush2.msra.mxu0 0.0
    %5175 = vmatprep.subr.mxu0 0.0
    %5176 = vmatpush2.msra.mxu0 0.0
    %5177 = vmatprep.subr.mxu0 0.0
    %5178 = vmatpush2.msra.mxu0 0.0
    %5179 = vmatprep.subr.mxu0 0.0
    %5180 = vmatpush2.msra.mxu0 %v5063
    %5181 = vmatprep.subr.mxu0 0.0
    %5182 = vmatpush2.msra.mxu0 %v5062
    %5183 = vmatprep.mubr.f32.mxu0 %v5072
    %5184 = vmatmul.mubr.f32.gmra.mxu0 %v5030
    %v5185 = vpop.f32.mrf.mxu0
    %v5186 = vadd.f32 %v5069, %v5185
    %v5187 = vpop.f32.mrf.mxu0
    %5188 = vmatprep.mubr.f32.mxu0 %v5075
    %5189 = vmatmul.mubr.f32.gmra.mxu0 %v5031
    %v5190 = vpop.f32.mrf.mxu0
    %v5191 = vadd.f32 %v5069, %v5190
    %v5192 = vpop.f32.mrf.mxu0
    %5193 = vmatprep.mubr.f32.mxu0 %v5078
    %5194 = vmatmul.mubr.f32.gmra.mxu0 %v5032
    %v5195 = vpop.f32.mrf.mxu0
    %v5196 = vadd.f32 %v5069, %v5195
    %v5197 = vpop.f32.mrf.mxu0
    %5198 = vmatprep.mubr.f32.mxu0 %v5081
    %5199 = vmatmul.mubr.f32.gmra.mxu0 %v5033
    %v5200 = vpop.f32.mrf.mxu0
    %v5201 = vadd.f32 %v5069, %v5200
    %v5202 = vpop.f32.mrf.mxu0
    %5203 = vmatprep.mubr.f32.mxu0 %v5084
    %5204 = vmatmul.mubr.f32.gmra.mxu0 %v5034
    %v5205 = vpop.f32.mrf.mxu0
    %v5206 = vadd.f32 %v5069, %v5205
    %v5207 = vpop.f32.mrf.mxu0
    %5208 = vmatprep.mubr.f32.mxu0 %v5087
    %5209 = vmatmul.mubr.f32.gmra.mxu0 %v5035
    %v5210 = vpop.f32.mrf.mxu0
    %v5211 = vadd.f32 %v5069, %v5210
    %v5212 = vpop.f32.mrf.mxu0
    %5213 = vmatprep.mubr.f32.mxu0 %v5090
    %5214 = vmatmul.mubr.f32.gmra.mxu0 %v5036
    %v5215 = vpop.f32.mrf.mxu0
    %v5216 = vadd.f32 %v5069, %v5215
    %v5217 = vpop.f32.mrf.mxu0
    %5218 = vmatprep.mubr.f32.mxu0 %v5093
    %5219 = vmatmul.mubr.f32.gmra.mxu0 %v5037
    %v5220 = vpop.f32.mrf.mxu0
    %v5221 = vadd.f32 %v5069, %v5220
    %v5222 = vpop.f32.mrf.mxu0
    %5223 = vmatprep.mubr.f32.mxu0 %v5096
    %5224 = vmatmul.mubr.f32.gmra.mxu0 %v5038
    %v5225 = vpop.f32.mrf.mxu0
    %v5226 = vadd.f32 %v5069, %v5225
    %v5227 = vpop.f32.mrf.mxu0
    %5228 = vmatprep.mubr.f32.mxu0 %v5099
    %5229 = vmatmul.mubr.f32.gmra.mxu0 %v5039
    %v5230 = vpop.f32.mrf.mxu0
    %v5231 = vadd.f32 %v5069, %v5230
    %v5232 = vpop.f32.mrf.mxu0
    %5233 = vmatprep.mubr.f32.mxu0 %v5102
    %5234 = vmatmul.mubr.f32.gmra.mxu0 %v5040
    %v5235 = vpop.f32.mrf.mxu0
    %v5236 = vadd.f32 %v5069, %v5235
    %v5237 = vpop.f32.mrf.mxu0
    %5238 = vmatprep.mubr.f32.mxu0 %v5105
    %5239 = vmatmul.mubr.f32.gmra.mxu0 %v5041
    %v5240 = vpop.f32.mrf.mxu0
    %v5241 = vadd.f32 %v5069, %v5240
    %v5242 = vpop.f32.mrf.mxu0
    %5243 = vmatprep.mubr.f32.mxu0 %v5108
    %5244 = vmatmul.mubr.f32.gmra.mxu0 %v5042
    %v5245 = vpop.f32.mrf.mxu0
    %v5246 = vadd.f32 %v5069, %v5245
    %v5247 = vpop.f32.mrf.mxu0
    %5248 = vmatprep.mubr.f32.mxu0 %v5111
    %5249 = vmatmul.mubr.f32.gmra.mxu0 %v5043
    %v5250 = vpop.f32.mrf.mxu0
    %v5251 = vadd.f32 %v5069, %v5250
    %v5252 = vpop.f32.mrf.mxu0
    %5253 = vmatprep.mubr.f32.mxu0 %v5114
    %5254 = vmatmul.mubr.f32.gmra.mxu0 %v5044
    %v5255 = vpop.f32.mrf.mxu0
    %v5256 = vadd.f32 %v5069, %v5255
    %v5257 = vpop.f32.mrf.mxu0
    %5258 = vmatprep.mubr.f32.mxu0 %v5117
    %5259 = vmatmul.mubr.f32.gmra.mxu0 %v5045
    %v5260 = vpop.f32.mrf.mxu0
    %v5261 = vadd.f32 %v5069, %v5260
    %v5262 = vpop.f32.mrf.mxu0
    %5263 = vdwg.mxu0
    %v5264 = vmax.f32 %v5186, 0.0
    %v5265 = vmax.f32 %v5191, 0.0
    %v5266 = vmax.f32 %v5196, 0.0
    %v5267 = vmax.f32 %v5201, 0.0
    %v5268 = vmax.f32 %v5206, 0.0
    %v5269 = vmax.f32 %v5211, 0.0
    %v5270 = vmax.f32 %v5216, 0.0
    %v5271 = vmax.f32 %v5221, 0.0
    %v5272 = vmax.f32 %v5226, 0.0
    %v5273 = vmax.f32 %v5231, 0.0
    %v5274 = vmax.f32 %v5236, 0.0
    %v5275 = vmax.f32 %v5241, 0.0
    %v5276 = vmax.f32 %v5246, 0.0
    %v5277 = vmax.f32 %v5251, 0.0
    %v5278 = vmax.f32 %v5256, 0.0
    %v5279 = vmax.f32 %v5261, 0.0
    %v5280 = vmax.f32 %v5264, %v5265
    %v5281 = vmax.f32 %v5266, %v5267
    %v5282 = vmax.f32 %v5268, %v5269
    %v5283 = vmax.f32 %v5270, %v5271
    %v5284 = vmax.f32 %v5272, %v5273
    %v5285 = vmax.f32 %v5274, %v5275
    %v5286 = vmax.f32 %v5276, %v5277
    %v5287 = vmax.f32 %v5278, %v5279
    %v5288 = vld [vmem:[%s8] sm:$0xff]
    %v5289 = vld [vmem:[%s8 + $0x8] sm:$0xff]
    %v5290 = vld [vmem:[%s8 + $0x10] sm:$0xff]
    %v5291 = vld [vmem:[%s8 + $0x18] sm:$0xff]
    %v5293 = vsel %vm3195, %v5288, 0
    %v5296 = vsel %vm3195, %v5289, 0
    %v5299 = vsel %vm3195, %v5290, 0
    %v5302 = vsel %vm3195, %v5291, 0
    %5304 = vmatprep.subr.mxu0 0.0
    %5305 = vmatpush1.msra.mxu0 0.0
    %5306 = vmatprep.subr.mxu0 0.0
    %5307 = vmatpush1.msra.mxu0 0.0
    %5308 = vmatprep.subr.mxu0 0.0
    %5309 = vmatpush1.msra.mxu0 0.0
    %5310 = vmatprep.subr.mxu0 0.0
    %5311 = vmatpush1.msra.mxu0 0.0
    %5312 = vmatprep.subr.mxu0 0.0
    %5313 = vmatpush1.msra.mxu0 0.0
    %5314 = vmatprep.subr.mxu0 0.0
    %5315 = vmatpush1.msra.mxu0 0.0
    %5316 = vmatprep.subr.mxu0 0.0
    %5317 = vmatpush1.msra.mxu0 0.0
    %5318 = vmatprep.subr.mxu0 0.0
    %5319 = vmatpush1.msra.mxu0 0.0
    %5320 = vmatprep.subr.mxu0 0.0
    %5321 = vmatpush1.msra.mxu0 %v5287
    %5322 = vmatprep.subr.mxu0 0.0
    %5323 = vmatpush1.msra.mxu0 %v5286
    %5324 = vmatprep.subr.mxu0 0.0
    %5325 = vmatpush1.msra.mxu0 %v5285
    %5326 = vmatprep.subr.mxu0 0.0
    %5327 = vmatpush1.msra.mxu0 %v5284
    %5328 = vmatprep.subr.mxu0 0.0
    %5329 = vmatpush1.msra.mxu0 %v5283
    %5330 = vmatprep.subr.mxu0 0.0
    %5331 = vmatpush1.msra.mxu0 %v5282
    %5332 = vmatprep.subr.mxu0 0.0
    %5333 = vmatpush1.msra.mxu0 %v5281
    %5334 = vmatprep.subr.mxu0 0.0
    %5335 = vmatpush1.msra.mxu0 %v5280
    %5336 = vmatprep.subr.mxu0 0.0
    %5337 = vmatpush2.msra.mxu0 0.0
    %5338 = vmatprep.subr.mxu0 0.0
    %5339 = vmatpush2.msra.mxu0 0.0
    %5340 = vmatprep.subr.mxu0 0.0
    %5341 = vmatpush2.msra.mxu0 0.0
    %5342 = vmatprep.subr.mxu0 0.0
    %5343 = vmatpush2.msra.mxu0 0.0
    %5344 = vmatprep.subr.mxu0 0.0
    %5345 = vmatpush2.msra.mxu0 0.0
    %5346 = vmatprep.subr.mxu0 0.0
    %5347 = vmatpush2.msra.mxu0 0.0
    %5348 = vmatprep.subr.mxu0 0.0
    %5349 = vmatpush2.msra.mxu0 0.0
    %5350 = vmatprep.subr.mxu0 0.0
    %5351 = vmatpush2.msra.mxu0 0.0
    %5352 = vmatprep.subr.mxu0 0.0
    %5353 = vmatpush2.msra.mxu0 0.0
    %5354 = vmatprep.subr.mxu0 0.0
    %5355 = vmatpush2.msra.mxu0 0.0
    %5356 = vmatprep.subr.mxu0 0.0
    %5357 = vmatpush2.msra.mxu0 0.0
    %5358 = vmatprep.subr.mxu0 0.0
    %5359 = vmatpush2.msra.mxu0 0.0
    %5360 = vmatprep.subr.mxu0 0.0
    %5361 = vmatpush2.msra.mxu0 0.0
    %5362 = vmatprep.subr.mxu0 0.0
    %5363 = vmatpush2.msra.mxu0 0.0
    %5364 = vmatprep.subr.mxu0 0.0
    %5365 = vmatpush2.msra.mxu0 0.0
    %5366 = vmatprep.subr.mxu0 0.0
    %5367 = vmatpush2.msra.mxu0 0.0
    %5368 = vmatprep.mubr.f32.mxu0 0.0
    %5369 = vmatmul.mubr.f32.gmra.mxu0 %v5293
    %v5370 = vpop.f32.mrf.mxu0
    %v5371 = vadd.f32 0.0, %v5370
    %v5372 = vpop.f32.mrf.mxu0
    %5373 = vmatprep.mubr.f32.mxu0 0.0
    %5374 = vmatmul.mubr.f32.gmra.mxu0 %v5296
    %v5375 = vpop.f32.mrf.mxu0
    %v5376 = vadd.f32 0.0, %v5375
    %v5377 = vpop.f32.mrf.mxu0
    %5378 = vmatprep.mubr.f32.mxu0 0.0
    %5379 = vmatmul.mubr.f32.gmra.mxu0 %v5299
    %v5380 = vpop.f32.mrf.mxu0
    %v5381 = vadd.f32 0.0, %v5380
    %v5382 = vpop.f32.mrf.mxu0
    %5383 = vmatprep.mubr.f32.mxu0 0.0
    %5384 = vmatmul.mubr.f32.gmra.mxu0 %v5302
    %v5385 = vpop.f32.mrf.mxu0
    %v5386 = vadd.f32 0.0, %v5385
    %v5387 = vpop.f32.mrf.mxu0
    %5388 = vdwg.mxu0
    %s5389 = scalar_lea.vmem %s8, 32
    %v5390 = vld [vmem:[%s5389] sm:$0xff]
    %v5391 = vld [vmem:[%s5389 + $0x8] sm:$0xff]
    %v5392 = vld [vmem:[%s5389 + $0x10] sm:$0xff]
    %v5393 = vld [vmem:[%s5389 + $0x18] sm:$0xff]
    %v5395 = vsel %vm3195, %v5390, 0
    %v5398 = vsel %vm3195, %v5391, 0
    %v5401 = vsel %vm3195, %v5392, 0
    %v5404 = vsel %vm3195, %v5393, 0
    %5406 = vmatprep.subr.mxu0 0.0
    %5407 = vmatpush1.msra.mxu0 0.0
    %5408 = vmatprep.subr.mxu0 0.0
    %5409 = vmatpush1.msra.mxu0 0.0
    %5410 = vmatprep.subr.mxu0 0.0
    %5411 = vmatpush1.msra.mxu0 0.0
    %5412 = vmatprep.subr.mxu0 0.0
    %5413 = vmatpush1.msra.mxu0 0.0
    %5414 = vmatprep.subr.mxu0 0.0
    %5415 = vmatpush1.msra.mxu0 0.0
    %5416 = vmatprep.subr.mxu0 0.0
    %5417 = vmatpush1.msra.mxu0 0.0
    %5418 = vmatprep.subr.mxu0 0.0
    %5419 = vmatpush1.msra.mxu0 0.0
    %5420 = vmatprep.subr.mxu0 0.0
    %5421 = vmatpush1.msra.mxu0 0.0
    %5422 = vmatprep.subr.mxu0 0.0
    %5423 = vmatpush1.msra.mxu0 %v5287
    %5424 = vmatprep.subr.mxu0 0.0
    %5425 = vmatpush1.msra.mxu0 %v5286
    %5426 = vmatprep.subr.mxu0 0.0
    %5427 = vmatpush1.msra.mxu0 %v5285
    %5428 = vmatprep.subr.mxu0 0.0
    %5429 = vmatpush1.msra.mxu0 %v5284
    %5430 = vmatprep.subr.mxu0 0.0
    %5431 = vmatpush1.msra.mxu0 %v5283
    %5432 = vmatprep.subr.mxu0 0.0
    %5433 = vmatpush1.msra.mxu0 %v5282
    %5434 = vmatprep.subr.mxu0 0.0
    %5435 = vmatpush1.msra.mxu0 %v5281
    %5436 = vmatprep.subr.mxu0 0.0
    %5437 = vmatpush1.msra.mxu0 %v5280
    %5438 = vmatprep.subr.mxu0 0.0
    %5439 = vmatpush2.msra.mxu0 0.0
    %5440 = vmatprep.subr.mxu0 0.0
    %5441 = vmatpush2.msra.mxu0 0.0
    %5442 = vmatprep.subr.mxu0 0.0
    %5443 = vmatpush2.msra.mxu0 0.0
    %5444 = vmatprep.subr.mxu0 0.0
    %5445 = vmatpush2.msra.mxu0 0.0
    %5446 = vmatprep.subr.mxu0 0.0
    %5447 = vmatpush2.msra.mxu0 0.0
    %5448 = vmatprep.subr.mxu0 0.0
    %5449 = vmatpush2.msra.mxu0 0.0
    %5450 = vmatprep.subr.mxu0 0.0
    %5451 = vmatpush2.msra.mxu0 0.0
    %5452 = vmatprep.subr.mxu0 0.0
    %5453 = vmatpush2.msra.mxu0 0.0
    %5454 = vmatprep.subr.mxu0 0.0
    %5455 = vmatpush2.msra.mxu0 0.0
    %5456 = vmatprep.subr.mxu0 0.0
    %5457 = vmatpush2.msra.mxu0 0.0
    %5458 = vmatprep.subr.mxu0 0.0
    %5459 = vmatpush2.msra.mxu0 0.0
    %5460 = vmatprep.subr.mxu0 0.0
    %5461 = vmatpush2.msra.mxu0 0.0
    %5462 = vmatprep.subr.mxu0 0.0
    %5463 = vmatpush2.msra.mxu0 0.0
    %5464 = vmatprep.subr.mxu0 0.0
    %5465 = vmatpush2.msra.mxu0 0.0
    %5466 = vmatprep.subr.mxu0 0.0
    %5467 = vmatpush2.msra.mxu0 0.0
    %5468 = vmatprep.subr.mxu0 0.0
    %5469 = vmatpush2.msra.mxu0 0.0
    %5470 = vmatprep.mubr.f32.mxu0 0.0
    %5471 = vmatmul.mubr.f32.gmra.mxu0 %v5395
    %v5472 = vpop.f32.mrf.mxu0
    %v5473 = vadd.f32 0.0, %v5472
    %v5474 = vpop.f32.mrf.mxu0
    %5475 = vmatprep.mubr.f32.mxu0 0.0
    %5476 = vmatmul.mubr.f32.gmra.mxu0 %v5398
    %v5477 = vpop.f32.mrf.mxu0
    %v5478 = vadd.f32 0.0, %v5477
    %v5479 = vpop.f32.mrf.mxu0
    %5480 = vmatprep.mubr.f32.mxu0 0.0
    %5481 = vmatmul.mubr.f32.gmra.mxu0 %v5401
    %v5482 = vpop.f32.mrf.mxu0
    %v5483 = vadd.f32 0.0, %v5482
    %v5484 = vpop.f32.mrf.mxu0
    %5485 = vmatprep.mubr.f32.mxu0 0.0
    %5486 = vmatmul.mubr.f32.gmra.mxu0 %v5404
    %v5487 = vpop.f32.mrf.mxu0
    %v5488 = vadd.f32 0.0, %v5487
    %v5489 = vpop.f32.mrf.mxu0
    %5490 = vdwg.mxu0
    %v5491 = vmax.f32 %v5371, %v5473
    %v5492 = vmax.f32 %v5376, %v5478
    %v5493 = vmax.f32 %v5381, %v5483
    %v5494 = vmax.f32 %v5386, %v5488
    %v5499 = vcombine.high %v5491, %v5491
    %v5500 = vcombine.high %v5492, %v5492
    %v5501 = vcombine.high %v5493, %v5493
    %v5502 = vcombine.high %v5494, %v5494
    %s5507 = scalar_lea.vmem [#allocation3], 16
    %vm5508 = vcmask 257024
    %5509 = vst.msk [vmem:[%s5507 + $0x1] sm:$0xf] %vm5508, %v5491
    %5510 = vst.msk [vmem:[%s5507 + $0x11] sm:$0xf] %vm5508, %v5499
    %5511 = vst.msk [vmem:[%s5507 + $0x21] sm:$0xf] %vm5508, %v5492
    %5512 = vst.msk [vmem:[%s5507 + $0x31] sm:$0xf] %vm5508, %v5500
    %5513 = vst.msk [vmem:[%s5507 + $0x61] sm:$0xf] %vm5508, %v5493
    %5514 = vst.msk [vmem:[%s5507 + $0x71] sm:$0xf] %vm5508, %v5501
    %5515 = vst.msk [vmem:[%s5507 + $0x81] sm:$0xf] %vm5508, %v5494
    %5516 = vst.msk [vmem:[%s5507 + $0x91] sm:$0xf] %vm5508, %v5502
    %v5517 = vld [vmem:[#allocation3] sm:$0xff]
    %v5518 = vld [vmem:[#allocation3 + $0x10] sm:$0xff]
    %v5519 = vld [vmem:[#allocation3 + $0x20] sm:$0xff]
    %v5520 = vld [vmem:[#allocation3 + $0x30] sm:$0xff]
    %v5521 = vld [vmem:[#allocation3 + $0x60] sm:$0xff]
    %v5522 = vld [vmem:[#allocation3 + $0x70] sm:$0xff]
    %v5523 = vld [vmem:[#allocation3 + $0x80] sm:$0xff]
    %v5524 = vld [vmem:[#allocation3 + $0x90] sm:$0xff]
    %v5525 = vld [vmem:[#allocation3 + $0x1] sm:$0xff]
    %v5526 = vld [vmem:[#allocation3 + $0x11] sm:$0xff]
    %v5527 = vld [vmem:[#allocation3 + $0x21] sm:$0xff]
    %v5528 = vld [vmem:[#allocation3 + $0x31] sm:$0xff]
    %v5529 = vld [vmem:[#allocation3 + $0x61] sm:$0xff]
    %v5530 = vld [vmem:[#allocation3 + $0x71] sm:$0xff]
    %v5531 = vld [vmem:[#allocation3 + $0x81] sm:$0xff]
    %v5532 = vld [vmem:[#allocation3 + $0x91] sm:$0xff]
    %v5533 = vld [vmem:[#allocation3 + $0x2] sm:$0xff]
    %v5534 = vld [vmem:[#allocation3 + $0x12] sm:$0xff]
    %v5535 = vld [vmem:[#allocation3 + $0x22] sm:$0xff]
    %v5536 = vld [vmem:[#allocation3 + $0x32] sm:$0xff]
    %v5537 = vld [vmem:[#allocation3 + $0x62] sm:$0xff]
    %v5538 = vld [vmem:[#allocation3 + $0x72] sm:$0xff]
    %v5539 = vld [vmem:[#allocation3 + $0x82] sm:$0xff]
    %v5540 = vld [vmem:[#allocation3 + $0x92] sm:$0xff]
    %v5541 = vld [vmem:[%s5507] sm:$0xff]
    %v5542 = vld [vmem:[%s5507 + $0x10] sm:$0xff]
    %v5543 = vld [vmem:[%s5507 + $0x20] sm:$0xff]
    %v5544 = vld [vmem:[%s5507 + $0x30] sm:$0xff]
    %v5545 = vld [vmem:[%s5507 + $0x60] sm:$0xff]
    %v5546 = vld [vmem:[%s5507 + $0x70] sm:$0xff]
    %v5547 = vld [vmem:[%s5507 + $0x80] sm:$0xff]
    %v5548 = vld [vmem:[%s5507 + $0x90] sm:$0xff]
    %v5549 = vld [vmem:[%s5507 + $0x1] sm:$0xff]
    %v5550 = vld [vmem:[%s5507 + $0x11] sm:$0xff]
    %v5551 = vld [vmem:[%s5507 + $0x21] sm:$0xff]
    %v5552 = vld [vmem:[%s5507 + $0x31] sm:$0xff]
    %v5553 = vld [vmem:[%s5507 + $0x61] sm:$0xff]
    %v5554 = vld [vmem:[%s5507 + $0x71] sm:$0xff]
    %v5555 = vld [vmem:[%s5507 + $0x81] sm:$0xff]
    %v5556 = vld [vmem:[%s5507 + $0x91] sm:$0xff]
    %v5557 = vld [vmem:[%s5507 + $0x2] sm:$0xff]
    %v5558 = vld [vmem:[%s5507 + $0x12] sm:$0xff]
    %v5559 = vld [vmem:[%s5507 + $0x22] sm:$0xff]
    %v5560 = vld [vmem:[%s5507 + $0x32] sm:$0xff]
    %v5561 = vld [vmem:[%s5507 + $0x62] sm:$0xff]
    %v5562 = vld [vmem:[%s5507 + $0x72] sm:$0xff]
    %v5563 = vld [vmem:[%s5507 + $0x82] sm:$0xff]
    %v5564 = vld [vmem:[%s5507 + $0x92] sm:$0xff]
    %s5565 = scalar_lea.vmem [#allocation3], 32
    %v5566 = vld [vmem:[%s5565] sm:$0xff]
    %v5567 = vld [vmem:[%s5565 + $0x10] sm:$0xff]
    %v5568 = vld [vmem:[%s5565 + $0x20] sm:$0xff]
    %v5569 = vld [vmem:[%s5565 + $0x30] sm:$0xff]
    %v5570 = vld [vmem:[%s5565 + $0x60] sm:$0xff]
    %v5571 = vld [vmem:[%s5565 + $0x70] sm:$0xff]
    %v5572 = vld [vmem:[%s5565 + $0x80] sm:$0xff]
    %v5573 = vld [vmem:[%s5565 + $0x90] sm:$0xff]
    %v5574 = vld [vmem:[%s5565 + $0x1] sm:$0xff]
    %v5575 = vld [vmem:[%s5565 + $0x11] sm:$0xff]
    %v5576 = vld [vmem:[%s5565 + $0x21] sm:$0xff]
    %v5577 = vld [vmem:[%s5565 + $0x31] sm:$0xff]
    %v5578 = vld [vmem:[%s5565 + $0x61] sm:$0xff]
    %v5579 = vld [vmem:[%s5565 + $0x71] sm:$0xff]
    %v5580 = vld [vmem:[%s5565 + $0x81] sm:$0xff]
    %v5581 = vld [vmem:[%s5565 + $0x91] sm:$0xff]
    %v5582 = vld [vmem:[%s5565 + $0x2] sm:$0xff]
    %v5583 = vld [vmem:[%s5565 + $0x12] sm:$0xff]
    %v5584 = vld [vmem:[%s5565 + $0x22] sm:$0xff]
    %v5585 = vld [vmem:[%s5565 + $0x32] sm:$0xff]
    %v5586 = vld [vmem:[%s5565 + $0x62] sm:$0xff]
    %v5587 = vld [vmem:[%s5565 + $0x72] sm:$0xff]
    %v5588 = vld [vmem:[%s5565 + $0x82] sm:$0xff]
    %v5589 = vld [vmem:[%s5565 + $0x92] sm:$0xff]
    %5598 = vrot.lane.b32.xlu0 %v5525, 32
    %v5599 = vpop.permute.xlu0 %5598
    %5600 = vrot.lane.b32.xlu0 %v5526, 32
    %v5601 = vpop.permute.xlu0 %5600
    %5602 = vrot.lane.b32.xlu0 %v5527, 32
    %v5603 = vpop.permute.xlu0 %5602
    %5604 = vrot.lane.b32.xlu0 %v5528, 32
    %v5605 = vpop.permute.xlu0 %5604
    %5606 = vrot.lane.b32.xlu0 %v5529, 32
    %v5607 = vpop.permute.xlu0 %5606
    %5608 = vrot.lane.b32.xlu0 %v5530, 32
    %v5609 = vpop.permute.xlu0 %5608
    %5610 = vrot.lane.b32.xlu0 %v5531, 32
    %v5611 = vpop.permute.xlu0 %5610
    %5612 = vrot.lane.b32.xlu0 %v5532, 32
    %v5613 = vpop.permute.xlu0 %5612
    %5630 = vrot.lane.b32.xlu0 %v5533, 64
    %v5631 = vpop.permute.xlu0 %5630
    %5632 = vrot.lane.b32.xlu0 %v5534, 64
    %v5633 = vpop.permute.xlu0 %5632
    %5634 = vrot.lane.b32.xlu0 %v5535, 64
    %v5635 = vpop.permute.xlu0 %5634
    %5636 = vrot.lane.b32.xlu0 %v5536, 64
    %v5637 = vpop.permute.xlu0 %5636
    %5638 = vrot.lane.b32.xlu0 %v5537, 64
    %v5639 = vpop.permute.xlu0 %5638
    %5640 = vrot.lane.b32.xlu0 %v5538, 64
    %v5641 = vpop.permute.xlu0 %5640
    %5642 = vrot.lane.b32.xlu0 %v5539, 64
    %v5643 = vpop.permute.xlu0 %5642
    %5644 = vrot.lane.b32.xlu0 %v5540, 64
    %v5645 = vpop.permute.xlu0 %5644
    %5662 = vrot.lane.b32.xlu0 %v5541, 96
    %v5663 = vpop.permute.xlu0 %5662
    %5664 = vrot.lane.b32.xlu0 %v5542, 96
    %v5665 = vpop.permute.xlu0 %5664
    %5666 = vrot.lane.b32.xlu0 %v5543, 96
    %v5667 = vpop.permute.xlu0 %5666
    %5668 = vrot.lane.b32.xlu0 %v5544, 96
    %v5669 = vpop.permute.xlu0 %5668
    %5670 = vrot.lane.b32.xlu0 %v5545, 96
    %v5671 = vpop.permute.xlu0 %5670
    %5672 = vrot.lane.b32.xlu0 %v5546, 96
    %v5673 = vpop.permute.xlu0 %5672
    %5674 = vrot.lane.b32.xlu0 %v5547, 96
    %v5675 = vpop.permute.xlu0 %5674
    %5676 = vrot.lane.b32.xlu0 %v5548, 96
    %v5677 = vpop.permute.xlu0 %5676
    %5694 = vrot.lane.b32.xlu0 %v5557, 32
    %v5695 = vpop.permute.xlu0 %5694
    %5696 = vrot.lane.b32.xlu0 %v5558, 32
    %v5697 = vpop.permute.xlu0 %5696
    %5698 = vrot.lane.b32.xlu0 %v5559, 32
    %v5699 = vpop.permute.xlu0 %5698
    %5700 = vrot.lane.b32.xlu0 %v5560, 32
    %v5701 = vpop.permute.xlu0 %5700
    %5702 = vrot.lane.b32.xlu0 %v5561, 32
    %v5703 = vpop.permute.xlu0 %5702
    %5704 = vrot.lane.b32.xlu0 %v5562, 32
    %v5705 = vpop.permute.xlu0 %5704
    %5706 = vrot.lane.b32.xlu0 %v5563, 32
    %v5707 = vpop.permute.xlu0 %5706
    %5708 = vrot.lane.b32.xlu0 %v5564, 32
    %v5709 = vpop.permute.xlu0 %5708
    %5726 = vrot.lane.b32.xlu0 %v5566, 64
    %v5727 = vpop.permute.xlu0 %5726
    %5728 = vrot.lane.b32.xlu0 %v5567, 64
    %v5729 = vpop.permute.xlu0 %5728
    %5730 = vrot.lane.b32.xlu0 %v5568, 64
    %v5731 = vpop.permute.xlu0 %5730
    %5732 = vrot.lane.b32.xlu0 %v5569, 64
    %v5733 = vpop.permute.xlu0 %5732
    %5734 = vrot.lane.b32.xlu0 %v5570, 64
    %v5735 = vpop.permute.xlu0 %5734
    %5736 = vrot.lane.b32.xlu0 %v5571, 64
    %v5737 = vpop.permute.xlu0 %5736
    %5738 = vrot.lane.b32.xlu0 %v5572, 64
    %v5739 = vpop.permute.xlu0 %5738
    %5740 = vrot.lane.b32.xlu0 %v5573, 64
    %v5741 = vpop.permute.xlu0 %5740
    %5758 = vrot.lane.b32.xlu0 %v5574, 96
    %v5759 = vpop.permute.xlu0 %5758
    %5760 = vrot.lane.b32.xlu0 %v5575, 96
    %v5761 = vpop.permute.xlu0 %5760
    %5762 = vrot.lane.b32.xlu0 %v5576, 96
    %v5763 = vpop.permute.xlu0 %5762
    %5764 = vrot.lane.b32.xlu0 %v5577, 96
    %v5765 = vpop.permute.xlu0 %5764
    %5766 = vrot.lane.b32.xlu0 %v5578, 96
    %v5767 = vpop.permute.xlu0 %5766
    %5768 = vrot.lane.b32.xlu0 %v5579, 96
    %v5769 = vpop.permute.xlu0 %5768
    %5770 = vrot.lane.b32.xlu0 %v5580, 96
    %v5771 = vpop.permute.xlu0 %5770
    %5772 = vrot.lane.b32.xlu0 %v5581, 96
    %v5773 = vpop.permute.xlu0 %5772
    %v5782 = vsel %vm90, %v5517, %v5599
    %v5783 = vsel %vm90, %v5518, %v5601
    %v5784 = vsel %vm90, %v5519, %v5603
    %v5785 = vsel %vm90, %v5520, %v5605
    %v5786 = vsel %vm90, %v5521, %v5607
    %v5787 = vsel %vm90, %v5522, %v5609
    %v5788 = vsel %vm90, %v5523, %v5611
    %v5789 = vsel %vm90, %v5524, %v5613
    %v5790 = vsel %vm3195, %v5782, %v5631
    %v5791 = vsel %vm3195, %v5783, %v5633
    %v5792 = vsel %vm3195, %v5784, %v5635
    %v5793 = vsel %vm3195, %v5785, %v5637
    %v5794 = vsel %vm3195, %v5786, %v5639
    %v5795 = vsel %vm3195, %v5787, %v5641
    %v5796 = vsel %vm3195, %v5788, %v5643
    %v5797 = vsel %vm3195, %v5789, %v5645
    %v5798 = vsel %vm5012, %v5790, %v5663
    %v5799 = vsel %vm5012, %v5791, %v5665
    %v5800 = vsel %vm5012, %v5792, %v5667
    %v5801 = vsel %vm5012, %v5793, %v5669
    %v5802 = vsel %vm5012, %v5794, %v5671
    %v5803 = vsel %vm5012, %v5795, %v5673
    %v5804 = vsel %vm5012, %v5796, %v5675
    %v5805 = vsel %vm5012, %v5797, %v5677
    %v5806 = vsel %vm90, %v5549, %v5695
    %v5807 = vsel %vm90, %v5550, %v5697
    %v5808 = vsel %vm90, %v5551, %v5699
    %v5809 = vsel %vm90, %v5552, %v5701
    %v5810 = vsel %vm90, %v5553, %v5703
    %v5811 = vsel %vm90, %v5554, %v5705
    %v5812 = vsel %vm90, %v5555, %v5707
    %v5813 = vsel %vm90, %v5556, %v5709
    %v5814 = vsel %vm3195, %v5806, %v5727
    %v5815 = vsel %vm3195, %v5807, %v5729
    %v5816 = vsel %vm3195, %v5808, %v5731
    %v5817 = vsel %vm3195, %v5809, %v5733
    %v5818 = vsel %vm3195, %v5810, %v5735
    %v5819 = vsel %vm3195, %v5811, %v5737
    %v5820 = vsel %vm3195, %v5812, %v5739
    %v5821 = vsel %vm3195, %v5813, %v5741
    %v5822 = vsel %vm5012, %v5814, %v5759
    %v5823 = vsel %vm5012, %v5815, %v5761
    %v5824 = vsel %vm5012, %v5816, %v5763
    %v5825 = vsel %vm5012, %v5817, %v5765
    %v5826 = vsel %vm5012, %v5818, %v5767
    %v5827 = vsel %vm5012, %v5819, %v5769
    %v5828 = vsel %vm5012, %v5820, %v5771
    %v5829 = vsel %vm5012, %v5821, %v5773
    %v5830 = vld [vmem:[%s5] sm:$0xff]
    %v5831 = vld [vmem:[%s5 + $0x8] sm:$0xff]
    %v5832 = vld [vmem:[%s5 + $0x10] sm:$0xff]
    %v5833 = vld [vmem:[%s5 + $0x18] sm:$0xff]
    %v5834 = vld [vmem:[%s5 + $0x20] sm:$0xff]
    %v5835 = vld [vmem:[%s5 + $0x28] sm:$0xff]
    %v5836 = vld [vmem:[%s5 + $0x30] sm:$0xff]
    %v5837 = vld [vmem:[%s5 + $0x38] sm:$0xff]
    %v5838 = vld [vmem:[%s5 + $0x40] sm:$0xff]
    %v5839 = vld [vmem:[%s5 + $0x48] sm:$0xff]
    %v5840 = vld [vmem:[%s5 + $0x50] sm:$0xff]
    %v5841 = vld [vmem:[%s5 + $0x58] sm:$0xff]
    %v5842 = vld [vmem:[%s5 + $0x60] sm:$0xff]
    %v5843 = vld [vmem:[%s5 + $0x68] sm:$0xff]
    %v5844 = vld [vmem:[%s5 + $0x70] sm:$0xff]
    %v5845 = vld [vmem:[%s5 + $0x78] sm:$0xff]
    %v5846 = vld [vmem:[%s5 + $0x80] sm:$0xff]
    %v5847 = vld [vmem:[%s5 + $0x88] sm:$0xff]
    %v5848 = vld [vmem:[%s5 + $0x90] sm:$0xff]
    %v5849 = vld [vmem:[%s5 + $0x98] sm:$0xff]
    %v5850 = vld [vmem:[%s5 + $0xa0] sm:$0xff]
    %v5851 = vld [vmem:[%s5 + $0xa8] sm:$0xff]
    %v5852 = vld [vmem:[%s5 + $0xb0] sm:$0xff]
    %v5853 = vld [vmem:[%s5 + $0xb8] sm:$0xff]
    %v5854 = vld [vmem:[%s5 + $0xc0] sm:$0xff]
    %v5855 = vld [vmem:[%s5 + $0xc8] sm:$0xff]
    %v5856 = vld [vmem:[%s5 + $0xd0] sm:$0xff]
    %v5857 = vld [vmem:[%s5 + $0xd8] sm:$0xff]
    %v5858 = vld [vmem:[%s5 + $0xe0] sm:$0xff]
    %v5859 = vld [vmem:[%s5 + $0xe8] sm:$0xff]
    %v5860 = vld [vmem:[%s5 + $0xf0] sm:$0xff]
    %v5861 = vld [vmem:[%s5 + $0xf8] sm:$0xff]
    %v5862 = vld [vmem:[%s5 + $0x100] sm:$0xff]
    %v5863 = vld [vmem:[%s5 + $0x108] sm:$0xff]
    %v5864 = vld [vmem:[%s5 + $0x110] sm:$0xff]
    %v5865 = vld [vmem:[%s5 + $0x118] sm:$0xff]
    %v5866 = vld [vmem:[%s6] sm:$0x1]
    %v5868 = vlaneseq
    %v5869 = vshrl.u32 %v5868, 7
    %v5870 = vsub.s32 0, %v5869
    %v5871 = vrot.slane %v5866, %v5870
    %v5874 = vsel %vm90, %v5582, 0
    %v5877 = vsel %vm90, %v5583, 0
    %v5880 = vsel %vm90, %v5584, 0
    %v5883 = vsel %vm90, %v5585, 0
    %v5886 = vsel %vm90, %v5586, 0
    %v5889 = vsel %vm90, %v5587, 0
    %v5892 = vsel %vm90, %v5588, 0
    %v5895 = vsel %vm90, %v5589, 0
    %5897 = vmatprep.subr.mxu0 0.0
    %5898 = vmatpush1.msra.mxu0 %v5845
    %5899 = vmatprep.subr.mxu0 0.0
    %5900 = vmatpush1.msra.mxu0 %v5844
    %5901 = vmatprep.subr.mxu0 0.0
    %5902 = vmatpush1.msra.mxu0 %v5843
    %5903 = vmatprep.subr.mxu0 0.0
    %5904 = vmatpush1.msra.mxu0 %v5842
    %5905 = vmatprep.subr.mxu0 0.0
    %5906 = vmatpush1.msra.mxu0 %v5841
    %5907 = vmatprep.subr.mxu0 0.0
    %5908 = vmatpush1.msra.mxu0 %v5840
    %5909 = vmatprep.subr.mxu0 0.0
    %5910 = vmatpush1.msra.mxu0 %v5839
    %5911 = vmatprep.subr.mxu0 0.0
    %5912 = vmatpush1.msra.mxu0 %v5838
    %5913 = vmatprep.subr.mxu0 0.0
    %5914 = vmatpush1.msra.mxu0 %v5837
    %5915 = vmatprep.subr.mxu0 0.0
    %5916 = vmatpush1.msra.mxu0 %v5836
    %5917 = vmatprep.subr.mxu0 0.0
    %5918 = vmatpush1.msra.mxu0 %v5835
    %5919 = vmatprep.subr.mxu0 0.0
    %5920 = vmatpush1.msra.mxu0 %v5834
    %5921 = vmatprep.subr.mxu0 0.0
    %5922 = vmatpush1.msra.mxu0 %v5833
    %5923 = vmatprep.subr.mxu0 0.0
    %5924 = vmatpush1.msra.mxu0 %v5832
    %5925 = vmatprep.subr.mxu0 0.0
    %5926 = vmatpush1.msra.mxu0 %v5831
    %5927 = vmatprep.subr.mxu0 0.0
    %5928 = vmatpush1.msra.mxu0 %v5830
    %5929 = vmatprep.subr.mxu0 0.0
    %5930 = vmatpush2.msra.mxu0 %v5861
    %5931 = vmatprep.subr.mxu0 0.0
    %5932 = vmatpush2.msra.mxu0 %v5860
    %5933 = vmatprep.subr.mxu0 0.0
    %5934 = vmatpush2.msra.mxu0 %v5859
    %5935 = vmatprep.subr.mxu0 0.0
    %5936 = vmatpush2.msra.mxu0 %v5858
    %5937 = vmatprep.subr.mxu0 0.0
    %5938 = vmatpush2.msra.mxu0 %v5857
    %5939 = vmatprep.subr.mxu0 0.0
    %5940 = vmatpush2.msra.mxu0 %v5856
    %5941 = vmatprep.subr.mxu0 0.0
    %5942 = vmatpush2.msra.mxu0 %v5855
    %5943 = vmatprep.subr.mxu0 0.0
    %5944 = vmatpush2.msra.mxu0 %v5854
    %5945 = vmatprep.subr.mxu0 0.0
    %5946 = vmatpush2.msra.mxu0 %v5853
    %5947 = vmatprep.subr.mxu0 0.0
    %5948 = vmatpush2.msra.mxu0 %v5852
    %5949 = vmatprep.subr.mxu0 0.0
    %5950 = vmatpush2.msra.mxu0 %v5851
    %5951 = vmatprep.subr.mxu0 0.0
    %5952 = vmatpush2.msra.mxu0 %v5850
    %5953 = vmatprep.subr.mxu0 0.0
    %5954 = vmatpush2.msra.mxu0 %v5849
    %5955 = vmatprep.subr.mxu0 0.0
    %5956 = vmatpush2.msra.mxu0 %v5848
    %5957 = vmatprep.subr.mxu0 0.0
    %5958 = vmatpush2.msra.mxu0 %v5847
    %5959 = vmatprep.subr.mxu0 0.0
    %5960 = vmatpush2.msra.mxu0 %v5846
    %5961 = vmatprep.mubr.f32.mxu0 %v5822
    %5962 = vmatmul.mubr.f32.gmra.mxu0 %v5798
    %v5963 = vpop.f32.mrf.mxu0
    %v5964 = vadd.f32 %v5871, %v5963
    %v5965 = vpop.f32.mrf.mxu0
    %5966 = vmatprep.mubr.f32.mxu0 %v5823
    %5967 = vmatmul.mubr.f32.gmra.mxu0 %v5799
    %v5968 = vpop.f32.mrf.mxu0
    %v5969 = vadd.f32 %v5871, %v5968
    %v5970 = vpop.f32.mrf.mxu0
    %5971 = vmatprep.mubr.f32.mxu0 %v5824
    %5972 = vmatmul.mubr.f32.gmra.mxu0 %v5800
    %v5973 = vpop.f32.mrf.mxu0
    %v5974 = vadd.f32 %v5871, %v5973
    %v5975 = vpop.f32.mrf.mxu0
    %5976 = vmatprep.mubr.f32.mxu0 %v5825
    %5977 = vmatmul.mubr.f32.gmra.mxu0 %v5801
    %v5978 = vpop.f32.mrf.mxu0
    %v5979 = vadd.f32 %v5871, %v5978
    %v5980 = vpop.f32.mrf.mxu0
    %5981 = vmatprep.mubr.f32.mxu0 %v5826
    %5982 = vmatmul.mubr.f32.gmra.mxu0 %v5802
    %v5983 = vpop.f32.mrf.mxu0
    %v5984 = vadd.f32 %v5871, %v5983
    %v5985 = vpop.f32.mrf.mxu0
    %5986 = vmatprep.mubr.f32.mxu0 %v5827
    %5987 = vmatmul.mubr.f32.gmra.mxu0 %v5803
    %v5988 = vpop.f32.mrf.mxu0
    %v5989 = vadd.f32 %v5871, %v5988
    %v5990 = vpop.f32.mrf.mxu0
    %5991 = vmatprep.mubr.f32.mxu0 %v5828
    %5992 = vmatmul.mubr.f32.gmra.mxu0 %v5804
    %v5993 = vpop.f32.mrf.mxu0
    %v5994 = vadd.f32 %v5871, %v5993
    %v5995 = vpop.f32.mrf.mxu0
    %5996 = vmatprep.mubr.f32.mxu0 %v5829
    %5997 = vmatmul.mubr.f32.gmra.mxu0 %v5805
    %v5998 = vpop.f32.mrf.mxu0
    %v5999 = vadd.f32 %v5871, %v5998
    %v6000 = vpop.f32.mrf.mxu0
    %6001 = vdwg.mxu0
    %6002 = vmatprep.subr.mxu0 0.0
    %6003 = vmatpush1.msra.mxu0 0.0
    %6004 = vmatprep.subr.mxu0 0.0
    %6005 = vmatpush1.msra.mxu0 0.0
    %6006 = vmatprep.subr.mxu0 0.0
    %6007 = vmatpush1.msra.mxu0 0.0
    %6008 = vmatprep.subr.mxu0 0.0
    %6009 = vmatpush1.msra.mxu0 0.0
    %6010 = vmatprep.subr.mxu0 0.0
    %6011 = vmatpush1.msra.mxu0 0.0
    %6012 = vmatprep.subr.mxu0 0.0
    %6013 = vmatpush1.msra.mxu0 0.0
    %6014 = vmatprep.subr.mxu0 0.0
    %6015 = vmatpush1.msra.mxu0 0.0
    %6016 = vmatprep.subr.mxu0 0.0
    %6017 = vmatpush1.msra.mxu0 0.0
    %6018 = vmatprep.subr.mxu0 0.0
    %6019 = vmatpush1.msra.mxu0 0.0
    %6020 = vmatprep.subr.mxu0 0.0
    %6021 = vmatpush1.msra.mxu0 0.0
    %6022 = vmatprep.subr.mxu0 0.0
    %6023 = vmatpush1.msra.mxu0 0.0
    %6024 = vmatprep.subr.mxu0 0.0
    %6025 = vmatpush1.msra.mxu0 0.0
    %6026 = vmatprep.subr.mxu0 0.0
    %6027 = vmatpush1.msra.mxu0 %v5865
    %6028 = vmatprep.subr.mxu0 0.0
    %6029 = vmatpush1.msra.mxu0 %v5864
    %6030 = vmatprep.subr.mxu0 0.0
    %6031 = vmatpush1.msra.mxu0 %v5863
    %6032 = vmatprep.subr.mxu0 0.0
    %6033 = vmatpush1.msra.mxu0 %v5862
    %6034 = vmatprep.subr.mxu0 0.0
    %6035 = vmatpush2.msra.mxu0 0.0
    %6036 = vmatprep.subr.mxu0 0.0
    %6037 = vmatpush2.msra.mxu0 0.0
    %6038 = vmatprep.subr.mxu0 0.0
    %6039 = vmatpush2.msra.mxu0 0.0
    %6040 = vmatprep.subr.mxu0 0.0
    %6041 = vmatpush2.msra.mxu0 0.0
    %6042 = vmatprep.subr.mxu0 0.0
    %6043 = vmatpush2.msra.mxu0 0.0
    %6044 = vmatprep.subr.mxu0 0.0
    %6045 = vmatpush2.msra.mxu0 0.0
    %6046 = vmatprep.subr.mxu0 0.0
    %6047 = vmatpush2.msra.mxu0 0.0
    %6048 = vmatprep.subr.mxu0 0.0
    %6049 = vmatpush2.msra.mxu0 0.0
    %6050 = vmatprep.subr.mxu0 0.0
    %6051 = vmatpush2.msra.mxu0 0.0
    %6052 = vmatprep.subr.mxu0 0.0
    %6053 = vmatpush2.msra.mxu0 0.0
    %6054 = vmatprep.subr.mxu0 0.0
    %6055 = vmatpush2.msra.mxu0 0.0
    %6056 = vmatprep.subr.mxu0 0.0
    %6057 = vmatpush2.msra.mxu0 0.0
    %6058 = vmatprep.subr.mxu0 0.0
    %6059 = vmatpush2.msra.mxu0 0.0
    %6060 = vmatprep.subr.mxu0 0.0
    %6061 = vmatpush2.msra.mxu0 0.0
    %6062 = vmatprep.subr.mxu0 0.0
    %6063 = vmatpush2.msra.mxu0 0.0
    %6064 = vmatprep.subr.mxu0 0.0
    %6065 = vmatpush2.msra.mxu0 0.0
    %6066 = vmatprep.mubr.f32.mxu0 0.0
    %6067 = vmatmul.mubr.f32.gmra.mxu0 %v5874
    %v6068 = vpop.f32.mrf.mxu0
    %v6069 = vadd.f32 %v5964, %v6068
    %v6070 = vpop.f32.mrf.mxu0
    %6071 = vmatprep.mubr.f32.mxu0 0.0
    %6072 = vmatmul.mubr.f32.gmra.mxu0 %v5877
    %v6073 = vpop.f32.mrf.mxu0
    %v6074 = vadd.f32 %v5969, %v6073
    %v6075 = vpop.f32.mrf.mxu0
    %6076 = vmatprep.mubr.f32.mxu0 0.0
    %6077 = vmatmul.mubr.f32.gmra.mxu0 %v5880
    %v6078 = vpop.f32.mrf.mxu0
    %v6079 = vadd.f32 %v5974, %v6078
    %v6080 = vpop.f32.mrf.mxu0
    %6081 = vmatprep.mubr.f32.mxu0 0.0
    %6082 = vmatmul.mubr.f32.gmra.mxu0 %v5883
    %v6083 = vpop.f32.mrf.mxu0
    %v6084 = vadd.f32 %v5979, %v6083
    %v6085 = vpop.f32.mrf.mxu0
    %6086 = vmatprep.mubr.f32.mxu0 0.0
    %6087 = vmatmul.mubr.f32.gmra.mxu0 %v5886
    %v6088 = vpop.f32.mrf.mxu0
    %v6089 = vadd.f32 %v5984, %v6088
    %v6090 = vpop.f32.mrf.mxu0
    %6091 = vmatprep.mubr.f32.mxu0 0.0
    %6092 = vmatmul.mubr.f32.gmra.mxu0 %v5889
    %v6093 = vpop.f32.mrf.mxu0
    %v6094 = vadd.f32 %v5989, %v6093
    %v6095 = vpop.f32.mrf.mxu0
    %6096 = vmatprep.mubr.f32.mxu0 0.0
    %6097 = vmatmul.mubr.f32.gmra.mxu0 %v5892
    %v6098 = vpop.f32.mrf.mxu0
    %v6099 = vadd.f32 %v5994, %v6098
    %v6100 = vpop.f32.mrf.mxu0
    %6101 = vmatprep.mubr.f32.mxu0 0.0
    %6102 = vmatmul.mubr.f32.gmra.mxu0 %v5895
    %v6103 = vpop.f32.mrf.mxu0
    %v6104 = vadd.f32 %v5999, %v6103
    %v6105 = vpop.f32.mrf.mxu0
    %6106 = vdwg.mxu0
    %v6107 = vmax.f32 %v6069, 0.0
    %v6108 = vmax.f32 %v6074, 0.0
    %v6109 = vmax.f32 %v6079, 0.0
    %v6110 = vmax.f32 %v6084, 0.0
    %v6111 = vmax.f32 %v6089, 0.0
    %v6112 = vmax.f32 %v6094, 0.0
    %v6113 = vmax.f32 %v6099, 0.0
    %v6114 = vmax.f32 %v6104, 0.0
    %v6115 = vld [vmem:[%s9] sm:$0x3]
    %v6117 = vsel %vm3195, %v6115, 0
    %6119 = vmatprep.subr.mxu0 0.0
    %6120 = vmatpush1.msra.mxu0 0.0
    %6121 = vmatprep.subr.mxu0 0.0
    %6122 = vmatpush1.msra.mxu0 0.0
    %6123 = vmatprep.subr.mxu0 0.0
    %6124 = vmatpush1.msra.mxu0 0.0
    %6125 = vmatprep.subr.mxu0 0.0
    %6126 = vmatpush1.msra.mxu0 0.0
    %6127 = vmatprep.subr.mxu0 0.0
    %6128 = vmatpush1.msra.mxu0 0.0
    %6129 = vmatprep.subr.mxu0 0.0
    %6130 = vmatpush1.msra.mxu0 0.0
    %6131 = vmatprep.subr.mxu0 0.0
    %6132 = vmatpush1.msra.mxu0 0.0
    %6133 = vmatprep.subr.mxu0 0.0
    %6134 = vmatpush1.msra.mxu0 0.0
    %6135 = vmatprep.subr.mxu0 0.0
    %6136 = vmatpush1.msra.mxu0 %v6114
    %6137 = vmatprep.subr.mxu0 0.0
    %6138 = vmatpush1.msra.mxu0 %v6113
    %6139 = vmatprep.subr.mxu0 0.0
    %6140 = vmatpush1.msra.mxu0 %v6112
    %6141 = vmatprep.subr.mxu0 0.0
    %6142 = vmatpush1.msra.mxu0 %v6111
    %6143 = vmatprep.subr.mxu0 0.0
    %6144 = vmatpush1.msra.mxu0 %v6110
    %6145 = vmatprep.subr.mxu0 0.0
    %6146 = vmatpush1.msra.mxu0 %v6109
    %6147 = vmatprep.subr.mxu0 0.0
    %6148 = vmatpush1.msra.mxu0 %v6108
    %6149 = vmatprep.subr.mxu0 0.0
    %6150 = vmatpush1.msra.mxu0 %v6107
    %6151 = vmatprep.subr.mxu0 0.0
    %6152 = vmatpush2.msra.mxu0 0.0
    %6153 = vmatprep.subr.mxu0 0.0
    %6154 = vmatpush2.msra.mxu0 0.0
    %6155 = vmatprep.subr.mxu0 0.0
    %6156 = vmatpush2.msra.mxu0 0.0
    %6157 = vmatprep.subr.mxu0 0.0
    %6158 = vmatpush2.msra.mxu0 0.0
    %6159 = vmatprep.subr.mxu0 0.0
    %6160 = vmatpush2.msra.mxu0 0.0
    %6161 = vmatprep.subr.mxu0 0.0
    %6162 = vmatpush2.msra.mxu0 0.0
    %6163 = vmatprep.subr.mxu0 0.0
    %6164 = vmatpush2.msra.mxu0 0.0
    %6165 = vmatprep.subr.mxu0 0.0
    %6166 = vmatpush2.msra.mxu0 0.0
    %6167 = vmatprep.subr.mxu0 0.0
    %6168 = vmatpush2.msra.mxu0 0.0
    %6169 = vmatprep.subr.mxu0 0.0
    %6170 = vmatpush2.msra.mxu0 0.0
    %6171 = vmatprep.subr.mxu0 0.0
    %6172 = vmatpush2.msra.mxu0 0.0
    %6173 = vmatprep.subr.mxu0 0.0
    %6174 = vmatpush2.msra.mxu0 0.0
    %6175 = vmatprep.subr.mxu0 0.0
    %6176 = vmatpush2.msra.mxu0 0.0
    %6177 = vmatprep.subr.mxu0 0.0
    %6178 = vmatpush2.msra.mxu0 0.0
    %6179 = vmatprep.subr.mxu0 0.0
    %6180 = vmatpush2.msra.mxu0 0.0
    %6181 = vmatprep.subr.mxu0 0.0
    %6182 = vmatpush2.msra.mxu0 0.0
    %6183 = vmatprep.mubr.f32.mxu0 0.0
    %6184 = vmatmul.mubr.f32.gmra.mxu0 %v6117
    %v6185 = vpop.f32.mrf.mxu0
    %v6186 = vadd.f32 0.0, %v6185
    %v6187 = vpop.f32.mrf.mxu0
    %6188 = vdwg.mxu0
    %v6189 = vld [vmem:[%s10] sm:$0xff]
    %v6190 = vld [vmem:[%s10 + $0x8] sm:$0xff]
    %v6191 = vld [vmem:[%s10 + $0x10] sm:$0xff]
    %v6192 = vld [vmem:[%s10 + $0x18] sm:$0xff]
    %v6193 = vld [vmem:[%s10 + $0x20] sm:$0xff]
    %v6194 = vld [vmem:[%s10 + $0x28] sm:$0xff]
    %v6195 = vld [vmem:[%s10 + $0x30] sm:$0xff]
    %v6196 = vld [vmem:[%s10 + $0x38] sm:$0xff]
    %v6197 = vld [vmem:[%s11] sm:$0x1]
    %v6199 = vlaneseq
    %v6200 = vshrl.u32 %v6199, 7
    %v6201 = vsub.s32 0, %v6200
    %v6202 = vrot.slane %v6197, %v6201
    %v6205 = vsel %vm3195, %v6186, 0
    %6207 = vmatprep.subr.mxu0 0.0
    %6208 = vmatpush1.msra.mxu0 0.0
    %6209 = vmatprep.subr.mxu0 0.0
    %6210 = vmatpush1.msra.mxu0 0.0
    %6211 = vmatprep.subr.mxu0 0.0
    %6212 = vmatpush1.msra.mxu0 0.0
    %6213 = vmatprep.subr.mxu0 0.0
    %6214 = vmatpush1.msra.mxu0 0.0
    %6215 = vmatprep.subr.mxu0 0.0
    %6216 = vmatpush1.msra.mxu0 0.0
    %6217 = vmatprep.subr.mxu0 0.0
    %6218 = vmatpush1.msra.mxu0 0.0
    %6219 = vmatprep.subr.mxu0 0.0
    %6220 = vmatpush1.msra.mxu0 0.0
    %6221 = vmatprep.subr.mxu0 0.0
    %6222 = vmatpush1.msra.mxu0 0.0
    %6223 = vmatprep.subr.mxu0 0.0
    %6224 = vmatpush1.msra.mxu0 %v6196
    %6225 = vmatprep.subr.mxu0 0.0
    %6226 = vmatpush1.msra.mxu0 %v6195
    %6227 = vmatprep.subr.mxu0 0.0
    %6228 = vmatpush1.msra.mxu0 %v6194
    %6229 = vmatprep.subr.mxu0 0.0
    %6230 = vmatpush1.msra.mxu0 %v6193
    %6231 = vmatprep.subr.mxu0 0.0
    %6232 = vmatpush1.msra.mxu0 %v6192
    %6233 = vmatprep.subr.mxu0 0.0
    %6234 = vmatpush1.msra.mxu0 %v6191
    %6235 = vmatprep.subr.mxu0 0.0
    %6236 = vmatpush1.msra.mxu0 %v6190
    %6237 = vmatprep.subr.mxu0 0.0
    %6238 = vmatpush1.msra.mxu0 %v6189
    %6239 = vmatprep.subr.mxu0 0.0
    %6240 = vmatpush2.msra.mxu0 0.0
    %6241 = vmatprep.subr.mxu0 0.0
    %6242 = vmatpush2.msra.mxu0 0.0
    %6243 = vmatprep.subr.mxu0 0.0
    %6244 = vmatpush2.msra.mxu0 0.0
    %6245 = vmatprep.subr.mxu0 0.0
    %6246 = vmatpush2.msra.mxu0 0.0
    %6247 = vmatprep.subr.mxu0 0.0
    %6248 = vmatpush2.msra.mxu0 0.0
    %6249 = vmatprep.subr.mxu0 0.0
    %6250 = vmatpush2.msra.mxu0 0.0
    %6251 = vmatprep.subr.mxu0 0.0
    %6252 = vmatpush2.msra.mxu0 0.0
    %6253 = vmatprep.subr.mxu0 0.0
    %6254 = vmatpush2.msra.mxu0 0.0
    %6255 = vmatprep.subr.mxu0 0.0
    %6256 = vmatpush2.msra.mxu0 0.0
    %6257 = vmatprep.subr.mxu0 0.0
    %6258 = vmatpush2.msra.mxu0 0.0
    %6259 = vmatprep.subr.mxu0 0.0
    %6260 = vmatpush2.msra.mxu0 0.0
    %6261 = vmatprep.subr.mxu0 0.0
    %6262 = vmatpush2.msra.mxu0 0.0
    %6263 = vmatprep.subr.mxu0 0.0
    %6264 = vmatpush2.msra.mxu0 0.0
    %6265 = vmatprep.subr.mxu0 0.0
    %6266 = vmatpush2.msra.mxu0 0.0
    %6267 = vmatprep.subr.mxu0 0.0
    %6268 = vmatpush2.msra.mxu0 0.0
    %6269 = vmatprep.subr.mxu0 0.0
    %6270 = vmatpush2.msra.mxu0 0.0
    %6271 = vmatprep.mubr.f32.mxu0 0.0
    %6272 = vmatmul.mubr.f32.gmra.mxu0 %v6205
    %v6273 = vpop.f32.mrf.mxu0
    %v6274 = vadd.f32 %v6202, %v6273
    %v6275 = vpop.f32.mrf.mxu0
    %6276 = vdwg.mxu0
    %v6277 = vmax.f32 %v6274, 0.0
    %v6278 = vld [vmem:[%s12] sm:$0xff]
    %v6279 = vld [vmem:[%s12 + $0x8] sm:$0xff]
    %v6280 = vld [vmem:[%s12 + $0x10] sm:$0xff]
    %v6281 = vld [vmem:[%s12 + $0x18] sm:$0xff]
    %v6282 = vld [vmem:[%s12 + $0x20] sm:$0xff]
    %v6283 = vld [vmem:[%s12 + $0x28] sm:$0xff]
    %v6284 = vld [vmem:[%s12 + $0x30] sm:$0xff]
    %v6285 = vld [vmem:[%s12 + $0x38] sm:$0xff]
    %v6286 = vld [vmem:[%s12 + $0x40] sm:$0xff]
    %v6287 = vld [vmem:[%s12 + $0x48] sm:$0xff]
    %v6288 = vld [vmem:[%s12 + $0x50] sm:$0xff]
    %v6289 = vld [vmem:[%s12 + $0x58] sm:$0xff]
    %v6290 = vld [vmem:[%s12 + $0x60] sm:$0xff]
    %v6291 = vld [vmem:[%s12 + $0x68] sm:$0xff]
    %v6292 = vld [vmem:[%s12 + $0x70] sm:$0xff]
    %v6293 = vld [vmem:[%s12 + $0x78] sm:$0xff]
    %v6294 = vld [vmem:[%s13] sm:$0x1]
    %v6296 = vlaneseq
    %v6297 = vshrl.u32 %v6296, 7
    %v6298 = vsub.s32 0, %v6297
    %v6299 = vrot.slane %v6294, %v6298
    %6301 = vmatprep.subr.mxu0 0.0
    %6302 = vmatpush1.msra.mxu0 %v6293
    %6303 = vmatprep.subr.mxu0 0.0
    %6304 = vmatpush1.msra.mxu0 %v6292
    %6305 = vmatprep.subr.mxu0 0.0
    %6306 = vmatpush1.msra.mxu0 %v6291
    %6307 = vmatprep.subr.mxu0 0.0
    %6308 = vmatpush1.msra.mxu0 %v6290
    %6309 = vmatprep.subr.mxu0 0.0
    %6310 = vmatpush1.msra.mxu0 %v6289
    %6311 = vmatprep.subr.mxu0 0.0
    %6312 = vmatpush1.msra.mxu0 %v6288
    %6313 = vmatprep.subr.mxu0 0.0
    %6314 = vmatpush1.msra.mxu0 %v6287
    %6315 = vmatprep.subr.mxu0 0.0
    %6316 = vmatpush1.msra.mxu0 %v6286
    %6317 = vmatprep.subr.mxu0 0.0
    %6318 = vmatpush1.msra.mxu0 %v6285
    %6319 = vmatprep.subr.mxu0 0.0
    %6320 = vmatpush1.msra.mxu0 %v6284
    %6321 = vmatprep.subr.mxu0 0.0
    %6322 = vmatpush1.msra.mxu0 %v6283
    %6323 = vmatprep.subr.mxu0 0.0
    %6324 = vmatpush1.msra.mxu0 %v6282
    %6325 = vmatprep.subr.mxu0 0.0
    %6326 = vmatpush1.msra.mxu0 %v6281
    %6327 = vmatprep.subr.mxu0 0.0
    %6328 = vmatpush1.msra.mxu0 %v6280
    %6329 = vmatprep.subr.mxu0 0.0
    %6330 = vmatpush1.msra.mxu0 %v6279
    %6331 = vmatprep.subr.mxu0 0.0
    %6332 = vmatpush1.msra.mxu0 %v6278
    %6333 = vmatprep.subr.mxu0 0.0
    %6334 = vmatpush2.msra.mxu0 0.0
    %6335 = vmatprep.subr.mxu0 0.0
    %6336 = vmatpush2.msra.mxu0 0.0
    %6337 = vmatprep.subr.mxu0 0.0
    %6338 = vmatpush2.msra.mxu0 0.0
    %6339 = vmatprep.subr.mxu0 0.0
    %6340 = vmatpush2.msra.mxu0 0.0
    %6341 = vmatprep.subr.mxu0 0.0
    %6342 = vmatpush2.msra.mxu0 0.0
    %6343 = vmatprep.subr.mxu0 0.0
    %6344 = vmatpush2.msra.mxu0 0.0
    %6345 = vmatprep.subr.mxu0 0.0
    %6346 = vmatpush2.msra.mxu0 0.0
    %6347 = vmatprep.subr.mxu0 0.0
    %6348 = vmatpush2.msra.mxu0 0.0
    %6349 = vmatprep.subr.mxu0 0.0
    %6350 = vmatpush2.msra.mxu0 0.0
    %6351 = vmatprep.subr.mxu0 0.0
    %6352 = vmatpush2.msra.mxu0 0.0
    %6353 = vmatprep.subr.mxu0 0.0
    %6354 = vmatpush2.msra.mxu0 0.0
    %6355 = vmatprep.subr.mxu0 0.0
    %6356 = vmatpush2.msra.mxu0 0.0
    %6357 = vmatprep.subr.mxu0 0.0
    %6358 = vmatpush2.msra.mxu0 0.0
    %6359 = vmatprep.subr.mxu0 0.0
    %6360 = vmatpush2.msra.mxu0 0.0
    %6361 = vmatprep.subr.mxu0 0.0
    %6362 = vmatpush2.msra.mxu0 0.0
    %6363 = vmatprep.subr.mxu0 0.0
    %6364 = vmatpush2.msra.mxu0 0.0
    %6365 = vmatprep.mubr.f32.mxu0 0.0
    %6366 = vmatmul.mubr.f32.gmra.mxu0 %v6277
    %v6367 = vpop.f32.mrf.mxu0
    %v6368 = vadd.f32 %v6299, %v6367
    %v6369 = vpop.f32.mrf.mxu0
    %6370 = vdwg.mxu0
    %6371 = vst [vmem:[#allocation4] sm:$0x3] %v6368
    // Predicated region
    $region58: #{cnn_forward.1} parent=1 // pred_check
      _
    $region59: #{cnn_forward.1} parent=1 // pred_check_branch
      %6373 = sbr.rel (0) target = $region61
    $region60: #{cnn_forward.1} parent=1 // pred_region
      %s6375 = ssub.s32 32, 32
      %6376 = vsyncadd [#allocation5], %s6375
      %s6378 = sshll.u32 [#allocation4], 4
      %s6379 = int_to_ptr.vmem [resolvable:$true] %s6378
      %6381 = dma.vmem_to_hbm [thread:$0]  %s6379, 32, %s14, [#allocation5]
    $region61: #{cnn_forward.1} parent=1 // pred_fallthru
      _
    // Predicated region
    $region62: #{cnn_forward.1} parent=1 // pred_check
      _
    $region63: #{cnn_forward.1} parent=1 // pred_check_branch
      %6383 = sbr.rel (0) target = $region65
    $region64: #{cnn_forward.1} parent=1 // pred_region
      %6384 = dma.done [#allocation5], 32
    $region65: #{cnn_forward.1} parent=1 // pred_fallthru
      _
    %6385 = vsyncpa [#allocation5], 1

</llo_original>
